<compile_context>
chip_gen: v6e
topology: v6e:2x2x1
jax: 0.10.0
libtpu: 0.0.40
codegen_flags: <defaults>
</compile_context>

<pallas_src>
import functools

import jax
import jax.numpy as jnp
from jax import lax
from jax.experimental import pallas as pl
from jax.experimental.pallas import tpu as pltpu


def _ibasic_block_kernel(
    x_ref,        # (H, W, C)      channel-padded full image for this batch index (resident)
    w1_ref,       # (9*C, C)       conv1 weight, im2col-flattened (ky, kx, ci) -> co
    w2_ref,       # (9*C, C)       conv2 weight, im2col-flattened
    bn_ref,       # (8, C)         rows: bn1s, bn1b, bn2s, bn2b, bn3s, bn3b, alpha, 0
    out_ref,      # (TH, W, C)     output row tile (lane-dense: C is a multiple of 128)
    ypad_ref,     # scratch (TH+4, W+2, C)  BN1(x) halo tile, zero-padded border
    zpad_ref,     # scratch (TH+2, W+2, C)  PReLU output halo tile
    *, th,
):
    H, W, C = x_ref.shape
    TH = th
    store_dtype = ypad_ref.dtype          # f32, or bf16 on the bf16 MXU path

    j = pl.program_id(1)
    nb = pl.num_programs(1)
    row0 = pl.multiple_of(j * TH, TH)     # TH is a multiple of 8 in the common configs

    s1 = bn_ref[0:1, :].reshape(1, 1, C)
    b1 = bn_ref[1:2, :].reshape(1, 1, C)
    s2 = bn_ref[2:3, :]
    b2 = bn_ref[3:4, :]
    s3 = bn_ref[4:5, :]
    b3 = bn_ref[5:6, :]
    alpha = bn_ref[6:7, :]

    def bn1(v):
        return (v.astype(jnp.float32) * s1 + b1).astype(store_dtype)

    # ---- build BN1(x) halo tile (global rows row0-2 .. row0+TH+1) ----------
    # Left/right padding columns: written every step (scratch persists across
    # grid steps / cores, and interior writes never touch these columns).
    zcol = jnp.zeros((TH + 4, 1, C), store_dtype)
    ypad_ref[:, 0:1, :] = zcol
    ypad_ref[:, W + 1:W + 2, :] = zcol

    # Core rows (always inside the image).
    ypad_ref[2:TH + 2, 1:W + 1, :] = bn1(x_ref[pl.ds(row0, TH), :, :])

    # Top halo rows: zero padding on the first block, BN1(x) otherwise.
    @pl.when(j == 0)
    def _():
        ypad_ref[0:2, 1:W + 1, :] = jnp.zeros((2, W, C), store_dtype)

    @pl.when(j > 0)
    def _():
        ypad_ref[0:2, 1:W + 1, :] = bn1(x_ref[pl.ds(row0 - 2, 2), :, :])

    # Bottom halo rows: zero padding on the last block, BN1(x) otherwise.
    @pl.when(j == nb - 1)
    def _():
        ypad_ref[TH + 2:TH + 4, 1:W + 1, :] = jnp.zeros((2, W, C), store_dtype)

    @pl.when(j < nb - 1)
    def _():
        ypad_ref[TH + 2:TH + 4, 1:W + 1, :] = bn1(x_ref[pl.ds(row0 + TH, 2), :, :])

    # ---- conv1 (3x3, pad=1) as 3 per-ky im2col matmuls, then bn2 + PReLU ----
    # Output z covers global rows [row0-1, row0+TH+1) -> TH+2 rows.
    rows1 = (TH + 2) * W
    acc1 = jnp.zeros((rows1, C), jnp.float32)
    for ky in range(3):
        p = jnp.concatenate(
            [ypad_ref[ky:ky + TH + 2, kx:kx + W, :] for kx in range(3)],
            axis=-1).reshape(rows1, 3 * C)
        acc1 = acc1 + jnp.dot(p, w1_ref[ky * 3 * C:(ky + 1) * 3 * C, :],
                              preferred_element_type=jnp.float32)

    z = acc1 * s2 + b2
    z = jnp.where(z >= 0.0, z, alpha * z)
    z = z.reshape(TH + 2, W, C).astype(store_dtype)

    # ---- conv2 input halo tile: pad W border, zero out-of-image H rows ------
    zcol2 = jnp.zeros((TH + 2, 1, C), store_dtype)
    zpad_ref[:, 0:1, :] = zcol2
    zpad_ref[:, W + 1:W + 2, :] = zcol2
    zpad_ref[:, 1:W + 1, :] = z

    @pl.when(j == 0)
    def _():  # global row -1 is conv2 zero padding, not a computed value
        zpad_ref[0:1, :, :] = jnp.zeros((1, W + 2, C), store_dtype)

    @pl.when(j == nb - 1)
    def _():  # global row H is conv2 zero padding
        zpad_ref[TH + 1:TH + 2, :, :] = jnp.zeros((1, W + 2, C), store_dtype)

    # ---- conv2 (3x3, pad=1, stride=1), bn3, residual add --------------------
    rows2 = TH * W
    acc2 = jnp.zeros((rows2, C), jnp.float32)
    for ky in range(3):
        p = jnp.concatenate(
            [zpad_ref[ky:ky + TH, kx:kx + W, :] for kx in range(3)],
            axis=-1).reshape(rows2, 3 * C)
        acc2 = acc2 + jnp.dot(p, w2_ref[ky * 3 * C:(ky + 1) * 3 * C, :],
                              preferred_element_type=jnp.float32)

    out = (acc2 * s3 + b3).reshape(TH, W, C)
    # residual add: re-read the x tile late (keeps vreg live ranges short)
    out = out + x_ref[pl.ds(row0, TH), :, :].astype(jnp.float32)

    out_ref[...] = out.astype(out_ref.dtype)


def ibasic_block_pallas(x_nchw, params, *, row_tile=None, use_bf16=False,
                        lane_pad=128, vmem_limit_bytes=48 * 1024 * 1024):
    """x_nchw: (N, Cin, H, W) float32, PyTorch-style NCHW. Returns NCHW.

    row_tile=None processes the whole image height per grid step (best for
    small/medium H); pass a divisor of H to use halo'd row blocks.
    vmem_limit_bytes default (48 MiB) fits every generation incl. v7x (64 MiB
    physical per TC); raise it on v5e/v6e (128 MiB) for larger row tiles.
    """
    N, Cin, H, W = x_nchw.shape
    Cout = params["w1_hwio"].shape[-1]
    assert Cin == Cout, "residual add requires inplanes == planes (no downsample)"

    TH = H if row_tile is None else row_tile
    assert TH >= 2 and H % TH == 0, "row_tile must divide H and be >= 2"
    nb = H // TH

    # Pad channels to a multiple of 128 so the lane axis / MXU N and K dims are
    # full and the output store is unmasked.
    C = max(lane_pad, ((Cin + lane_pad - 1) // lane_pad) * lane_pad)
    mm_dtype = jnp.bfloat16 if use_bf16 else jnp.float32

    x = jnp.transpose(x_nchw, (0, 2, 3, 1))                          # -> NHWC
    if C != Cin:
        x = jnp.pad(x, ((0, 0), (0, 0), (0, 0), (0, C - Cin)))

    def pad_weight(w_hwio):                                          # (3,3,Cin,Cout)
        w = jnp.pad(w_hwio, ((0, 0), (0, 0), (0, C - Cin), (0, C - Cout)))
        return w.reshape(9 * C, C).astype(mm_dtype)

    w1 = pad_weight(params["w1_hwio"])
    w2 = pad_weight(params["w2_hwio"])

    def pad_vec(v):
        return jnp.pad(v.astype(jnp.float32), (0, C - v.shape[0]))

    # Packed per-channel affine params: one (8, C) array, one BlockSpec/DMA.
    bn_pack = jnp.stack([
        pad_vec(params["bn1_scale"]), pad_vec(params["bn1_shift"]),
        pad_vec(params["bn2_scale"]), pad_vec(params["bn2_shift"]),
        pad_vec(params["bn3_scale"]), pad_vec(params["bn3_shift"]),
        pad_vec(params["prelu_alpha"]), jnp.zeros((C,), jnp.float32),
    ], axis=0)

    kernel = functools.partial(_ibasic_block_kernel, th=TH)

    out = pl.pallas_call(
        kernel,
        out_shape=jax.ShapeDtypeStruct((N, H, W, C), x_nchw.dtype),
        grid=(N, nb),
        in_specs=[
            # full image per batch index; block index constant across j, so the
            # image is DMA'd once per batch element and stays resident.
            pl.BlockSpec((None, H, W, C), lambda n, j: (n, 0, 0, 0)),
            pl.BlockSpec((9 * C, C), lambda n, j: (0, 0)),
            pl.BlockSpec((9 * C, C), lambda n, j: (0, 0)),
            pl.BlockSpec((8, C), lambda n, j: (0, 0)),
        ],
        out_specs=pl.BlockSpec((None, TH, W, C), lambda n, j: (n, j, 0, 0)),
        scratch_shapes=[
            pltpu.VMEM((TH + 4, W + 2, C), mm_dtype),
            pltpu.VMEM((TH + 2, W + 2, C), mm_dtype),
        ],
        compiler_params=pltpu.CompilerParams(
            dimension_semantics=("parallel", "parallel"),
            vmem_limit_bytes=vmem_limit_bytes),
    )(x, w1, w2, bn_pack)

    out = out[..., :Cout]                                            # drop channel padding
    return jnp.transpose(out, (0, 3, 1, 2))                          # -> NCHW


def ibasic_block_reference(x_nchw, params):
    """Pure-JAX NCHW reference mirroring the PyTorch forward (eval-mode BN)."""
    x = x_nchw.astype(jnp.float32)

    def bn(v, scale, shift):
        return v * scale[None, :, None, None] + shift[None, :, None, None]

    def conv3x3(v, w_oihw):
        return lax.conv_general_dilated(
            v, w_oihw, window_strides=(1, 1), padding=((1, 1), (1, 1)),
            dimension_numbers=("NCHW", "OIHW", "NCHW"))

    out = bn(x, params["bn1_scale"], params["bn1_shift"])
    out = conv3x3(out, params["w1_oihw"])
    out = bn(out, params["bn2_scale"], params["bn2_shift"])
    a = params["prelu_alpha"][None, :, None, None]
    out = jnp.where(out >= 0.0, out, a * out)
    out = conv3x3(out, params["w2_oihw"])
    out = bn(out, params["bn3_scale"], params["bn3_shift"])
    return out + x


def make_params(key, inplanes, planes):
    ks = jax.random.split(key, 12)
    eps = 1e-5

    def bn_fold(kg, kb, km, kv, c):
        gamma = 1.0 + 0.1 * jax.random.normal(kg, (c,), jnp.float32)
        beta = 0.1 * jax.random.normal(kb, (c,), jnp.float32)
        running_mean = 0.1 * jax.random.normal(km, (c,), jnp.float32)
        running_var = jax.random.uniform(kv, (c,), jnp.float32, 0.5, 1.5)
        scale = gamma / jnp.sqrt(running_var + eps)
        shift = beta - running_mean * scale
        return scale, shift

    bn1_scale, bn1_shift = bn_fold(ks[0], ks[1], ks[2], ks[3], inplanes)
    bn2_scale, bn2_shift = bn_fold(ks[4], ks[5], ks[6], ks[7], planes)
    bn3_scale, bn3_shift = bn_fold(ks[8], ks[9], ks[10], ks[11], planes)

    kw1, kw2, ka = jax.random.split(jax.random.fold_in(key, 99), 3)
    w1_oihw = 0.1 * jax.random.normal(kw1, (planes, inplanes, 3, 3), jnp.float32)
    w2_oihw = 0.1 * jax.random.normal(kw2, (planes, planes, 3, 3), jnp.float32)
    prelu_alpha = jnp.full((planes,), 0.25, jnp.float32) \
        + 0.01 * jax.random.normal(ka, (planes,), jnp.float32)

    return {
        "w1_oihw": w1_oihw,
        "w2_oihw": w2_oihw,
        "w1_hwio": jnp.transpose(w1_oihw, (2, 3, 1, 0)),  # HWIO for NHWC kernel
        "w2_hwio": jnp.transpose(w2_oihw, (2, 3, 1, 0)),
        "bn1_scale": bn1_scale, "bn1_shift": bn1_shift,
        "bn2_scale": bn2_scale, "bn2_shift": bn2_shift,
        "bn3_scale": bn3_scale, "bn3_shift": bn3_shift,
        "prelu_alpha": prelu_alpha,
    }


if __name__ == "__main__":
    N, C, H, W = 2, 8, 16, 16          # inplanes = planes = 8, stride = 1
    key = jax.random.PRNGKey(0)
    kx, kp = jax.random.split(key)
    x = jax.random.normal(kx, (N, C, H, W), jnp.float32)
    params = make_params(kp, C, C)

    ref = jax.block_until_ready(ibasic_block_reference(x, params))

    # f32 path, whole image per grid step (nb = 1, lane-dense padded-C output).
    out = jax.block_until_ready(ibasic_block_pallas(x, params))
    assert out.shape == (N, C, H, W)
    err = float(jnp.max(jnp.abs(out - ref)))
    assert jnp.allclose(out, ref, rtol=1e-4, atol=1e-4), err

    # Multi row-block path: exercises first / interior / last halo tiles (nb = 4).
    out_rt = jax.block_until_ready(ibasic_block_pallas(x, params, row_tile=4))
    err_rt = float(jnp.max(jnp.abs(out_rt - ref)))
    assert jnp.allclose(out_rt, ref, rtol=1e-4, atol=1e-4), err_rt

    # bf16 MXU + bf16 scratch path (f32 accumulation): looser tolerance.
    out_bf16 = jax.block_until_ready(
        ibasic_block_pallas(x, params, row_tile=8, use_bf16=True))
    err_bf16 = float(jnp.max(jnp.abs(out_bf16 - ref)))
    assert err_bf16 < 0.25, err_bf16

    print("KERNEL_OK")
</pallas_src>

<mosaic_0001>
module attributes {stable_mosaic.version = 11 : i64} {
  func.func @_ibasic_block_kernel(%arg0: i32, %arg1: i32, %arg2: memref<1x16x16x128xf32, #tpu.memory_space<vmem>>, %arg3: memref<1152x128xf32, #tpu.memory_space<vmem>>, %arg4: memref<1152x128xf32, #tpu.memory_space<vmem>>, %arg5: memref<8x128xf32, #tpu.memory_space<vmem>>, %arg6: memref<1x16x16x128xf32, #tpu.memory_space<vmem>>, %arg7: memref<20x18x128xf32, #tpu.memory_space<vmem>>, %arg8: memref<18x18x128xf32, #tpu.memory_space<vmem>>) attributes {dimension_semantics = [#tpu.dimension_semantics<parallel>, #tpu.dimension_semantics<parallel>], iteration_bounds = array<i64: 2, 1>, scalar_prefetch = 0 : i64, scratch_operands = 2 : i64, tpu.core_type = #tpu.core_type<tc>, window_params = [{transform_indices = @transform_0, window_bounds = array<i64: 1, 16, 16, 128>}, {pipeline_mode = #tpu.pipeline_mode<synchronous>, transform_indices = @transform_1, window_bounds = array<i64: 1152, 128>}, {pipeline_mode = #tpu.pipeline_mode<synchronous>, transform_indices = @transform_2, window_bounds = array<i64: 1152, 128>}, {pipeline_mode = #tpu.pipeline_mode<synchronous>, transform_indices = @transform_3, window_bounds = array<i64: 8, 128>}, {transform_indices = @transform_4, window_bounds = array<i64: 1, 16, 16, 128>}]} {
    %c16_i32 = arith.constant 16 : i32
    %0 = arith.muli %arg1, %c16_i32 : i32
    %1 = tpu.assume_multiple %0, 16 : i32
    %c0 = arith.constant 0 : index
    %c0_0 = arith.constant 0 : index
    %2 = vector.load %arg5[%c0, %c0_0] : memref<8x128xf32, #tpu.memory_space<vmem>>, vector<1x128xf32>
    %3 = vector.shape_cast %2 : vector<1x128xf32> to vector<1x1x128xf32>
    %c1 = arith.constant 1 : index
    %c0_1 = arith.constant 0 : index
    %4 = vector.load %arg5[%c1, %c0_1] : memref<8x128xf32, #tpu.memory_space<vmem>>, vector<1x128xf32>
    %5 = vector.shape_cast %4 : vector<1x128xf32> to vector<1x1x128xf32>
    %c2 = arith.constant 2 : index
    %c0_2 = arith.constant 0 : index
    %6 = vector.load %arg5[%c2, %c0_2] : memref<8x128xf32, #tpu.memory_space<vmem>>, vector<1x128xf32>
    %c3 = arith.constant 3 : index
    %c0_3 = arith.constant 0 : index
    %7 = vector.load %arg5[%c3, %c0_3] : memref<8x128xf32, #tpu.memory_space<vmem>>, vector<1x128xf32>
    %c4 = arith.constant 4 : index
    %c0_4 = arith.constant 0 : index
    %8 = vector.load %arg5[%c4, %c0_4] : memref<8x128xf32, #tpu.memory_space<vmem>>, vector<1x128xf32>
    %c5 = arith.constant 5 : index
    %c0_5 = arith.constant 0 : index
    %9 = vector.load %arg5[%c5, %c0_5] : memref<8x128xf32, #tpu.memory_space<vmem>>, vector<1x128xf32>
    %c6 = arith.constant 6 : index
    %c0_6 = arith.constant 0 : index
    %10 = vector.load %arg5[%c6, %c0_6] : memref<8x128xf32, #tpu.memory_space<vmem>>, vector<1x128xf32>
    %cst = arith.constant 0.000000e+00 : f32
    %11 = vector.broadcast %cst : f32 to vector<20x1x128xf32>
    %c0_7 = arith.constant 0 : index
    %c0_8 = arith.constant 0 : index
    %c0_9 = arith.constant 0 : index
    %12 = vector.load %arg7[%c0_7, %c0_8, %c0_9] : memref<20x18x128xf32, #tpu.memory_space<vmem>>, vector<20x1x128xf32>
    tpu.vector_store %arg7[%c0_7, %c0_8, %c0_9], %11 {strides = array<i32>} : memref<20x18x128xf32, #tpu.memory_space<vmem>>, vector<20x1x128xf32>,
    %c0_10 = arith.constant 0 : index
    %c17 = arith.constant 17 : index
    %c0_11 = arith.constant 0 : index
    %13 = vector.load %arg7[%c0_10, %c17, %c0_11] : memref<20x18x128xf32, #tpu.memory_space<vmem>>, vector<20x1x128xf32>
    tpu.vector_store %arg7[%c0_10, %c17, %c0_11], %11 {strides = array<i32>} : memref<20x18x128xf32, #tpu.memory_space<vmem>>, vector<20x1x128xf32>,
    %c0_12 = arith.constant 0 : index
    %14 = arith.index_cast %1 : i32 to index
    %c0_13 = arith.constant 0 : index
    %c0_14 = arith.constant 0 : index
    %15 = vector.load %arg2[%c0_12, %14, %c0_13, %c0_14] : memref<1x16x16x128xf32, #tpu.memory_space<vmem>>, vector<1x16x16x128xf32>
    %16 = vector.shape_cast %15 : vector<1x16x16x128xf32> to vector<16x16x128xf32>
    %17 = vector.broadcast %3 : vector<1x1x128xf32> to vector<16x16x128xf32>
    %18 = arith.mulf %16, %17 : vector<16x16x128xf32>
    %19 = vector.broadcast %5 : vector<1x1x128xf32> to vector<16x16x128xf32>
    %20 = arith.addf %18, %19 : vector<16x16x128xf32>
    %c2_15 = arith.constant 2 : index
    %c1_16 = arith.constant 1 : index
    %c0_17 = arith.constant 0 : index
    %21 = vector.load %arg7[%c2_15, %c1_16, %c0_17] : memref<20x18x128xf32, #tpu.memory_space<vmem>>, vector<16x16x128xf32>
    tpu.vector_store %arg7[%c2_15, %c1_16, %c0_17], %20 {strides = array<i32>} : memref<20x18x128xf32, #tpu.memory_space<vmem>>, vector<16x16x128xf32>,
    %c0_i32 = arith.constant 0 : i32
    %22 = arith.cmpi eq, %arg1, %c0_i32 : i32
    %23 = arith.extui %22 : i1 to i32
    %c0_i32_18 = arith.constant 0 : i32
    %24 = arith.cmpi ne, %23, %c0_i32_18 : i32
    scf.if %24 {
      %cst_119 = arith.constant 0.000000e+00 : f32
      %116 = vector.broadcast %cst_119 : f32 to vector<2x16x128xf32>
      %c0_120 = arith.constant 0 : index
      %c1_121 = arith.constant 1 : index
      %c0_122 = arith.constant 0 : index
      %117 = vector.load %arg7[%c0_120, %c1_121, %c0_122] : memref<20x18x128xf32, #tpu.memory_space<vmem>>, vector<2x16x128xf32>
      tpu.vector_store %arg7[%c0_120, %c1_121, %c0_122], %116 {strides = array<i32>} : memref<20x18x128xf32, #tpu.memory_space<vmem>>, vector<2x16x128xf32>,
    } else {
    }
    %c0_i32_19 = arith.constant 0 : i32
    %25 = arith.cmpi sgt, %arg1, %c0_i32_19 : i32
    %26 = arith.extui %25 : i1 to i32
    %c0_i32_20 = arith.constant 0 : i32
    %27 = arith.cmpi ne, %26, %c0_i32_20 : i32
    scf.if %27 {
      %c2_i32 = arith.constant 2 : i32
      %116 = arith.subi %1, %c2_i32 : i32
      %c0_119 = arith.constant 0 : index
      %117 = arith.index_cast %116 : i32 to index
      %c0_120 = arith.constant 0 : index
      %c0_121 = arith.constant 0 : index
      %118 = vector.load %arg2[%c0_119, %117, %c0_120, %c0_121] : memref<1x16x16x128xf32, #tpu.memory_space<vmem>>, vector<1x2x16x128xf32>
      %119 = vector.shape_cast %118 : vector<1x2x16x128xf32> to vector<2x16x128xf32>
      %120 = vector.broadcast %3 : vector<1x1x128xf32> to vector<2x16x128xf32>
      %121 = arith.mulf %119, %120 : vector<2x16x128xf32>
      %122 = vector.broadcast %5 : vector<1x1x128xf32> to vector<2x16x128xf32>
      %123 = arith.addf %121, %122 : vector<2x16x128xf32>
      %c0_122 = arith.constant 0 : index
      %c1_123 = arith.constant 1 : index
      %c0_124 = arith.constant 0 : index
      %124 = vector.load %arg7[%c0_122, %c1_123, %c0_124] : memref<20x18x128xf32, #tpu.memory_space<vmem>>, vector<2x16x128xf32>
      tpu.vector_store %arg7[%c0_122, %c1_123, %c0_124], %123 {strides = array<i32>} : memref<20x18x128xf32, #tpu.memory_space<vmem>>, vector<2x16x128xf32>,
    } else {
    }
    %c0_i32_21 = arith.constant 0 : i32
    %28 = arith.cmpi eq, %arg1, %c0_i32_21 : i32
    %29 = arith.extui %28 : i1 to i32
    %c0_i32_22 = arith.constant 0 : i32
    %30 = arith.cmpi ne, %29, %c0_i32_22 : i32
    scf.if %30 {
      %cst_119 = arith.constant 0.000000e+00 : f32
      %116 = vector.broadcast %cst_119 : f32 to vector<2x16x128xf32>
      %c18 = arith.constant 18 : index
      %c1_120 = arith.constant 1 : index
      %c0_121 = arith.constant 0 : index
      %117 = vector.load %arg7[%c18, %c1_120, %c0_121] : memref<20x18x128xf32, #tpu.memory_space<vmem>>, vector<2x16x128xf32>
      tpu.vector_store %arg7[%c18, %c1_120, %c0_121], %116 {strides = array<i32>} : memref<20x18x128xf32, #tpu.memory_space<vmem>>, vector<2x16x128xf32>,
    } else {
    }
    %c0_i32_23 = arith.constant 0 : i32
    %31 = arith.cmpi slt, %arg1, %c0_i32_23 : i32
    %32 = arith.extui %31 : i1 to i32
    %c0_i32_24 = arith.constant 0 : i32
    %33 = arith.cmpi ne, %32, %c0_i32_24 : i32
    scf.if %33 {
      %c16_i32_119 = arith.constant 16 : i32
      %116 = arith.addi %1, %c16_i32_119 : i32
      %c0_120 = arith.constant 0 : index
      %117 = arith.index_cast %116 : i32 to index
      %c0_121 = arith.constant 0 : index
      %c0_122 = arith.constant 0 : index
      %118 = vector.load %arg2[%c0_120, %117, %c0_121, %c0_122] : memref<1x16x16x128xf32, #tpu.memory_space<vmem>>, vector<1x2x16x128xf32>
      %119 = vector.shape_cast %118 : vector<1x2x16x128xf32> to vector<2x16x128xf32>
      %120 = vector.broadcast %3 : vector<1x1x128xf32> to vector<2x16x128xf32>
      %121 = arith.mulf %119, %120 : vector<2x16x128xf32>
      %122 = vector.broadcast %5 : vector<1x1x128xf32> to vector<2x16x128xf32>
      %123 = arith.addf %121, %122 : vector<2x16x128xf32>
      %c18 = arith.constant 18 : index
      %c1_123 = arith.constant 1 : index
      %c0_124 = arith.constant 0 : index
      %124 = vector.load %arg7[%c18, %c1_123, %c0_124] : memref<20x18x128xf32, #tpu.memory_space<vmem>>, vector<2x16x128xf32>
      tpu.vector_store %arg7[%c18, %c1_123, %c0_124], %123 {strides = array<i32>} : memref<20x18x128xf32, #tpu.memory_space<vmem>>, vector<2x16x128xf32>,
    } else {
    }
    %cst_25 = arith.constant 0.000000e+00 : f32
    %34 = vector.broadcast %cst_25 : f32 to vector<288x128xf32>
    %c0_26 = arith.constant 0 : index
    %c0_27 = arith.constant 0 : index
    %c0_28 = arith.constant 0 : index
    %35 = vector.load %arg7[%c0_26, %c0_27, %c0_28] : memref<20x18x128xf32, #tpu.memory_space<vmem>>, vector<18x16x128xf32>
    %c0_29 = arith.constant 0 : index
    %c1_30 = arith.constant 1 : index
    %c0_31 = arith.constant 0 : index
    %36 = vector.load %arg7[%c0_29, %c1_30, %c0_31] : memref<20x18x128xf32, #tpu.memory_space<vmem>>, vector<18x16x128xf32>
    %c0_32 = arith.constant 0 : index
    %c2_33 = arith.constant 2 : index
    %c0_34 = arith.constant 0 : index
    %37 = vector.load %arg7[%c0_32, %c2_33, %c0_34] : memref<20x18x128xf32, #tpu.memory_space<vmem>>, vector<18x16x128xf32>
    %38 = tpu.concatenate %35, %36, %37 in 2 : vector<18x16x128xf32>, vector<18x16x128xf32>, vector<18x16x128xf32> -> vector<18x16x384xf32>
    %39 = vector.shape_cast %38 : vector<18x16x384xf32> to vector<288x384xf32>
    %c0_35 = arith.constant 0 : index
    %c0_36 = arith.constant 0 : index
    %40 = vector.load %arg3[%c0_35, %c0_36] : memref<1152x128xf32, #tpu.memory_space<vmem>>, vector<384x128xf32>
    %cst_37 = arith.constant dense<0.000000e+00> : vector<288x128xf32>
    %41 = tpu.matmul %39, %40, %cst_37 {dimension_numbers = #tpu.dot_dimension_numbers<[1], [0], [0], [1], [0, 0, 1, 1], [], []>} : vector<288x384xf32>, vector<384x128xf32>, vector<288x128xf32> -> vector<288x128xf32>
    %42 = arith.addf %34, %41 : vector<288x128xf32>
    %c1_38 = arith.constant 1 : index
    %c0_39 = arith.constant 0 : index
    %c0_40 = arith.constant 0 : index
    %43 = vector.load %arg7[%c1_38, %c0_39, %c0_40] : memref<20x18x128xf32, #tpu.memory_space<vmem>>, vector<18x16x128xf32>
    %c1_41 = arith.constant 1 : index
    %c1_42 = arith.constant 1 : index
    %c0_43 = arith.constant 0 : index
    %44 = vector.load %arg7[%c1_41, %c1_42, %c0_43] : memref<20x18x128xf32, #tpu.memory_space<vmem>>, vector<18x16x128xf32>
    %c1_44 = arith.constant 1 : index
    %c2_45 = arith.constant 2 : index
    %c0_46 = arith.constant 0 : index
    %45 = vector.load %arg7[%c1_44, %c2_45, %c0_46] : memref<20x18x128xf32, #tpu.memory_space<vmem>>, vector<18x16x128xf32>
    %46 = tpu.concatenate %43, %44, %45 in 2 : vector<18x16x128xf32>, vector<18x16x128xf32>, vector<18x16x128xf32> -> vector<18x16x384xf32>
    %47 = vector.shape_cast %46 : vector<18x16x384xf32> to vector<288x384xf32>
    %c384 = arith.constant 384 : index
    %c0_47 = arith.constant 0 : index
    %48 = vector.load %arg3[%c384, %c0_47] : memref<1152x128xf32, #tpu.memory_space<vmem>>, vector<384x128xf32>
    %cst_48 = arith.constant dense<0.000000e+00> : vector<288x128xf32>
    %49 = tpu.matmul %47, %48, %cst_48 {dimension_numbers = #tpu.dot_dimension_numbers<[1], [0], [0], [1], [0, 0, 1, 1], [], []>} : vector<288x384xf32>, vector<384x128xf32>, vector<288x128xf32> -> vector<288x128xf32>
    %50 = arith.addf %42, %49 : vector<288x128xf32>
    %c2_49 = arith.constant 2 : index
    %c0_50 = arith.constant 0 : index
    %c0_51 = arith.constant 0 : index
    %51 = vector.load %arg7[%c2_49, %c0_50, %c0_51] : memref<20x18x128xf32, #tpu.memory_space<vmem>>, vector<18x16x128xf32>
    %c2_52 = arith.constant 2 : index
    %c1_53 = arith.constant 1 : index
    %c0_54 = arith.constant 0 : index
    %52 = vector.load %arg7[%c2_52, %c1_53, %c0_54] : memref<20x18x128xf32, #tpu.memory_space<vmem>>, vector<18x16x128xf32>
    %c2_55 = arith.constant 2 : index
    %c2_56 = arith.constant 2 : index
    %c0_57 = arith.constant 0 : index
    %53 = vector.load %arg7[%c2_55, %c2_56, %c0_57] : memref<20x18x128xf32, #tpu.memory_space<vmem>>, vector<18x16x128xf32>
    %54 = tpu.concatenate %51, %52, %53 in 2 : vector<18x16x128xf32>, vector<18x16x128xf32>, vector<18x16x128xf32> -> vector<18x16x384xf32>
    %55 = vector.shape_cast %54 : vector<18x16x384xf32> to vector<288x384xf32>
    %c768 = arith.constant 768 : index
    %c0_58 = arith.constant 0 : index
    %56 = vector.load %arg3[%c768, %c0_58] : memref<1152x128xf32, #tpu.memory_space<vmem>>, vector<384x128xf32>
    %cst_59 = arith.constant dense<0.000000e+00> : vector<288x128xf32>
    %57 = tpu.matmul %55, %56, %cst_59 {dimension_numbers = #tpu.dot_dimension_numbers<[1], [0], [0], [1], [0, 0, 1, 1], [], []>} : vector<288x384xf32>, vector<384x128xf32>, vector<288x128xf32> -> vector<288x128xf32>
    %58 = arith.addf %50, %57 : vector<288x128xf32>
    %59 = vector.broadcast %6 : vector<1x128xf32> to vector<288x128xf32>
    %60 = arith.mulf %58, %59 : vector<288x128xf32>
    %61 = vector.broadcast %7 : vector<1x128xf32> to vector<288x128xf32>
    %62 = arith.addf %60, %61 : vector<288x128xf32>
    %cst_60 = arith.constant 0.000000e+00 : f32
    %63 = vector.broadcast %cst_60 : f32 to vector<288x128xf32>
    %64 = arith.cmpf oge, %62, %63 : vector<288x128xf32>
    %65 = vector.broadcast %10 : vector<1x128xf32> to vector<288x128xf32>
    %66 = arith.mulf %65, %62 : vector<288x128xf32>
    %67 = arith.select %64, %62, %66 : vector<288x128xi1>, vector<288x128xf32>
    %68 = vector.shape_cast %67 : vector<288x128xf32> to vector<18x16x128xf32>
    %cst_61 = arith.constant 0.000000e+00 : f32
    %69 = vector.broadcast %cst_61 : f32 to vector<18x1x128xf32>
    %c0_62 = arith.constant 0 : index
    %c0_63 = arith.constant 0 : index
    %c0_64 = arith.constant 0 : index
    %70 = vector.load %arg8[%c0_62, %c0_63, %c0_64] : memref<18x18x128xf32, #tpu.memory_space<vmem>>, vector<18x1x128xf32>
    tpu.vector_store %arg8[%c0_62, %c0_63, %c0_64], %69 {strides = array<i32>} : memref<18x18x128xf32, #tpu.memory_space<vmem>>, vector<18x1x128xf32>,
    %c0_65 = arith.constant 0 : index
    %c17_66 = arith.constant 17 : index
    %c0_67 = arith.constant 0 : index
    %71 = vector.load %arg8[%c0_65, %c17_66, %c0_67] : memref<18x18x128xf32, #tpu.memory_space<vmem>>, vector<18x1x128xf32>
    tpu.vector_store %arg8[%c0_65, %c17_66, %c0_67], %69 {strides = array<i32>} : memref<18x18x128xf32, #tpu.memory_space<vmem>>, vector<18x1x128xf32>,
    %c0_68 = arith.constant 0 : index
    %c1_69 = arith.constant 1 : index
    %c0_70 = arith.constant 0 : index
    %72 = vector.load %arg8[%c0_68, %c1_69, %c0_70] : memref<18x18x128xf32, #tpu.memory_space<vmem>>, vector<18x16x128xf32>
    tpu.vector_store %arg8[%c0_68, %c1_69, %c0_70], %68 {strides = array<i32>} : memref<18x18x128xf32, #tpu.memory_space<vmem>>, vector<18x16x128xf32>,
    %c0_i32_71 = arith.constant 0 : i32
    %73 = arith.cmpi eq, %arg1, %c0_i32_71 : i32
    %74 = arith.extui %73 : i1 to i32
    %c0_i32_72 = arith.constant 0 : i32
    %75 = arith.cmpi ne, %74, %c0_i32_72 : i32
    scf.if %75 {
      %cst_119 = arith.constant 0.000000e+00 : f32
      %116 = vector.broadcast %cst_119 : f32 to vector<1x18x128xf32>
      %c0_120 = arith.constant 0 : index
      %c0_121 = arith.constant 0 : index
      %c0_122 = arith.constant 0 : index
      %117 = vector.load %arg8[%c0_120, %c0_121, %c0_122] : memref<18x18x128xf32, #tpu.memory_space<vmem>>, vector<1x18x128xf32>
      tpu.vector_store %arg8[%c0_120, %c0_121, %c0_122], %116 {strides = array<i32>} : memref<18x18x128xf32, #tpu.memory_space<vmem>>, vector<1x18x128xf32>,
    } else {
    }
    %c0_i32_73 = arith.constant 0 : i32
    %76 = arith.cmpi eq, %arg1, %c0_i32_73 : i32
    %77 = arith.extui %76 : i1 to i32
    %c0_i32_74 = arith.constant 0 : i32
    %78 = arith.cmpi ne, %77, %c0_i32_74 : i32
    scf.if %78 {
      %cst_119 = arith.constant 0.000000e+00 : f32
      %116 = vector.broadcast %cst_119 : f32 to vector<1x18x128xf32>
      %c17_120 = arith.constant 17 : index
      %c0_121 = arith.constant 0 : index
      %c0_122 = arith.constant 0 : index
      %117 = vector.load %arg8[%c17_120, %c0_121, %c0_122] : memref<18x18x128xf32, #tpu.memory_space<vmem>>, vector<1x18x128xf32>
      tpu.vector_store %arg8[%c17_120, %c0_121, %c0_122], %116 {strides = array<i32>} : memref<18x18x128xf32, #tpu.memory_space<vmem>>, vector<1x18x128xf32>,
    } else {
    }
    %cst_75 = arith.constant 0.000000e+00 : f32
    %79 = vector.broadcast %cst_75 : f32 to vector<256x128xf32>
    %c0_76 = arith.constant 0 : index
    %c0_77 = arith.constant 0 : index
    %c0_78 = arith.constant 0 : index
    %80 = vector.load %arg8[%c0_76, %c0_77, %c0_78] : memref<18x18x128xf32, #tpu.memory_space<vmem>>, vector<16x16x128xf32>
    %c0_79 = arith.constant 0 : index
    %c1_80 = arith.constant 1 : index
    %c0_81 = arith.constant 0 : index
    %81 = vector.load %arg8[%c0_79, %c1_80, %c0_81] : memref<18x18x128xf32, #tpu.memory_space<vmem>>, vector<16x16x128xf32>
    %c0_82 = arith.constant 0 : index
    %c2_83 = arith.constant 2 : index
    %c0_84 = arith.constant 0 : index
    %82 = vector.load %arg8[%c0_82, %c2_83, %c0_84] : memref<18x18x128xf32, #tpu.memory_space<vmem>>, vector<16x16x128xf32>
    %83 = tpu.concatenate %80, %81, %82 in 2 : vector<16x16x128xf32>, vector<16x16x128xf32>, vector<16x16x128xf32> -> vector<16x16x384xf32>
    %84 = vector.shape_cast %83 : vector<16x16x384xf32> to vector<256x384xf32>
    %c0_85 = arith.constant 0 : index
    %c0_86 = arith.constant 0 : index
    %85 = vector.load %arg4[%c0_85, %c0_86] : memref<1152x128xf32, #tpu.memory_space<vmem>>, vector<384x128xf32>
    %cst_87 = arith.constant dense<0.000000e+00> : vector<256x128xf32>
    %86 = tpu.matmul %84, %85, %cst_87 {dimension_numbers = #tpu.dot_dimension_numbers<[1], [0], [0], [1], [0, 0, 1, 1], [], []>} : vector<256x384xf32>, vector<384x128xf32>, vector<256x128xf32> -> vector<256x128xf32>
    %87 = arith.addf %79, %86 : vector<256x128xf32>
    %c1_88 = arith.constant 1 : index
    %c0_89 = arith.constant 0 : index
    %c0_90 = arith.constant 0 : index
    %88 = vector.load %arg8[%c1_88, %c0_89, %c0_90] : memref<18x18x128xf32, #tpu.memory_space<vmem>>, vector<16x16x128xf32>
    %c1_91 = arith.constant 1 : index
    %c1_92 = arith.constant 1 : index
    %c0_93 = arith.constant 0 : index
    %89 = vector.load %arg8[%c1_91, %c1_92, %c0_93] : memref<18x18x128xf32, #tpu.memory_space<vmem>>, vector<16x16x128xf32>
    %c1_94 = arith.constant 1 : index
    %c2_95 = arith.constant 2 : index
    %c0_96 = arith.constant 0 : index
    %90 = vector.load %arg8[%c1_94, %c2_95, %c0_96] : memref<18x18x128xf32, #tpu.memory_space<vmem>>, vector<16x16x128xf32>
    %91 = tpu.concatenate %88, %89, %90 in 2 : vector<16x16x128xf32>, vector<16x16x128xf32>, vector<16x16x128xf32> -> vector<16x16x384xf32>
    %92 = vector.shape_cast %91 : vector<16x16x384xf32> to vector<256x384xf32>
    %c384_97 = arith.constant 384 : index
    %c0_98 = arith.constant 0 : index
    %93 = vector.load %arg4[%c384_97, %c0_98] : memref<1152x128xf32, #tpu.memory_space<vmem>>, vector<384x128xf32>
    %cst_99 = arith.constant dense<0.000000e+00> : vector<256x128xf32>
    %94 = tpu.matmul %92, %93, %cst_99 {dimension_numbers = #tpu.dot_dimension_numbers<[1], [0], [0], [1], [0, 0, 1, 1], [], []>} : vector<256x384xf32>, vector<384x128xf32>, vector<256x128xf32> -> vector<256x128xf32>
    %95 = arith.addf %87, %94 : vector<256x128xf32>
    %c2_100 = arith.constant 2 : index
    %c0_101 = arith.constant 0 : index
    %c0_102 = arith.constant 0 : index
    %96 = vector.load %arg8[%c2_100, %c0_101, %c0_102] : memref<18x18x128xf32, #tpu.memory_space<vmem>>, vector<16x16x128xf32>
    %c2_103 = arith.constant 2 : index
    %c1_104 = arith.constant 1 : index
    %c0_105 = arith.constant 0 : index
    %97 = vector.load %arg8[%c2_103, %c1_104, %c0_105] : memref<18x18x128xf32, #tpu.memory_space<vmem>>, vector<16x16x128xf32>
    %c2_106 = arith.constant 2 : index
    %c2_107 = arith.constant 2 : index
    %c0_108 = arith.constant 0 : index
    %98 = vector.load %arg8[%c2_106, %c2_107, %c0_108] : memref<18x18x128xf32, #tpu.memory_space<vmem>>, vector<16x16x128xf32>
    %99 = tpu.concatenate %96, %97, %98 in 2 : vector<16x16x128xf32>, vector<16x16x128xf32>, vector<16x16x128xf32> -> vector<16x16x384xf32>
    %100 = vector.shape_cast %99 : vector<16x16x384xf32> to vector<256x384xf32>
    %c768_109 = arith.constant 768 : index
    %c0_110 = arith.constant 0 : index
    %101 = vector.load %arg4[%c768_109, %c0_110] : memref<1152x128xf32, #tpu.memory_space<vmem>>, vector<384x128xf32>
    %cst_111 = arith.constant dense<0.000000e+00> : vector<256x128xf32>
    %102 = tpu.matmul %100, %101, %cst_111 {dimension_numbers = #tpu.dot_dimension_numbers<[1], [0], [0], [1], [0, 0, 1, 1], [], []>} : vector<256x384xf32>, vector<384x128xf32>, vector<256x128xf32> -> vector<256x128xf32>
    %103 = arith.addf %95, %102 : vector<256x128xf32>
    %104 = vector.broadcast %8 : vector<1x128xf32> to vector<256x128xf32>
    %105 = arith.mulf %103, %104 : vector<256x128xf32>
    %106 = vector.broadcast %9 : vector<1x128xf32> to vector<256x128xf32>
    %107 = arith.addf %105, %106 : vector<256x128xf32>
    %108 = vector.shape_cast %107 : vector<256x128xf32> to vector<16x16x128xf32>
    %c0_112 = arith.constant 0 : index
    %109 = arith.index_cast %1 : i32 to index
    %c0_113 = arith.constant 0 : index
    %c0_114 = arith.constant 0 : index
    %110 = vector.load %arg2[%c0_112, %109, %c0_113, %c0_114] : memref<1x16x16x128xf32, #tpu.memory_space<vmem>>, vector<1x16x16x128xf32>
    %111 = vector.shape_cast %110 : vector<1x16x16x128xf32> to vector<16x16x128xf32>
    %112 = arith.addf %108, %111 : vector<16x16x128xf32>
    %c0_115 = arith.constant 0 : index
    %c0_116 = arith.constant 0 : index
    %c0_117 = arith.constant 0 : index
    %c0_118 = arith.constant 0 : index
    %113 = vector.load %arg6[%c0_115, %c0_116, %c0_117, %c0_118] : memref<1x16x16x128xf32, #tpu.memory_space<vmem>>, vector<1x16x16x128xf32>
    %114 = vector.shape_cast %113 : vector<1x16x16x128xf32> to vector<16x16x128xf32>
    %115 = vector.shape_cast %112 : vector<16x16x128xf32> to vector<1x16x16x128xf32>
    tpu.vector_store %arg6[%c0_115, %c0_116, %c0_117, %c0_118], %115 {strides = array<i32>} : memref<1x16x16x128xf32, #tpu.memory_space<vmem>>, vector<1x16x16x128xf32>,
    return
  }
  func.func @transform_0(%arg0: i32, %arg1: i32) -> (i32, i32, i32, i32) {
    %c0_i32 = arith.constant 0 : i32
    %c0_i32_0 = arith.constant 0 : i32
    %c0_i32_1 = arith.constant 0 : i32
    %c0_i32_2 = arith.constant 0 : i32
    return %arg0, %c0_i32, %c0_i32_0, %c0_i32_1 : i32, i32, i32, i32
  }
  func.func @transform_1(%arg0: i32, %arg1: i32) -> (i32, i32) {
    %c0_i32 = arith.constant 0 : i32
    %c0_i32_0 = arith.constant 0 : i32
    %c0_i32_1 = arith.constant 0 : i32
    return %c0_i32, %c0_i32_0 : i32, i32
  }
  func.func @transform_2(%arg0: i32, %arg1: i32) -> (i32, i32) {
    %c0_i32 = arith.constant 0 : i32
    %c0_i32_0 = arith.constant 0 : i32
    %c0_i32_1 = arith.constant 0 : i32
    return %c0_i32, %c0_i32_0 : i32, i32
  }
  func.func @transform_3(%arg0: i32, %arg1: i32) -> (i32, i32) {
    %c0_i32 = arith.constant 0 : i32
    %c0_i32_0 = arith.constant 0 : i32
    %c0_i32_1 = arith.constant 0 : i32
    return %c0_i32, %c0_i32_0 : i32, i32
  }
  func.func @transform_4(%arg0: i32, %arg1: i32) -> (i32, i32, i32, i32) {
    %c0_i32 = arith.constant 0 : i32
    %c0_i32_0 = arith.constant 0 : i32
    %c0_i32_1 = arith.constant 0 : i32
    return %arg0, %arg1, %c0_i32, %c0_i32_0 : i32, i32, i32, i32
  }
}

</mosaic_0001>

<llo_original>
// kernel: tpu_custom_call.1
$region0: #{tpu_custom_call.1}
  #allocation0 [shape = 'u32[]', space=smem, size = 0x4, offset = 0x4, fixed_abs, tag = 'smem constant byte address 0x4 - core index']
  #allocation1 [shape = 'u32[144,128]{1,0:T(1,128)}', space=vmem, size = 0x12000, scoped, tag = 'internal scratch']
  #allocation2 [shape = 'f32[20,18,128]{2,1,0:T(8,128)}', space=vmem, size = 0x3c000, scoped, tag = 'scratch operand']
  #allocation3 [shape = 'f32[18,18,128]{2,1,0:T(8,128)}', space=vmem, size = 0x36000, scoped, tag = 'scratch operand']
  %s0 = inlined_call_operand.hbm [shape: f32[2,16,16,128], index: 0, kind: input, shape index: {}]
  %s1 = inlined_call_operand.hbm [shape: f32[1152,128], index: 1, kind: input, shape index: {}]
  %s2 = inlined_call_operand.hbm [shape: f32[1152,128], index: 2, kind: input, shape index: {}]
  %s3 = inlined_call_operand.hbm [shape: f32[8,128], index: 3, kind: input, shape index: {}]
  %s4 = inlined_call_operand.hbm [shape: f32[2,16,16,128], index: 4, kind: output, shape index: {}]
  %s5 = sld [smem:[#allocation0]]
  $region85: #{tpu_custom_call.1} parent=0
    _
  %s7 = ssub.s32 1, %s5
  %s8 = scalar_select 0, %s7, %s5
  $region1: #{tpu_custom_call.1} parent=0
    #allocation4 [shape = 'u8[262144]{0}', space=vmem, size = 0x40000, scoped, tag = 'input window, operand 0']
    #allocation5 [shape = 's32[2]{0}', space=sflag, size = 0x8, scoped, tag = 'scoped memory for tpu_custom_call.1']
    #allocation6 [shape = 's32[2]{0}', space=sflag, size = 0x8, scoped, tag = 'scoped memory for tpu_custom_call.1']
    #allocation7 [shape = 'u8[589824]{0}', space=vmem, size = 0x90000, scoped, tag = 'input window, operand 1, single buffered']
    #allocation8 [shape = 's32[1]{0}', space=sflag, size = 0x4, scoped, tag = 'scoped memory for tpu_custom_call.1']
    #allocation9 [shape = 'u8[589824]{0}', space=vmem, size = 0x90000, scoped, tag = 'input window, operand 2, single buffered']
    #allocation10 [shape = 'u8[4096]{0}', space=vmem, size = 0x1000, scoped, tag = 'input window, operand 3, single buffered']
    #allocation11 [shape = 's32[1]{0}', space=sflag, size = 0x4, scoped, tag = 'scoped memory for tpu_custom_call.1']
    #allocation12 [shape = 'u8[262144]{0}', space=vmem, size = 0x40000, scoped, tag = 'output window, operand 0']
    %9 = vsyncpa [#allocation5], 0
    %s10 = scalar_lea.sflag [#allocation5], 1
    %11 = vsyncpa %s10, 0
    %12 = vsyncpa [#allocation8], 0
    %13 = vsyncpa [#allocation11], 0
    %14 = vsyncpa [#allocation6], 0
    %s15 = scalar_lea.sflag [#allocation6], 1
    %16 = vsyncpa %s15, 0
    loop: start=0, step=1, limit=4
    $region2: #{tpu_custom_call.1} parent=1 // loop_pre_header
      _
    $region3: #{tpu_custom_call.1} parent=1 // loop_header
      %s18 = sphi 0, %s22
      %p19 = scmp.ge.s32.totalorder %s18, 4
      %s25 = sphi 0, %s37
      %s26 = sphi 0, %s33
      %s27 = sphi 0, %s25
      %s28 = sphi 0, %s26
      %s29 = sphi 0, %s27
      %s30 = sphi 0, %s28
      %s40 = sphi 0, %s42
      %s43 = sphi 0, %s40
      %s44 = sphi 0, %s43
      %s60 = sphi 0, %s44
      %s64 = sphi 0, %s64
      %s66 = sphi 0, %s64
      %s67 = sphi 0, %s66
      %s81 = sphi 0, %s67
      %s85 = sphi 0, %s85
      %s87 = sphi 0, %s85
      %s88 = sphi 0, %s87
      %s102 = sphi 0, %s88
      %s106 = sphi 0, %s106
      %s108 = sphi 0, %s106
      %s109 = sphi 0, %s108
      %s123 = sphi 0, %s109
      %s131 = sphi 0, %s133
      %s134 = sphi 0, %s131
      %s135 = sphi 0, %s134
      %s151 = sphi 0, %s135
    $region4: #{tpu_custom_call.1} parent=1 // loop_header_branch
      %21 = sbr.rel (%p19) target = $region8
    $region5: #{tpu_custom_call.1} parent=1 // loop_body
      %s23 = ssub.s32 %s18, 1
      %s24 = ssub.s32 %s18, 2
      %s31 = sadd.s32 1, %s26
      %p32 = scmp.ge.s32.totalorder %s31, 1
      %s33 = scalar_select %p32, 0, %s31
      %s34 = sadd.s32 1, %s25
      %s35 = scalar_select %p32, %s34, %s25
      %p36 = scmp.ge.s32.totalorder %s35, 2
      %s37 = scalar_select %p36, 0, %s35
      %s38 = ssub.s32 %s25, %s37
      %p39 = scmp.eq.s32.totalorder %s38, 0
      %s41 = sadd.s32 %s40, 1
      %s42 = scalar_select %p39, %s40, %s41
      %p45 = pneg %p39
      %p46 = scmp.eq.s32.totalorder %s18, 1
      %p47 = por %p45, %p46
      %p48 = scmp.ne.s32.totalorder %s40, %s43
      %p49 = scmp.eq.s32.totalorder %s18, 0
      %p50 = por %p48, %p49
      %p51 = scmp.ne.s32.totalorder %s40, %s43
      %p52 = scmp.eq.s32.totalorder %s23, 1
      %p53 = por %p51, %p52
      %p54 = scmp.ne.s32.totalorder %s43, %s44
      %p55 = scmp.eq.s32.totalorder %s23, 0
      %p56 = por %p54, %p55
      %p57 = scmp.ne.s32.totalorder %s43, %s44
      %p58 = scmp.eq.s32.totalorder %s24, 1
      %p59 = por %p57, %p58
      %p61 = scmp.ne.s32.totalorder %s44, %s60
      %p62 = scmp.eq.s32.totalorder %s24, 0
      %p63 = por %p61, %p62
      %s65 = sadd.s32 %s64, 1
      %p68 = scmp.eq.s32.totalorder %s18, 1
      %p69 = scmp.ne.s32.totalorder %s64, %s66
      %p70 = scmp.eq.s32.totalorder %s18, 0
      %p71 = por %p69, %p70
      %p72 = scmp.ne.s32.totalorder %s64, %s66
      %p73 = scmp.eq.s32.totalorder %s23, 1
      %p74 = por %p72, %p73
      %p75 = scmp.ne.s32.totalorder %s66, %s67
      %p76 = scmp.eq.s32.totalorder %s23, 0
      %p77 = por %p75, %p76
      %p78 = scmp.ne.s32.totalorder %s66, %s67
      %p79 = scmp.eq.s32.totalorder %s24, 1
      %p80 = por %p78, %p79
      %p82 = scmp.ne.s32.totalorder %s67, %s81
      %p83 = scmp.eq.s32.totalorder %s24, 0
      %p84 = por %p82, %p83
      %s86 = sadd.s32 %s85, 1
      %p89 = scmp.eq.s32.totalorder %s18, 1
      %p90 = scmp.ne.s32.totalorder %s85, %s87
      %p91 = scmp.eq.s32.totalorder %s18, 0
      %p92 = por %p90, %p91
      %p93 = scmp.ne.s32.totalorder %s85, %s87
      %p94 = scmp.eq.s32.totalorder %s23, 1
      %p95 = por %p93, %p94
      %p96 = scmp.ne.s32.totalorder %s87, %s88
      %p97 = scmp.eq.s32.totalorder %s23, 0
      %p98 = por %p96, %p97
      %p99 = scmp.ne.s32.totalorder %s87, %s88
      %p100 = scmp.eq.s32.totalorder %s24, 1
      %p101 = por %p99, %p100
      %p103 = scmp.ne.s32.totalorder %s88, %s102
      %p104 = scmp.eq.s32.totalorder %s24, 0
      %p105 = por %p103, %p104
      %s107 = sadd.s32 %s106, 1
      %p110 = scmp.eq.s32.totalorder %s18, 1
      %p111 = scmp.ne.s32.totalorder %s106, %s108
      %p112 = scmp.eq.s32.totalorder %s18, 0
      %p113 = por %p111, %p112
      %p114 = scmp.ne.s32.totalorder %s106, %s108
      %p115 = scmp.eq.s32.totalorder %s23, 1
      %p116 = por %p114, %p115
      %p117 = scmp.ne.s32.totalorder %s108, %s109
      %p118 = scmp.eq.s32.totalorder %s23, 0
      %p119 = por %p117, %p118
      %p120 = scmp.ne.s32.totalorder %s108, %s109
      %p121 = scmp.eq.s32.totalorder %s24, 1
      %p122 = por %p120, %p121
      %p124 = scmp.ne.s32.totalorder %s109, %s123
      %p125 = scmp.eq.s32.totalorder %s24, 0
      %p126 = por %p124, %p125
      %s127 = ssub.s32 %s25, %s37
      %s128 = ssub.s32 %s26, %s33
      %s129 = sor.u32 %s127, %s128
      %p130 = scmp.eq.s32.totalorder %s129, 0
      %s132 = sadd.s32 %s131, 1
      %s133 = scalar_select %p130, %s131, %s132
      %p136 = pneg %p130
      %p137 = scmp.eq.s32.totalorder %s18, 1
      %p138 = por %p136, %p137
      %p139 = scmp.ne.s32.totalorder %s131, %s134
      %p140 = scmp.eq.s32.totalorder %s18, 0
      %p141 = por %p139, %p140
      %p142 = scmp.ne.s32.totalorder %s131, %s134
      %p143 = scmp.eq.s32.totalorder %s23, 1
      %p144 = por %p142, %p143
      %p145 = scmp.ne.s32.totalorder %s134, %s135
      %p146 = scmp.eq.s32.totalorder %s23, 0
      %p147 = por %p145, %p146
      %p148 = scmp.ne.s32.totalorder %s134, %s135
      %p149 = scmp.eq.s32.totalorder %s24, 1
      %p150 = por %p148, %p149
      %p152 = scmp.ne.s32.totalorder %s135, %s151
      %p153 = scmp.eq.s32.totalorder %s24, 0
      %p154 = por %p152, %p153
      %p155 = scmp.le.s32.totalorder 1, %s18
      %p156 = scmp.lt.s32.totalorder %s18, 3
      %p157 = pnand %p155, %p156
      %p158 = pneg %p157
      // Predicated region
      $region9: #{tpu_custom_call.1} parent=5 // pred_check
        _
      $region10: #{tpu_custom_call.1} parent=5 // pred_check_branch
        %160 = sbr.rel (%p157) target = $region12
      $region11: #{tpu_custom_call.1} parent=5 // pred_region
        %s161 = ssub.s32 %s18, 1
        // Predicated region
        $region13: #{tpu_custom_call.1} parent=11 // pred_check
          %p162 = pneg %p77
        $region14: #{tpu_custom_call.1} parent=11 // pred_check_branch
          %164 = sbr.rel (%p162) target = $region16
        $region15: #{tpu_custom_call.1} parent=11 // pred_region
          %s166 = ssub.s32 18432, 18432
          %167 = vsyncadd [#allocation8], %s166
          %s168 = sshll.u32 [#allocation7], 4
          %s169 = int_to_ptr.vmem [resolvable:$true] %s168
          %174 = dma.hbm_to_vmem [thread:$0]  %s1, 18432, %s169, [#allocation8], 128, 128, 8
        $region16: #{tpu_custom_call.1} parent=11 // pred_fallthru
          _
        // Predicated region
        $region17: #{tpu_custom_call.1} parent=11 // pred_check
          %p175 = pneg %p98
        $region18: #{tpu_custom_call.1} parent=11 // pred_check_branch
          %177 = sbr.rel (%p175) target = $region20
        $region19: #{tpu_custom_call.1} parent=11 // pred_region
          %s179 = ssub.s32 18432, 18432
          %180 = vsyncadd [#allocation8], %s179
          %s181 = sshll.u32 [#allocation9], 4
          %s182 = int_to_ptr.vmem [resolvable:$true] %s181
          %187 = dma.hbm_to_vmem [thread:$0]  %s2, 18432, %s182, [#allocation8], 128, 128, 8
        $region20: #{tpu_custom_call.1} parent=11 // pred_fallthru
          _
        // Predicated region
        $region21: #{tpu_custom_call.1} parent=11 // pred_check
          %p188 = pneg %p119
        $region22: #{tpu_custom_call.1} parent=11 // pred_check_branch
          %190 = sbr.rel (%p188) target = $region24
        $region23: #{tpu_custom_call.1} parent=11 // pred_region
          %s192 = ssub.s32 128, 128
          %193 = vsyncadd [#allocation11], %s192
          %s195 = sshll.u32 [#allocation10], 4
          %s196 = int_to_ptr.vmem [resolvable:$true] %s195
          %198 = dma.hbm_to_vmem [thread:$0]  %s3, 128, %s196, [#allocation11]
        $region24: #{tpu_custom_call.1} parent=11 // pred_fallthru
          _
      $region12: #{tpu_custom_call.1} parent=5 // pred_fallthru
        _
      %p199 = scmp.lt.s32.totalorder %s18, 2
      // Predicated region
      $region25: #{tpu_custom_call.1} parent=5 // pred_check
        %p200 = pneg %p199
      $region26: #{tpu_custom_call.1} parent=5 // pred_check_branch
        %202 = sbr.rel (%p200) target = $region28
      $region27: #{tpu_custom_call.1} parent=5 // pred_region
        // Predicated region
        $region29: #{tpu_custom_call.1} parent=27 // pred_check
          %p203 = pneg %p50
        $region30: #{tpu_custom_call.1} parent=27 // pred_check_branch
          %205 = sbr.rel (%p203) target = $region32
        $region31: #{tpu_custom_call.1} parent=27 // pred_region
          %s206 = sand.u32 %s40, 1
          %s207 = scalar_lea.sflag [#allocation5], %s206
          %s208 = sand.u32 %s40, 1
          %s209 = smul.addr %s208, 256
          %s210 = scalar_lea.vmem [#allocation4], %s209
          %s212 = ssub.s32 4096, 4096
          %213 = vsyncadd %s207, %s212
          %s214 = smul.addr %s25, 32
          %s215 = smul.addr %s214, 128
          %s216 = scalar_lea.hbm %s0, %s215
          %s217 = sshll.u32 %s210, 4
          %s218 = int_to_ptr.vmem [resolvable:$true] %s217
          %223 = dma.hbm_to_vmem [thread:$0]  %s216, 4096, %s218, %s207, 128, 128, 8
        $region32: #{tpu_custom_call.1} parent=27 // pred_fallthru
          _
      $region28: #{tpu_custom_call.1} parent=5 // pred_fallthru
        _
      %p224 = scmp.le.s32.totalorder 1, %s18
      %p225 = scmp.lt.s32.totalorder %s18, 3
      %p226 = pnand %p224, %p225
      %p227 = pneg %p226
      // Predicated region
      $region33: #{tpu_custom_call.1} parent=5 // pred_check
        _
      $region34: #{tpu_custom_call.1} parent=5 // pred_check_branch
        %229 = sbr.rel (%p226) target = $region36
      $region35: #{tpu_custom_call.1} parent=5 // pred_region
        %s230 = ssub.s32 %s18, 1
        %s231 = sand.u32 %s43, 1
        %s232 = scalar_lea.sflag [#allocation5], %s231
        %s233 = sand.u32 %s43, 1
        %s234 = smul.addr %s233, 256
        %s235 = scalar_lea.vmem [#allocation4], %s234
        // Predicated region
        $region37: #{tpu_custom_call.1} parent=35 // pred_check
          %p236 = pneg %p56
        $region38: #{tpu_custom_call.1} parent=35 // pred_check_branch
          %238 = sbr.rel (%p236) target = $region40
        $region39: #{tpu_custom_call.1} parent=35 // pred_region
          %239 = dma.done %s232, 4096
        $region40: #{tpu_custom_call.1} parent=35 // pred_fallthru
          _
        // Predicated region
        $region41: #{tpu_custom_call.1} parent=35 // pred_check
          %p240 = pneg %p77
        $region42: #{tpu_custom_call.1} parent=35 // pred_check_branch
          %242 = sbr.rel (%p240) target = $region44
        $region43: #{tpu_custom_call.1} parent=35 // pred_region
          %243 = dma.done [#allocation8], 18432
        $region44: #{tpu_custom_call.1} parent=35 // pred_fallthru
          _
        // Predicated region
        $region45: #{tpu_custom_call.1} parent=35 // pred_check
          %p244 = pneg %p98
        $region46: #{tpu_custom_call.1} parent=35 // pred_check_branch
          %246 = sbr.rel (%p244) target = $region48
        $region47: #{tpu_custom_call.1} parent=35 // pred_region
          %247 = dma.done [#allocation8], 18432
        $region48: #{tpu_custom_call.1} parent=35 // pred_fallthru
          _
        // Predicated region
        $region49: #{tpu_custom_call.1} parent=35 // pred_check
          %p248 = pneg %p119
        $region50: #{tpu_custom_call.1} parent=35 // pred_check_branch
          %250 = sbr.rel (%p248) target = $region52
        $region51: #{tpu_custom_call.1} parent=35 // pred_region
          %251 = dma.done [#allocation11], 128
        $region52: #{tpu_custom_call.1} parent=35 // pred_fallthru
          _
        %s252 = sand.u32 %s43, 1
        %s253 = scalar_lea.sflag [#allocation5], %s252
        %s254 = sand.u32 %s43, 1
        %s255 = smul.addr %s254, 256
        %s256 = scalar_lea.vmem [#allocation4], %s255
        %p257 = pneg %p56
        %p258 = pneg %p53
        %p259 = pneg %p77
        %p260 = pneg %p74
        %p261 = pneg %p98
        %p262 = pneg %p95
        %p263 = pneg %p119
        %p264 = pneg %p116
        %p265 = pneg %p147
        %p266 = pneg %p144
        %s267 = sand.u32 %s134, 1
        %s268 = scalar_lea.sflag [#allocation6], %s267
        %s269 = sand.u32 %s134, 1
        %s270 = smul.addr %s269, 256
        %s271 = scalar_lea.vmem [#allocation12], %s270
        %s272 = smul.u32 16, %s28
        %s273 = smul.u32 %s28, 16
        %v274 = vld [vmem:[#allocation10] sm:$0x1]
        %v275 = vld [vmem:[#allocation10 + $0x1] sm:$0x1]
        %v276 = vld [vmem:[#allocation10 + $0x2] sm:$0x1]
        %v277 = vld [vmem:[#allocation10 + $0x3] sm:$0x1]
        %v278 = vld [vmem:[#allocation10 + $0x4] sm:$0x1]
        %v279 = vld [vmem:[#allocation10 + $0x5] sm:$0x1]
        %v280 = vld [vmem:[#allocation10 + $0x6] sm:$0x1]
        %281 = vst [vmem:[#allocation2] sm:$0x1] 0.0
        %282 = vst [vmem:[#allocation2 + $0x18] sm:$0x1] 0.0
        %283 = vst [vmem:[#allocation2 + $0x30] sm:$0x1] 0.0
        %284 = vst [vmem:[#allocation2 + $0x48] sm:$0x1] 0.0
        %285 = vst [vmem:[#allocation2 + $0x60] sm:$0x1] 0.0
        %286 = vst [vmem:[#allocation2 + $0x78] sm:$0x1] 0.0
        %287 = vst [vmem:[#allocation2 + $0x90] sm:$0x1] 0.0
        %288 = vst [vmem:[#allocation2 + $0xa8] sm:$0x1] 0.0
        %289 = vst [vmem:[#allocation2 + $0xc0] sm:$0x1] 0.0
        %290 = vst [vmem:[#allocation2 + $0xd8] sm:$0x1] 0.0
        %291 = vst [vmem:[#allocation2 + $0xf0] sm:$0x1] 0.0
        %292 = vst [vmem:[#allocation2 + $0x108] sm:$0x1] 0.0
        %293 = vst [vmem:[#allocation2 + $0x120] sm:$0x1] 0.0
        %294 = vst [vmem:[#allocation2 + $0x138] sm:$0x1] 0.0
        %295 = vst [vmem:[#allocation2 + $0x150] sm:$0x1] 0.0
        %296 = vst [vmem:[#allocation2 + $0x168] sm:$0x1] 0.0
        %297 = vst [vmem:[#allocation2 + $0x180] sm:$0x1] 0.0
        %298 = vst [vmem:[#allocation2 + $0x198] sm:$0x1] 0.0
        %299 = vst [vmem:[#allocation2 + $0x1b0] sm:$0x1] 0.0
        %300 = vst [vmem:[#allocation2 + $0x1c8] sm:$0x1] 0.0
        %301 = vst [vmem:[#allocation2 + $0x11] sm:$0x1] 0.0
        %302 = vst [vmem:[#allocation2 + $0x29] sm:$0x1] 0.0
        %303 = vst [vmem:[#allocation2 + $0x41] sm:$0x1] 0.0
        %304 = vst [vmem:[#allocation2 + $0x59] sm:$0x1] 0.0
        %305 = vst [vmem:[#allocation2 + $0x71] sm:$0x1] 0.0
        %306 = vst [vmem:[#allocation2 + $0x89] sm:$0x1] 0.0
        %307 = vst [vmem:[#allocation2 + $0xa1] sm:$0x1] 0.0
        %308 = vst [vmem:[#allocation2 + $0xb9] sm:$0x1] 0.0
        %309 = vst [vmem:[#allocation2 + $0xd1] sm:$0x1] 0.0
        %310 = vst [vmem:[#allocation2 + $0xe9] sm:$0x1] 0.0
        %311 = vst [vmem:[#allocation2 + $0x101] sm:$0x1] 0.0
        %312 = vst [vmem:[#allocation2 + $0x119] sm:$0x1] 0.0
        %313 = vst [vmem:[#allocation2 + $0x131] sm:$0x1] 0.0
        %314 = vst [vmem:[#allocation2 + $0x149] sm:$0x1] 0.0
        %315 = vst [vmem:[#allocation2 + $0x161] sm:$0x1] 0.0
        %316 = vst [vmem:[#allocation2 + $0x179] sm:$0x1] 0.0
        %317 = vst [vmem:[#allocation2 + $0x191] sm:$0x1] 0.0
        %318 = vst [vmem:[#allocation2 + $0x1a9] sm:$0x1] 0.0
        %319 = vst [vmem:[#allocation2 + $0x1c1] sm:$0x1] 0.0
        %320 = vst [vmem:[#allocation2 + $0x1d9] sm:$0x1] 0.0
        %s321 = smul.u32 %s273, 16
        %s322 = scalar_lea.vmem %s235, %s321 [#allocation4]
        %v323 = vld [vmem:[%s322] sm:$0xff]
        %v324 = vld [vmem:[%s322 + $0x8] sm:$0xff]
        %v325 = vld [vmem:[%s322 + $0x10] sm:$0xff]
        %v326 = vld [vmem:[%s322 + $0x18] sm:$0xff]
        %v327 = vld [vmem:[%s322 + $0x20] sm:$0xff]
        %v328 = vld [vmem:[%s322 + $0x28] sm:$0xff]
        %v329 = vld [vmem:[%s322 + $0x30] sm:$0xff]
        %v330 = vld [vmem:[%s322 + $0x38] sm:$0xff]
        %v331 = vld [vmem:[%s322 + $0x40] sm:$0xff]
        %v332 = vld [vmem:[%s322 + $0x48] sm:$0xff]
        %v333 = vld [vmem:[%s322 + $0x50] sm:$0xff]
        %v334 = vld [vmem:[%s322 + $0x58] sm:$0xff]
        %v335 = vld [vmem:[%s322 + $0x60] sm:$0xff]
        %v336 = vld [vmem:[%s322 + $0x68] sm:$0xff]
        %v337 = vld [vmem:[%s322 + $0x70] sm:$0xff]
        %v338 = vld [vmem:[%s322 + $0x78] sm:$0xff]
        %v339 = vld [vmem:[%s322 + $0x80] sm:$0xff]
        %v340 = vld [vmem:[%s322 + $0x88] sm:$0xff]
        %v341 = vld [vmem:[%s322 + $0x90] sm:$0xff]
        %v342 = vld [vmem:[%s322 + $0x98] sm:$0xff]
        %v343 = vld [vmem:[%s322 + $0xa0] sm:$0xff]
        %v344 = vld [vmem:[%s322 + $0xa8] sm:$0xff]
        %v345 = vld [vmem:[%s322 + $0xb0] sm:$0xff]
        %v346 = vld [vmem:[%s322 + $0xb8] sm:$0xff]
        %v347 = vld [vmem:[%s322 + $0xc0] sm:$0xff]
        %v348 = vld [vmem:[%s322 + $0xc8] sm:$0xff]
        %v349 = vld [vmem:[%s322 + $0xd0] sm:$0xff]
        %v350 = vld [vmem:[%s322 + $0xd8] sm:$0xff]
        %v351 = vld [vmem:[%s322 + $0xe0] sm:$0xff]
        %v352 = vld [vmem:[%s322 + $0xe8] sm:$0xff]
        %v353 = vld [vmem:[%s322 + $0xf0] sm:$0xff]
        %v354 = vld [vmem:[%s322 + $0xf8] sm:$0xff]
        %v355 = vlaneseq
        %v356 = vshrl.u32 %v355, 7
        %v357 = vsub.s32 0, %v356
        %v358 = vrot.slane %v274, %v357
        %v359 = vmul.f32 %v323, %v358
        %v360 = vmul.f32 %v324, %v358
        %v361 = vmul.f32 %v325, %v358
        %v362 = vmul.f32 %v326, %v358
        %v363 = vmul.f32 %v327, %v358
        %v364 = vmul.f32 %v328, %v358
        %v365 = vmul.f32 %v329, %v358
        %v366 = vmul.f32 %v330, %v358
        %v367 = vmul.f32 %v331, %v358
        %v368 = vmul.f32 %v332, %v358
        %v369 = vmul.f32 %v333, %v358
        %v370 = vmul.f32 %v334, %v358
        %v371 = vmul.f32 %v335, %v358
        %v372 = vmul.f32 %v336, %v358
        %v373 = vmul.f32 %v337, %v358
        %v374 = vmul.f32 %v338, %v358
        %v375 = vmul.f32 %v339, %v358
        %v376 = vmul.f32 %v340, %v358
        %v377 = vmul.f32 %v341, %v358
        %v378 = vmul.f32 %v342, %v358
        %v379 = vmul.f32 %v343, %v358
        %v380 = vmul.f32 %v344, %v358
        %v381 = vmul.f32 %v345, %v358
        %v382 = vmul.f32 %v346, %v358
        %v383 = vmul.f32 %v347, %v358
        %v384 = vmul.f32 %v348, %v358
        %v385 = vmul.f32 %v349, %v358
        %v386 = vmul.f32 %v350, %v358
        %v387 = vmul.f32 %v351, %v358
        %v388 = vmul.f32 %v352, %v358
        %v389 = vmul.f32 %v353, %v358
        %v390 = vmul.f32 %v354, %v358
        %v391 = vlaneseq
        %v392 = vshrl.u32 %v391, 7
        %v393 = vsub.s32 0, %v392
        %v394 = vrot.slane %v275, %v393
        %v395 = vadd.f32 %v359, %v394
        %v396 = vadd.f32 %v360, %v394
        %v397 = vadd.f32 %v361, %v394
        %v398 = vadd.f32 %v362, %v394
        %v399 = vadd.f32 %v363, %v394
        %v400 = vadd.f32 %v364, %v394
        %v401 = vadd.f32 %v365, %v394
        %v402 = vadd.f32 %v366, %v394
        %v403 = vadd.f32 %v367, %v394
        %v404 = vadd.f32 %v368, %v394
        %v405 = vadd.f32 %v369, %v394
        %v406 = vadd.f32 %v370, %v394
        %v407 = vadd.f32 %v371, %v394
        %v408 = vadd.f32 %v372, %v394
        %v409 = vadd.f32 %v373, %v394
        %v410 = vadd.f32 %v374, %v394
        %v411 = vadd.f32 %v375, %v394
        %v412 = vadd.f32 %v376, %v394
        %v413 = vadd.f32 %v377, %v394
        %v414 = vadd.f32 %v378, %v394
        %v415 = vadd.f32 %v379, %v394
        %v416 = vadd.f32 %v380, %v394
        %v417 = vadd.f32 %v381, %v394
        %v418 = vadd.f32 %v382, %v394
        %v419 = vadd.f32 %v383, %v394
        %v420 = vadd.f32 %v384, %v394
        %v421 = vadd.f32 %v385, %v394
        %v422 = vadd.f32 %v386, %v394
        %v423 = vadd.f32 %v387, %v394
        %v424 = vadd.f32 %v388, %v394
        %v425 = vadd.f32 %v389, %v394
        %v426 = vadd.f32 %v390, %v394
        %s427 = scalar_lea.vmem [#allocation2], 48
        %428 = vst [vmem:[%s427 + $0x1] sm:$0xff] %v395
        %429 = vst [vmem:[%s427 + $0x9] sm:$0xff] %v396
        %430 = vst [vmem:[%s427 + $0x19] sm:$0xff] %v397
        %431 = vst [vmem:[%s427 + $0x21] sm:$0xff] %v398
        %432 = vst [vmem:[%s427 + $0x31] sm:$0xff] %v399
        %433 = vst [vmem:[%s427 + $0x39] sm:$0xff] %v400
        %434 = vst [vmem:[%s427 + $0x49] sm:$0xff] %v401
        %435 = vst [vmem:[%s427 + $0x51] sm:$0xff] %v402
        %436 = vst [vmem:[%s427 + $0x61] sm:$0xff] %v403
        %437 = vst [vmem:[%s427 + $0x69] sm:$0xff] %v404
        %438 = vst [vmem:[%s427 + $0x79] sm:$0xff] %v405
        %439 = vst [vmem:[%s427 + $0x81] sm:$0xff] %v406
        %440 = vst [vmem:[%s427 + $0x91] sm:$0xff] %v407
        %441 = vst [vmem:[%s427 + $0x99] sm:$0xff] %v408
        %442 = vst [vmem:[%s427 + $0xa9] sm:$0xff] %v409
        %443 = vst [vmem:[%s427 + $0xb1] sm:$0xff] %v410
        %444 = vst [vmem:[%s427 + $0xc1] sm:$0xff] %v411
        %445 = vst [vmem:[%s427 + $0xc9] sm:$0xff] %v412
        %446 = vst [vmem:[%s427 + $0xd9] sm:$0xff] %v413
        %447 = vst [vmem:[%s427 + $0xe1] sm:$0xff] %v414
        %448 = vst [vmem:[%s427 + $0xf1] sm:$0xff] %v415
        %449 = vst [vmem:[%s427 + $0xf9] sm:$0xff] %v416
        %450 = vst [vmem:[%s427 + $0x109] sm:$0xff] %v417
        %451 = vst [vmem:[%s427 + $0x111] sm:$0xff] %v418
        %452 = vst [vmem:[%s427 + $0x121] sm:$0xff] %v419
        %453 = vst [vmem:[%s427 + $0x129] sm:$0xff] %v420
        %454 = vst [vmem:[%s427 + $0x139] sm:$0xff] %v421
        %455 = vst [vmem:[%s427 + $0x141] sm:$0xff] %v422
        %456 = vst [vmem:[%s427 + $0x151] sm:$0xff] %v423
        %457 = vst [vmem:[%s427 + $0x159] sm:$0xff] %v424
        %458 = vst [vmem:[%s427 + $0x169] sm:$0xff] %v425
        %459 = vst [vmem:[%s427 + $0x171] sm:$0xff] %v426
        %p460 = scmp.eq.s32.totalorder %s28, 0
        // Predicated region
        $region53: #{tpu_custom_call.1} parent=35 // pred_check
          %p461 = pneg %p460
        $region54: #{tpu_custom_call.1} parent=35 // pred_check_branch
          %463 = sbr.rel (%p461) target = $region56
        $region55: #{tpu_custom_call.1} parent=35 // pred_region
          %464 = vst [vmem:[#allocation2 + $0x1] sm:$0xff] 0.0
          %465 = vst [vmem:[#allocation2 + $0x9] sm:$0xff] 0.0
          %466 = vst [vmem:[#allocation2 + $0x19] sm:$0xff] 0.0
          %467 = vst [vmem:[#allocation2 + $0x21] sm:$0xff] 0.0
        $region56: #{tpu_custom_call.1} parent=35 // pred_fallthru
          _
        %p468 = scmp.gt.s32.totalorder %s28, 0
        // Predicated region
        $region57: #{tpu_custom_call.1} parent=35 // pred_check
          %p469 = pneg %p468
        $region58: #{tpu_custom_call.1} parent=35 // pred_check_branch
          %471 = sbr.rel (%p469) target = $region60
        $region59: #{tpu_custom_call.1} parent=35 // pred_region
          %s472 = ssub.s32 %s273, 2
          %s473 = smul.u32 %s472, 16
          %s474 = scalar_lea.vmem %s235, %s473 [#allocation4]
          %v475 = vld [vmem:[%s474] sm:$0xff]
          %v476 = vld [vmem:[%s474 + $0x8] sm:$0xff]
          %v477 = vld [vmem:[%s474 + $0x10] sm:$0xff]
          %v478 = vld [vmem:[%s474 + $0x18] sm:$0xff]
          %v479 = vmul.f32 %v475, %v358
          %v480 = vmul.f32 %v476, %v358
          %v481 = vmul.f32 %v477, %v358
          %v482 = vmul.f32 %v478, %v358
          %v483 = vadd.f32 %v479, %v394
          %v484 = vadd.f32 %v480, %v394
          %v485 = vadd.f32 %v481, %v394
          %v486 = vadd.f32 %v482, %v394
          %487 = vst [vmem:[#allocation2 + $0x1] sm:$0xff] %v483
          %488 = vst [vmem:[#allocation2 + $0x9] sm:$0xff] %v484
          %489 = vst [vmem:[#allocation2 + $0x19] sm:$0xff] %v485
          %490 = vst [vmem:[#allocation2 + $0x21] sm:$0xff] %v486
        $region60: #{tpu_custom_call.1} parent=35 // pred_fallthru
          _
        // Predicated region
        $region61: #{tpu_custom_call.1} parent=35 // pred_check
          %p491 = pneg %p460
        $region62: #{tpu_custom_call.1} parent=35 // pred_check_branch
          %493 = sbr.rel (%p491) target = $region64
        $region63: #{tpu_custom_call.1} parent=35 // pred_region
          %s494 = scalar_lea.vmem [#allocation2], 432
          %495 = vst [vmem:[%s494 + $0x1] sm:$0xff] 0.0
          %496 = vst [vmem:[%s494 + $0x9] sm:$0xff] 0.0
          %497 = vst [vmem:[%s494 + $0x19] sm:$0xff] 0.0
          %498 = vst [vmem:[%s494 + $0x21] sm:$0xff] 0.0
        $region64: #{tpu_custom_call.1} parent=35 // pred_fallthru
          _
        %p499 = scmp.lt.s32.totalorder %s28, 0
        // Predicated region
        $region65: #{tpu_custom_call.1} parent=35 // pred_check
          %p500 = pneg %p499
        $region66: #{tpu_custom_call.1} parent=35 // pred_check_branch
          %502 = sbr.rel (%p500) target = $region68
        $region67: #{tpu_custom_call.1} parent=35 // pred_region
          %s503 = sadd.s32 %s273, 16
          %s504 = smul.u32 %s503, 16
          %s505 = scalar_lea.vmem %s235, %s504 [#allocation4]
          %v506 = vld [vmem:[%s505] sm:$0xff]
          %v507 = vld [vmem:[%s505 + $0x8] sm:$0xff]
          %v508 = vld [vmem:[%s505 + $0x10] sm:$0xff]
          %v509 = vld [vmem:[%s505 + $0x18] sm:$0xff]
          %v510 = vmul.f32 %v506, %v358
          %v511 = vmul.f32 %v507, %v358
          %v512 = vmul.f32 %v508, %v358
          %v513 = vmul.f32 %v509, %v358
          %v514 = vadd.f32 %v510, %v394
          %v515 = vadd.f32 %v511, %v394
          %v516 = vadd.f32 %v512, %v394
          %v517 = vadd.f32 %v513, %v394
          %s518 = scalar_lea.vmem [#allocation2], 432
          %519 = vst [vmem:[%s518 + $0x1] sm:$0xff] %v514
          %520 = vst [vmem:[%s518 + $0x9] sm:$0xff] %v515
          %521 = vst [vmem:[%s518 + $0x19] sm:$0xff] %v516
          %522 = vst [vmem:[%s518 + $0x21] sm:$0xff] %v517
        $region68: #{tpu_custom_call.1} parent=35 // pred_fallthru
          _
        %v523 = vld [vmem:[#allocation2] sm:$0xff]
        %v524 = vld [vmem:[#allocation2 + $0x8] sm:$0xff]
        %v525 = vld [vmem:[#allocation2 + $0x18] sm:$0xff]
        %v526 = vld [vmem:[#allocation2 + $0x20] sm:$0xff]
        %v527 = vld [vmem:[#allocation2 + $0x30] sm:$0xff]
        %v528 = vld [vmem:[#allocation2 + $0x38] sm:$0xff]
        %v529 = vld [vmem:[#allocation2 + $0x48] sm:$0xff]
        %v530 = vld [vmem:[#allocation2 + $0x50] sm:$0xff]
        %v531 = vld [vmem:[#allocation2 + $0x60] sm:$0xff]
        %v532 = vld [vmem:[#allocation2 + $0x68] sm:$0xff]
        %v533 = vld [vmem:[#allocation2 + $0x78] sm:$0xff]
        %v534 = vld [vmem:[#allocation2 + $0x80] sm:$0xff]
        %v535 = vld [vmem:[#allocation2 + $0x90] sm:$0xff]
        %v536 = vld [vmem:[#allocation2 + $0x98] sm:$0xff]
        %v537 = vld [vmem:[#allocation2 + $0xa8] sm:$0xff]
        %v538 = vld [vmem:[#allocation2 + $0xb0] sm:$0xff]
        %v539 = vld [vmem:[#allocation2 + $0xc0] sm:$0xff]
        %v540 = vld [vmem:[#allocation2 + $0xc8] sm:$0xff]
        %v541 = vld [vmem:[#allocation2 + $0xd8] sm:$0xff]
        %v542 = vld [vmem:[#allocation2 + $0xe0] sm:$0xff]
        %v543 = vld [vmem:[#allocation2 + $0xf0] sm:$0xff]
        %v544 = vld [vmem:[#allocation2 + $0xf8] sm:$0xff]
        %v545 = vld [vmem:[#allocation2 + $0x108] sm:$0xff]
        %v546 = vld [vmem:[#allocation2 + $0x110] sm:$0xff]
        %v547 = vld [vmem:[#allocation2 + $0x120] sm:$0xff]
        %v548 = vld [vmem:[#allocation2 + $0x128] sm:$0xff]
        %v549 = vld [vmem:[#allocation2 + $0x138] sm:$0xff]
        %v550 = vld [vmem:[#allocation2 + $0x140] sm:$0xff]
        %v551 = vld [vmem:[#allocation2 + $0x150] sm:$0xff]
        %v552 = vld [vmem:[#allocation2 + $0x158] sm:$0xff]
        %v553 = vld [vmem:[#allocation2 + $0x168] sm:$0xff]
        %v554 = vld [vmem:[#allocation2 + $0x170] sm:$0xff]
        %v555 = vld [vmem:[#allocation2 + $0x180] sm:$0xff]
        %v556 = vld [vmem:[#allocation2 + $0x188] sm:$0xff]
        %v557 = vld [vmem:[#allocation2 + $0x198] sm:$0xff]
        %v558 = vld [vmem:[#allocation2 + $0x1a0] sm:$0xff]
        %v559 = vld [vmem:[#allocation2 + $0x1] sm:$0xff]
        %v560 = vld [vmem:[#allocation2 + $0x9] sm:$0xff]
        %v561 = vld [vmem:[#allocation2 + $0x19] sm:$0xff]
        %v562 = vld [vmem:[#allocation2 + $0x21] sm:$0xff]
        %v563 = vld [vmem:[#allocation2 + $0x31] sm:$0xff]
        %v564 = vld [vmem:[#allocation2 + $0x39] sm:$0xff]
        %v565 = vld [vmem:[#allocation2 + $0x49] sm:$0xff]
        %v566 = vld [vmem:[#allocation2 + $0x51] sm:$0xff]
        %v567 = vld [vmem:[#allocation2 + $0x61] sm:$0xff]
        %v568 = vld [vmem:[#allocation2 + $0x69] sm:$0xff]
        %v569 = vld [vmem:[#allocation2 + $0x79] sm:$0xff]
        %v570 = vld [vmem:[#allocation2 + $0x81] sm:$0xff]
        %v571 = vld [vmem:[#allocation2 + $0x91] sm:$0xff]
        %v572 = vld [vmem:[#allocation2 + $0x99] sm:$0xff]
        %v573 = vld [vmem:[#allocation2 + $0xa9] sm:$0xff]
        %v574 = vld [vmem:[#allocation2 + $0xb1] sm:$0xff]
        %v575 = vld [vmem:[#allocation2 + $0xc1] sm:$0xff]
        %v576 = vld [vmem:[#allocation2 + $0xc9] sm:$0xff]
        %v577 = vld [vmem:[#allocation2 + $0xd9] sm:$0xff]
        %v578 = vld [vmem:[#allocation2 + $0xe1] sm:$0xff]
        %v579 = vld [vmem:[#allocation2 + $0xf1] sm:$0xff]
        %v580 = vld [vmem:[#allocation2 + $0xf9] sm:$0xff]
        %v581 = vld [vmem:[#allocation2 + $0x109] sm:$0xff]
        %v582 = vld [vmem:[#allocation2 + $0x111] sm:$0xff]
        %v583 = vld [vmem:[#allocation2 + $0x121] sm:$0xff]
        %v584 = vld [vmem:[#allocation2 + $0x129] sm:$0xff]
        %v585 = vld [vmem:[#allocation2 + $0x139] sm:$0xff]
        %v586 = vld [vmem:[#allocation2 + $0x141] sm:$0xff]
        %v587 = vld [vmem:[#allocation2 + $0x151] sm:$0xff]
        %v588 = vld [vmem:[#allocation2 + $0x159] sm:$0xff]
        %v589 = vld [vmem:[#allocation2 + $0x169] sm:$0xff]
        %v590 = vld [vmem:[#allocation2 + $0x171] sm:$0xff]
        %v591 = vld [vmem:[#allocation2 + $0x181] sm:$0xff]
        %v592 = vld [vmem:[#allocation2 + $0x189] sm:$0xff]
        %v593 = vld [vmem:[#allocation2 + $0x199] sm:$0xff]
        %v594 = vld [vmem:[#allocation2 + $0x1a1] sm:$0xff]
        %v595 = vld [vmem:[#allocation2 + $0x2] sm:$0xff]
        %v596 = vld [vmem:[#allocation2 + $0xa] sm:$0xff]
        %v597 = vld [vmem:[#allocation2 + $0x1a] sm:$0xff]
        %v598 = vld [vmem:[#allocation2 + $0x22] sm:$0xff]
        %v599 = vld [vmem:[#allocation2 + $0x32] sm:$0xff]
        %v600 = vld [vmem:[#allocation2 + $0x3a] sm:$0xff]
        %v601 = vld [vmem:[#allocation2 + $0x4a] sm:$0xff]
        %v602 = vld [vmem:[#allocation2 + $0x52] sm:$0xff]
        %v603 = vld [vmem:[#allocation2 + $0x62] sm:$0xff]
        %v604 = vld [vmem:[#allocation2 + $0x6a] sm:$0xff]
        %v605 = vld [vmem:[#allocation2 + $0x7a] sm:$0xff]
        %v606 = vld [vmem:[#allocation2 + $0x82] sm:$0xff]
        %v607 = vld [vmem:[#allocation2 + $0x92] sm:$0xff]
        %v608 = vld [vmem:[#allocation2 + $0x9a] sm:$0xff]
        %v609 = vld [vmem:[#allocation2 + $0xaa] sm:$0xff]
        %v610 = vld [vmem:[#allocation2 + $0xb2] sm:$0xff]
        %v611 = vld [vmem:[#allocation2 + $0xc2] sm:$0xff]
        %v612 = vld [vmem:[#allocation2 + $0xca] sm:$0xff]
        %v613 = vld [vmem:[#allocation2 + $0xda] sm:$0xff]
        %v614 = vld [vmem:[#allocation2 + $0xe2] sm:$0xff]
        %v615 = vld [vmem:[#allocation2 + $0xf2] sm:$0xff]
        %v616 = vld [vmem:[#allocation2 + $0xfa] sm:$0xff]
        %v617 = vld [vmem:[#allocation2 + $0x10a] sm:$0xff]
        %v618 = vld [vmem:[#allocation2 + $0x112] sm:$0xff]
        %v619 = vld [vmem:[#allocation2 + $0x122] sm:$0xff]
        %v620 = vld [vmem:[#allocation2 + $0x12a] sm:$0xff]
        %v621 = vld [vmem:[#allocation2 + $0x13a] sm:$0xff]
        %v622 = vld [vmem:[#allocation2 + $0x142] sm:$0xff]
        %v623 = vld [vmem:[#allocation2 + $0x152] sm:$0xff]
        %v624 = vld [vmem:[#allocation2 + $0x15a] sm:$0xff]
        %v625 = vld [vmem:[#allocation2 + $0x16a] sm:$0xff]
        %v626 = vld [vmem:[#allocation2 + $0x172] sm:$0xff]
        %v627 = vld [vmem:[#allocation2 + $0x182] sm:$0xff]
        %v628 = vld [vmem:[#allocation2 + $0x18a] sm:$0xff]
        %v629 = vld [vmem:[#allocation2 + $0x19a] sm:$0xff]
        %v630 = vld [vmem:[#allocation2 + $0x1a2] sm:$0xff]
        %v631 = vld [vmem:[#allocation7] sm:$0xff]
        %v632 = vld [vmem:[#allocation7 + $0x8] sm:$0xff]
        %v633 = vld [vmem:[#allocation7 + $0x10] sm:$0xff]
        %v634 = vld [vmem:[#allocation7 + $0x18] sm:$0xff]
        %v635 = vld [vmem:[#allocation7 + $0x20] sm:$0xff]
        %v636 = vld [vmem:[#allocation7 + $0x28] sm:$0xff]
        %v637 = vld [vmem:[#allocation7 + $0x30] sm:$0xff]
        %v638 = vld [vmem:[#allocation7 + $0x38] sm:$0xff]
        %v639 = vld [vmem:[#allocation7 + $0x40] sm:$0xff]
        %v640 = vld [vmem:[#allocation7 + $0x48] sm:$0xff]
        %v641 = vld [vmem:[#allocation7 + $0x50] sm:$0xff]
        %v642 = vld [vmem:[#allocation7 + $0x58] sm:$0xff]
        %v643 = vld [vmem:[#allocation7 + $0x60] sm:$0xff]
        %v644 = vld [vmem:[#allocation7 + $0x68] sm:$0xff]
        %v645 = vld [vmem:[#allocation7 + $0x70] sm:$0xff]
        %v646 = vld [vmem:[#allocation7 + $0x78] sm:$0xff]
        %v647 = vld [vmem:[#allocation7 + $0x80] sm:$0xff]
        %v648 = vld [vmem:[#allocation7 + $0x88] sm:$0xff]
        %v649 = vld [vmem:[#allocation7 + $0x90] sm:$0xff]
        %v650 = vld [vmem:[#allocation7 + $0x98] sm:$0xff]
        %v651 = vld [vmem:[#allocation7 + $0xa0] sm:$0xff]
        %v652 = vld [vmem:[#allocation7 + $0xa8] sm:$0xff]
        %v653 = vld [vmem:[#allocation7 + $0xb0] sm:$0xff]
        %v654 = vld [vmem:[#allocation7 + $0xb8] sm:$0xff]
        %v655 = vld [vmem:[#allocation7 + $0xc0] sm:$0xff]
        %v656 = vld [vmem:[#allocation7 + $0xc8] sm:$0xff]
        %v657 = vld [vmem:[#allocation7 + $0xd0] sm:$0xff]
        %v658 = vld [vmem:[#allocation7 + $0xd8] sm:$0xff]
        %v659 = vld [vmem:[#allocation7 + $0xe0] sm:$0xff]
        %v660 = vld [vmem:[#allocation7 + $0xe8] sm:$0xff]
        %v661 = vld [vmem:[#allocation7 + $0xf0] sm:$0xff]
        %v662 = vld [vmem:[#allocation7 + $0xf8] sm:$0xff]
        %v663 = vld [vmem:[#allocation7 + $0x100] sm:$0xff]
        %v664 = vld [vmem:[#allocation7 + $0x108] sm:$0xff]
        %v665 = vld [vmem:[#allocation7 + $0x110] sm:$0xff]
        %v666 = vld [vmem:[#allocation7 + $0x118] sm:$0xff]
        %v667 = vld [vmem:[#allocation7 + $0x120] sm:$0xff]
        %v668 = vld [vmem:[#allocation7 + $0x128] sm:$0xff]
        %v669 = vld [vmem:[#allocation7 + $0x130] sm:$0xff]
        %v670 = vld [vmem:[#allocation7 + $0x138] sm:$0xff]
        %v671 = vld [vmem:[#allocation7 + $0x140] sm:$0xff]
        %v672 = vld [vmem:[#allocation7 + $0x148] sm:$0xff]
        %v673 = vld [vmem:[#allocation7 + $0x150] sm:$0xff]
        %v674 = vld [vmem:[#allocation7 + $0x158] sm:$0xff]
        %v675 = vld [vmem:[#allocation7 + $0x160] sm:$0xff]
        %v676 = vld [vmem:[#allocation7 + $0x168] sm:$0xff]
        %v677 = vld [vmem:[#allocation7 + $0x170] sm:$0xff]
        %v678 = vld [vmem:[#allocation7 + $0x178] sm:$0xff]
        %s679 = scalar_lea.vmem [#allocation2], 24
        %v680 = vld [vmem:[%s679] sm:$0xff]
        %v681 = vld [vmem:[%s679 + $0x8] sm:$0xff]
        %v682 = vld [vmem:[%s679 + $0x18] sm:$0xff]
        %v683 = vld [vmem:[%s679 + $0x20] sm:$0xff]
        %v684 = vld [vmem:[%s679 + $0x30] sm:$0xff]
        %v685 = vld [vmem:[%s679 + $0x38] sm:$0xff]
        %v686 = vld [vmem:[%s679 + $0x48] sm:$0xff]
        %v687 = vld [vmem:[%s679 + $0x50] sm:$0xff]
        %v688 = vld [vmem:[%s679 + $0x60] sm:$0xff]
        %v689 = vld [vmem:[%s679 + $0x68] sm:$0xff]
        %v690 = vld [vmem:[%s679 + $0x78] sm:$0xff]
        %v691 = vld [vmem:[%s679 + $0x80] sm:$0xff]
        %v692 = vld [vmem:[%s679 + $0x90] sm:$0xff]
        %v693 = vld [vmem:[%s679 + $0x98] sm:$0xff]
        %v694 = vld [vmem:[%s679 + $0xa8] sm:$0xff]
        %v695 = vld [vmem:[%s679 + $0xb0] sm:$0xff]
        %v696 = vld [vmem:[%s679 + $0xc0] sm:$0xff]
        %v697 = vld [vmem:[%s679 + $0xc8] sm:$0xff]
        %v698 = vld [vmem:[%s679 + $0xd8] sm:$0xff]
        %v699 = vld [vmem:[%s679 + $0xe0] sm:$0xff]
        %v700 = vld [vmem:[%s679 + $0xf0] sm:$0xff]
        %v701 = vld [vmem:[%s679 + $0xf8] sm:$0xff]
        %v702 = vld [vmem:[%s679 + $0x108] sm:$0xff]
        %v703 = vld [vmem:[%s679 + $0x110] sm:$0xff]
        %v704 = vld [vmem:[%s679 + $0x120] sm:$0xff]
        %v705 = vld [vmem:[%s679 + $0x128] sm:$0xff]
        %v706 = vld [vmem:[%s679 + $0x138] sm:$0xff]
        %v707 = vld [vmem:[%s679 + $0x140] sm:$0xff]
        %v708 = vld [vmem:[%s679 + $0x150] sm:$0xff]
        %v709 = vld [vmem:[%s679 + $0x158] sm:$0xff]
        %v710 = vld [vmem:[%s679 + $0x168] sm:$0xff]
        %v711 = vld [vmem:[%s679 + $0x170] sm:$0xff]
        %v712 = vld [vmem:[%s679 + $0x180] sm:$0xff]
        %v713 = vld [vmem:[%s679 + $0x188] sm:$0xff]
        %v714 = vld [vmem:[%s679 + $0x198] sm:$0xff]
        %v715 = vld [vmem:[%s679 + $0x1a0] sm:$0xff]
        %v716 = vld [vmem:[%s679 + $0x1] sm:$0xff]
        %v717 = vld [vmem:[%s679 + $0x9] sm:$0xff]
        %v718 = vld [vmem:[%s679 + $0x19] sm:$0xff]
        %v719 = vld [vmem:[%s679 + $0x21] sm:$0xff]
        %v720 = vld [vmem:[%s679 + $0x31] sm:$0xff]
        %v721 = vld [vmem:[%s679 + $0x39] sm:$0xff]
        %v722 = vld [vmem:[%s679 + $0x49] sm:$0xff]
        %v723 = vld [vmem:[%s679 + $0x51] sm:$0xff]
        %v724 = vld [vmem:[%s679 + $0x61] sm:$0xff]
        %v725 = vld [vmem:[%s679 + $0x69] sm:$0xff]
        %v726 = vld [vmem:[%s679 + $0x79] sm:$0xff]
        %v727 = vld [vmem:[%s679 + $0x81] sm:$0xff]
        %v728 = vld [vmem:[%s679 + $0x91] sm:$0xff]
        %v729 = vld [vmem:[%s679 + $0x99] sm:$0xff]
        %v730 = vld [vmem:[%s679 + $0xa9] sm:$0xff]
        %v731 = vld [vmem:[%s679 + $0xb1] sm:$0xff]
        %v732 = vld [vmem:[%s679 + $0xc1] sm:$0xff]
        %v733 = vld [vmem:[%s679 + $0xc9] sm:$0xff]
        %v734 = vld [vmem:[%s679 + $0xd9] sm:$0xff]
        %v735 = vld [vmem:[%s679 + $0xe1] sm:$0xff]
        %v736 = vld [vmem:[%s679 + $0xf1] sm:$0xff]
        %v737 = vld [vmem:[%s679 + $0xf9] sm:$0xff]
        %v738 = vld [vmem:[%s679 + $0x109] sm:$0xff]
        %v739 = vld [vmem:[%s679 + $0x111] sm:$0xff]
        %v740 = vld [vmem:[%s679 + $0x121] sm:$0xff]
        %v741 = vld [vmem:[%s679 + $0x129] sm:$0xff]
        %v742 = vld [vmem:[%s679 + $0x139] sm:$0xff]
        %v743 = vld [vmem:[%s679 + $0x141] sm:$0xff]
        %v744 = vld [vmem:[%s679 + $0x151] sm:$0xff]
        %v745 = vld [vmem:[%s679 + $0x159] sm:$0xff]
        %v746 = vld [vmem:[%s679 + $0x169] sm:$0xff]
        %v747 = vld [vmem:[%s679 + $0x171] sm:$0xff]
        %v748 = vld [vmem:[%s679 + $0x181] sm:$0xff]
        %v749 = vld [vmem:[%s679 + $0x189] sm:$0xff]
        %v750 = vld [vmem:[%s679 + $0x199] sm:$0xff]
        %v751 = vld [vmem:[%s679 + $0x1a1] sm:$0xff]
        %v752 = vld [vmem:[%s679 + $0x2] sm:$0xff]
        %v753 = vld [vmem:[%s679 + $0xa] sm:$0xff]
        %v754 = vld [vmem:[%s679 + $0x1a] sm:$0xff]
        %v755 = vld [vmem:[%s679 + $0x22] sm:$0xff]
        %v756 = vld [vmem:[%s679 + $0x32] sm:$0xff]
        %v757 = vld [vmem:[%s679 + $0x3a] sm:$0xff]
        %v758 = vld [vmem:[%s679 + $0x4a] sm:$0xff]
        %v759 = vld [vmem:[%s679 + $0x52] sm:$0xff]
        %v760 = vld [vmem:[%s679 + $0x62] sm:$0xff]
        %v761 = vld [vmem:[%s679 + $0x6a] sm:$0xff]
        %v762 = vld [vmem:[%s679 + $0x7a] sm:$0xff]
        %v763 = vld [vmem:[%s679 + $0x82] sm:$0xff]
        %v764 = vld [vmem:[%s679 + $0x92] sm:$0xff]
        %v765 = vld [vmem:[%s679 + $0x9a] sm:$0xff]
        %v766 = vld [vmem:[%s679 + $0xaa] sm:$0xff]
        %v767 = vld [vmem:[%s679 + $0xb2] sm:$0xff]
        %v768 = vld [vmem:[%s679 + $0xc2] sm:$0xff]
        %v769 = vld [vmem:[%s679 + $0xca] sm:$0xff]
        %v770 = vld [vmem:[%s679 + $0xda] sm:$0xff]
        %v771 = vld [vmem:[%s679 + $0xe2] sm:$0xff]
        %v772 = vld [vmem:[%s679 + $0xf2] sm:$0xff]
        %v773 = vld [vmem:[%s679 + $0xfa] sm:$0xff]
        %v774 = vld [vmem:[%s679 + $0x10a] sm:$0xff]
        %v775 = vld [vmem:[%s679 + $0x112] sm:$0xff]
        %v776 = vld [vmem:[%s679 + $0x122] sm:$0xff]
        %v777 = vld [vmem:[%s679 + $0x12a] sm:$0xff]
        %v778 = vld [vmem:[%s679 + $0x13a] sm:$0xff]
        %v779 = vld [vmem:[%s679 + $0x142] sm:$0xff]
        %v780 = vld [vmem:[%s679 + $0x152] sm:$0xff]
        %v781 = vld [vmem:[%s679 + $0x15a] sm:$0xff]
        %v782 = vld [vmem:[%s679 + $0x16a] sm:$0xff]
        %v783 = vld [vmem:[%s679 + $0x172] sm:$0xff]
        %v784 = vld [vmem:[%s679 + $0x182] sm:$0xff]
        %v785 = vld [vmem:[%s679 + $0x18a] sm:$0xff]
        %v786 = vld [vmem:[%s679 + $0x19a] sm:$0xff]
        %v787 = vld [vmem:[%s679 + $0x1a2] sm:$0xff]
        %v788 = vld [vmem:[#allocation7 + $0x180] sm:$0xff]
        %v789 = vld [vmem:[#allocation7 + $0x188] sm:$0xff]
        %v790 = vld [vmem:[#allocation7 + $0x190] sm:$0xff]
        %v791 = vld [vmem:[#allocation7 + $0x198] sm:$0xff]
        %v792 = vld [vmem:[#allocation7 + $0x1a0] sm:$0xff]
        %v793 = vld [vmem:[#allocation7 + $0x1a8] sm:$0xff]
        %v794 = vld [vmem:[#allocation7 + $0x1b0] sm:$0xff]
        %v795 = vld [vmem:[#allocation7 + $0x1b8] sm:$0xff]
        %v796 = vld [vmem:[#allocation7 + $0x1c0] sm:$0xff]
        %v797 = vld [vmem:[#allocation7 + $0x1c8] sm:$0xff]
        %v798 = vld [vmem:[#allocation7 + $0x1d0] sm:$0xff]
        %v799 = vld [vmem:[#allocation7 + $0x1d8] sm:$0xff]
        %v800 = vld [vmem:[#allocation7 + $0x1e0] sm:$0xff]
        %v801 = vld [vmem:[#allocation7 + $0x1e8] sm:$0xff]
        %v802 = vld [vmem:[#allocation7 + $0x1f0] sm:$0xff]
        %v803 = vld [vmem:[#allocation7 + $0x1f8] sm:$0xff]
        %v804 = vld [vmem:[#allocation7 + $0x200] sm:$0xff]
        %v805 = vld [vmem:[#allocation7 + $0x208] sm:$0xff]
        %v806 = vld [vmem:[#allocation7 + $0x210] sm:$0xff]
        %v807 = vld [vmem:[#allocation7 + $0x218] sm:$0xff]
        %v808 = vld [vmem:[#allocation7 + $0x220] sm:$0xff]
        %v809 = vld [vmem:[#allocation7 + $0x228] sm:$0xff]
        %v810 = vld [vmem:[#allocation7 + $0x230] sm:$0xff]
        %v811 = vld [vmem:[#allocation7 + $0x238] sm:$0xff]
        %v812 = vld [vmem:[#allocation7 + $0x240] sm:$0xff]
        %v813 = vld [vmem:[#allocation7 + $0x248] sm:$0xff]
        %v814 = vld [vmem:[#allocation7 + $0x250] sm:$0xff]
        %v815 = vld [vmem:[#allocation7 + $0x258] sm:$0xff]
        %v816 = vld [vmem:[#allocation7 + $0x260] sm:$0xff]
        %v817 = vld [vmem:[#allocation7 + $0x268] sm:$0xff]
        %v818 = vld [vmem:[#allocation7 + $0x270] sm:$0xff]
        %v819 = vld [vmem:[#allocation7 + $0x278] sm:$0xff]
        %v820 = vld [vmem:[#allocation7 + $0x280] sm:$0xff]
        %v821 = vld [vmem:[#allocation7 + $0x288] sm:$0xff]
        %v822 = vld [vmem:[#allocation7 + $0x290] sm:$0xff]
        %v823 = vld [vmem:[#allocation7 + $0x298] sm:$0xff]
        %v824 = vld [vmem:[#allocation7 + $0x2a0] sm:$0xff]
        %v825 = vld [vmem:[#allocation7 + $0x2a8] sm:$0xff]
        %v826 = vld [vmem:[#allocation7 + $0x2b0] sm:$0xff]
        %v827 = vld [vmem:[#allocation7 + $0x2b8] sm:$0xff]
        %v828 = vld [vmem:[#allocation7 + $0x2c0] sm:$0xff]
        %v829 = vld [vmem:[#allocation7 + $0x2c8] sm:$0xff]
        %v830 = vld [vmem:[#allocation7 + $0x2d0] sm:$0xff]
        %v831 = vld [vmem:[#allocation7 + $0x2d8] sm:$0xff]
        %v832 = vld [vmem:[#allocation7 + $0x2e0] sm:$0xff]
        %v833 = vld [vmem:[#allocation7 + $0x2e8] sm:$0xff]
        %v834 = vld [vmem:[#allocation7 + $0x2f0] sm:$0xff]
        %v835 = vld [vmem:[#allocation7 + $0x2f8] sm:$0xff]
        %836 = vmatprep.subr.mxu0 0.0
        %837 = vmatpush1.msra.mxu0 %v803
        %838 = vmatprep.subr.mxu0 0.0
        %839 = vmatpush1.msra.mxu0 %v802
        %840 = vmatprep.subr.mxu0 0.0
        %841 = vmatpush1.msra.mxu0 %v801
        %842 = vmatprep.subr.mxu0 0.0
        %843 = vmatpush1.msra.mxu0 %v800
        %844 = vmatprep.subr.mxu0 0.0
        %845 = vmatpush1.msra.mxu0 %v799
        %846 = vmatprep.subr.mxu0 0.0
        %847 = vmatpush1.msra.mxu0 %v798
        %848 = vmatprep.subr.mxu0 0.0
        %849 = vmatpush1.msra.mxu0 %v797
        %850 = vmatprep.subr.mxu0 0.0
        %851 = vmatpush1.msra.mxu0 %v796
        %852 = vmatprep.subr.mxu0 0.0
        %853 = vmatpush1.msra.mxu0 %v795
        %854 = vmatprep.subr.mxu0 0.0
        %855 = vmatpush1.msra.mxu0 %v794
        %856 = vmatprep.subr.mxu0 0.0
        %857 = vmatpush1.msra.mxu0 %v793
        %858 = vmatprep.subr.mxu0 0.0
        %859 = vmatpush1.msra.mxu0 %v792
        %860 = vmatprep.subr.mxu0 0.0
        %861 = vmatpush1.msra.mxu0 %v791
        %862 = vmatprep.subr.mxu0 0.0
        %863 = vmatpush1.msra.mxu0 %v790
        %864 = vmatprep.subr.mxu0 0.0
        %865 = vmatpush1.msra.mxu0 %v789
        %866 = vmatprep.subr.mxu0 0.0
        %867 = vmatpush1.msra.mxu0 %v788
        %868 = vmatprep.subr.mxu0 0.0
        %869 = vmatpush2.msra.mxu0 %v819
        %870 = vmatprep.subr.mxu0 0.0
        %871 = vmatpush2.msra.mxu0 %v818
        %872 = vmatprep.subr.mxu0 0.0
        %873 = vmatpush2.msra.mxu0 %v817
        %874 = vmatprep.subr.mxu0 0.0
        %875 = vmatpush2.msra.mxu0 %v816
        %876 = vmatprep.subr.mxu0 0.0
        %877 = vmatpush2.msra.mxu0 %v815
        %878 = vmatprep.subr.mxu0 0.0
        %879 = vmatpush2.msra.mxu0 %v814
        %880 = vmatprep.subr.mxu0 0.0
        %881 = vmatpush2.msra.mxu0 %v813
        %882 = vmatprep.subr.mxu0 0.0
        %883 = vmatpush2.msra.mxu0 %v812
        %884 = vmatprep.subr.mxu0 0.0
        %885 = vmatpush2.msra.mxu0 %v811
        %886 = vmatprep.subr.mxu0 0.0
        %887 = vmatpush2.msra.mxu0 %v810
        %888 = vmatprep.subr.mxu0 0.0
        %889 = vmatpush2.msra.mxu0 %v809
        %890 = vmatprep.subr.mxu0 0.0
        %891 = vmatpush2.msra.mxu0 %v808
        %892 = vmatprep.subr.mxu0 0.0
        %893 = vmatpush2.msra.mxu0 %v807
        %894 = vmatprep.subr.mxu0 0.0
        %895 = vmatpush2.msra.mxu0 %v806
        %896 = vmatprep.subr.mxu0 0.0
        %897 = vmatpush2.msra.mxu0 %v805
        %898 = vmatprep.subr.mxu0 0.0
        %899 = vmatpush2.msra.mxu0 %v804
        %900 = vmatprep.mubr.f32.mxu0 %v716
        %901 = vmatmul.mubr.f32.gmra.mxu0 %v680
        %v902 = vpop.f32.mrf.mxu0
        %v903 = vadd.f32 0.0, %v902
        %v904 = vpop.f32.mrf.mxu0
        %905 = vmatprep.mubr.f32.mxu0 %v717
        %906 = vmatmul.mubr.f32.gmra.mxu0 %v681
        %v907 = vpop.f32.mrf.mxu0
        %v908 = vadd.f32 0.0, %v907
        %v909 = vpop.f32.mrf.mxu0
        %910 = vmatprep.mubr.f32.mxu0 %v718
        %911 = vmatmul.mubr.f32.gmra.mxu0 %v682
        %v912 = vpop.f32.mrf.mxu0
        %v913 = vadd.f32 0.0, %v912
        %v914 = vpop.f32.mrf.mxu0
        %915 = vmatprep.mubr.f32.mxu0 %v719
        %916 = vmatmul.mubr.f32.gmra.mxu0 %v683
        %v917 = vpop.f32.mrf.mxu0
        %v918 = vadd.f32 0.0, %v917
        %v919 = vpop.f32.mrf.mxu0
        %920 = vmatprep.mubr.f32.mxu0 %v720
        %921 = vmatmul.mubr.f32.gmra.mxu0 %v684
        %v922 = vpop.f32.mrf.mxu0
        %v923 = vadd.f32 0.0, %v922
        %v924 = vpop.f32.mrf.mxu0
        %925 = vmatprep.mubr.f32.mxu0 %v721
        %926 = vmatmul.mubr.f32.gmra.mxu0 %v685
        %v927 = vpop.f32.mrf.mxu0
        %v928 = vadd.f32 0.0, %v927
        %v929 = vpop.f32.mrf.mxu0
        %930 = vmatprep.mubr.f32.mxu0 %v722
        %931 = vmatmul.mubr.f32.gmra.mxu0 %v686
        %v932 = vpop.f32.mrf.mxu0
        %v933 = vadd.f32 0.0, %v932
        %v934 = vpop.f32.mrf.mxu0
        %935 = vmatprep.mubr.f32.mxu0 %v723
        %936 = vmatmul.mubr.f32.gmra.mxu0 %v687
        %v937 = vpop.f32.mrf.mxu0
        %v938 = vadd.f32 0.0, %v937
        %v939 = vpop.f32.mrf.mxu0
        %940 = vmatprep.mubr.f32.mxu0 %v724
        %941 = vmatmul.mubr.f32.gmra.mxu0 %v688
        %v942 = vpop.f32.mrf.mxu0
        %v943 = vadd.f32 0.0, %v942
        %v944 = vpop.f32.mrf.mxu0
        %945 = vmatprep.mubr.f32.mxu0 %v725
        %946 = vmatmul.mubr.f32.gmra.mxu0 %v689
        %v947 = vpop.f32.mrf.mxu0
        %v948 = vadd.f32 0.0, %v947
        %v949 = vpop.f32.mrf.mxu0
        %950 = vmatprep.mubr.f32.mxu0 %v726
        %951 = vmatmul.mubr.f32.gmra.mxu0 %v690
        %v952 = vpop.f32.mrf.mxu0
        %v953 = vadd.f32 0.0, %v952
        %v954 = vpop.f32.mrf.mxu0
        %955 = vmatprep.mubr.f32.mxu0 %v727
        %956 = vmatmul.mubr.f32.gmra.mxu0 %v691
        %v957 = vpop.f32.mrf.mxu0
        %v958 = vadd.f32 0.0, %v957
        %v959 = vpop.f32.mrf.mxu0
        %960 = vmatprep.mubr.f32.mxu0 %v728
        %961 = vmatmul.mubr.f32.gmra.mxu0 %v692
        %v962 = vpop.f32.mrf.mxu0
        %v963 = vadd.f32 0.0, %v962
        %v964 = vpop.f32.mrf.mxu0
        %965 = vmatprep.mubr.f32.mxu0 %v729
        %966 = vmatmul.mubr.f32.gmra.mxu0 %v693
        %v967 = vpop.f32.mrf.mxu0
        %v968 = vadd.f32 0.0, %v967
        %v969 = vpop.f32.mrf.mxu0
        %970 = vmatprep.mubr.f32.mxu0 %v730
        %971 = vmatmul.mubr.f32.gmra.mxu0 %v694
        %v972 = vpop.f32.mrf.mxu0
        %v973 = vadd.f32 0.0, %v972
        %v974 = vpop.f32.mrf.mxu0
        %975 = vmatprep.mubr.f32.mxu0 %v731
        %976 = vmatmul.mubr.f32.gmra.mxu0 %v695
        %v977 = vpop.f32.mrf.mxu0
        %v978 = vadd.f32 0.0, %v977
        %v979 = vpop.f32.mrf.mxu0
        %980 = vmatprep.mubr.f32.mxu0 %v732
        %981 = vmatmul.mubr.f32.gmra.mxu0 %v696
        %v982 = vpop.f32.mrf.mxu0
        %v983 = vadd.f32 0.0, %v982
        %v984 = vpop.f32.mrf.mxu0
        %985 = vmatprep.mubr.f32.mxu0 %v733
        %986 = vmatmul.mubr.f32.gmra.mxu0 %v697
        %v987 = vpop.f32.mrf.mxu0
        %v988 = vadd.f32 0.0, %v987
        %v989 = vpop.f32.mrf.mxu0
        %990 = vmatprep.mubr.f32.mxu0 %v734
        %991 = vmatmul.mubr.f32.gmra.mxu0 %v698
        %v992 = vpop.f32.mrf.mxu0
        %v993 = vadd.f32 0.0, %v992
        %v994 = vpop.f32.mrf.mxu0
        %995 = vmatprep.mubr.f32.mxu0 %v735
        %996 = vmatmul.mubr.f32.gmra.mxu0 %v699
        %v997 = vpop.f32.mrf.mxu0
        %v998 = vadd.f32 0.0, %v997
        %v999 = vpop.f32.mrf.mxu0
        %1000 = vmatprep.mubr.f32.mxu0 %v736
        %1001 = vmatmul.mubr.f32.gmra.mxu0 %v700
        %v1002 = vpop.f32.mrf.mxu0
        %v1003 = vadd.f32 0.0, %v1002
        %v1004 = vpop.f32.mrf.mxu0
        %1005 = vmatprep.mubr.f32.mxu0 %v737
        %1006 = vmatmul.mubr.f32.gmra.mxu0 %v701
        %v1007 = vpop.f32.mrf.mxu0
        %v1008 = vadd.f32 0.0, %v1007
        %v1009 = vpop.f32.mrf.mxu0
        %1010 = vmatprep.mubr.f32.mxu0 %v738
        %1011 = vmatmul.mubr.f32.gmra.mxu0 %v702
        %v1012 = vpop.f32.mrf.mxu0
        %v1013 = vadd.f32 0.0, %v1012
        %v1014 = vpop.f32.mrf.mxu0
        %1015 = vmatprep.mubr.f32.mxu0 %v739
        %1016 = vmatmul.mubr.f32.gmra.mxu0 %v703
        %v1017 = vpop.f32.mrf.mxu0
        %v1018 = vadd.f32 0.0, %v1017
        %v1019 = vpop.f32.mrf.mxu0
        %1020 = vmatprep.mubr.f32.mxu0 %v740
        %1021 = vmatmul.mubr.f32.gmra.mxu0 %v704
        %v1022 = vpop.f32.mrf.mxu0
        %v1023 = vadd.f32 0.0, %v1022
        %v1024 = vpop.f32.mrf.mxu0
        %1025 = vmatprep.mubr.f32.mxu0 %v741
        %1026 = vmatmul.mubr.f32.gmra.mxu0 %v705
        %v1027 = vpop.f32.mrf.mxu0
        %v1028 = vadd.f32 0.0, %v1027
        %v1029 = vpop.f32.mrf.mxu0
        %1030 = vmatprep.mubr.f32.mxu0 %v742
        %1031 = vmatmul.mubr.f32.gmra.mxu0 %v706
        %v1032 = vpop.f32.mrf.mxu0
        %v1033 = vadd.f32 0.0, %v1032
        %v1034 = vpop.f32.mrf.mxu0
        %1035 = vmatprep.mubr.f32.mxu0 %v743
        %1036 = vmatmul.mubr.f32.gmra.mxu0 %v707
        %v1037 = vpop.f32.mrf.mxu0
        %v1038 = vadd.f32 0.0, %v1037
        %v1039 = vpop.f32.mrf.mxu0
        %1040 = vmatprep.mubr.f32.mxu0 %v744
        %1041 = vmatmul.mubr.f32.gmra.mxu0 %v708
        %v1042 = vpop.f32.mrf.mxu0
        %v1043 = vadd.f32 0.0, %v1042
        %v1044 = vpop.f32.mrf.mxu0
        %1045 = vmatprep.mubr.f32.mxu0 %v745
        %1046 = vmatmul.mubr.f32.gmra.mxu0 %v709
        %v1047 = vpop.f32.mrf.mxu0
        %v1048 = vadd.f32 0.0, %v1047
        %v1049 = vpop.f32.mrf.mxu0
        %1050 = vmatprep.mubr.f32.mxu0 %v746
        %1051 = vmatmul.mubr.f32.gmra.mxu0 %v710
        %v1052 = vpop.f32.mrf.mxu0
        %v1053 = vadd.f32 0.0, %v1052
        %v1054 = vpop.f32.mrf.mxu0
        %1055 = vmatprep.mubr.f32.mxu0 %v747
        %1056 = vmatmul.mubr.f32.gmra.mxu0 %v711
        %v1057 = vpop.f32.mrf.mxu0
        %v1058 = vadd.f32 0.0, %v1057
        %v1059 = vpop.f32.mrf.mxu0
        %1060 = vmatprep.mubr.f32.mxu0 %v748
        %1061 = vmatmul.mubr.f32.gmra.mxu0 %v712
        %v1062 = vpop.f32.mrf.mxu0
        %v1063 = vadd.f32 0.0, %v1062
        %v1064 = vpop.f32.mrf.mxu0
        %1065 = vmatprep.mubr.f32.mxu0 %v749
        %1066 = vmatmul.mubr.f32.gmra.mxu0 %v713
        %v1067 = vpop.f32.mrf.mxu0
        %v1068 = vadd.f32 0.0, %v1067
        %v1069 = vpop.f32.mrf.mxu0
        %1070 = vmatprep.mubr.f32.mxu0 %v750
        %1071 = vmatmul.mubr.f32.gmra.mxu0 %v714
        %v1072 = vpop.f32.mrf.mxu0
        %v1073 = vadd.f32 0.0, %v1072
        %v1074 = vpop.f32.mrf.mxu0
        %1075 = vmatprep.mubr.f32.mxu0 %v751
        %1076 = vmatmul.mubr.f32.gmra.mxu0 %v715
        %v1077 = vpop.f32.mrf.mxu0
        %v1078 = vadd.f32 0.0, %v1077
        %v1079 = vpop.f32.mrf.mxu0
        %1080 = vdwg.mxu0
        %1081 = vmatprep.subr.mxu0 0.0
        %1082 = vmatpush1.msra.mxu0 %v835
        %1083 = vmatprep.subr.mxu0 0.0
        %1084 = vmatpush1.msra.mxu0 %v834
        %1085 = vmatprep.subr.mxu0 0.0
        %1086 = vmatpush1.msra.mxu0 %v833
        %1087 = vmatprep.subr.mxu0 0.0
        %1088 = vmatpush1.msra.mxu0 %v832
        %1089 = vmatprep.subr.mxu0 0.0
        %1090 = vmatpush1.msra.mxu0 %v831
        %1091 = vmatprep.subr.mxu0 0.0
        %1092 = vmatpush1.msra.mxu0 %v830
        %1093 = vmatprep.subr.mxu0 0.0
        %1094 = vmatpush1.msra.mxu0 %v829
        %1095 = vmatprep.subr.mxu0 0.0
        %1096 = vmatpush1.msra.mxu0 %v828
        %1097 = vmatprep.subr.mxu0 0.0
        %1098 = vmatpush1.msra.mxu0 %v827
        %1099 = vmatprep.subr.mxu0 0.0
        %1100 = vmatpush1.msra.mxu0 %v826
        %1101 = vmatprep.subr.mxu0 0.0
        %1102 = vmatpush1.msra.mxu0 %v825
        %1103 = vmatprep.subr.mxu0 0.0
        %1104 = vmatpush1.msra.mxu0 %v824
        %1105 = vmatprep.subr.mxu0 0.0
        %1106 = vmatpush1.msra.mxu0 %v823
        %1107 = vmatprep.subr.mxu0 0.0
        %1108 = vmatpush1.msra.mxu0 %v822
        %1109 = vmatprep.subr.mxu0 0.0
        %1110 = vmatpush1.msra.mxu0 %v821
        %1111 = vmatprep.subr.mxu0 0.0
        %1112 = vmatpush1.msra.mxu0 %v820
        %1113 = vmatprep.subr.mxu0 0.0
        %1114 = vmatpush2.msra.mxu0 0.0
        %1115 = vmatprep.subr.mxu0 0.0
        %1116 = vmatpush2.msra.mxu0 0.0
        %1117 = vmatprep.subr.mxu0 0.0
        %1118 = vmatpush2.msra.mxu0 0.0
        %1119 = vmatprep.subr.mxu0 0.0
        %1120 = vmatpush2.msra.mxu0 0.0
        %1121 = vmatprep.subr.mxu0 0.0
        %1122 = vmatpush2.msra.mxu0 0.0
        %1123 = vmatprep.subr.mxu0 0.0
        %1124 = vmatpush2.msra.mxu0 0.0
        %1125 = vmatprep.subr.mxu0 0.0
        %1126 = vmatpush2.msra.mxu0 0.0
        %1127 = vmatprep.subr.mxu0 0.0
        %1128 = vmatpush2.msra.mxu0 0.0
        %1129 = vmatprep.subr.mxu0 0.0
        %1130 = vmatpush2.msra.mxu0 0.0
        %1131 = vmatprep.subr.mxu0 0.0
        %1132 = vmatpush2.msra.mxu0 0.0
        %1133 = vmatprep.subr.mxu0 0.0
        %1134 = vmatpush2.msra.mxu0 0.0
        %1135 = vmatprep.subr.mxu0 0.0
        %1136 = vmatpush2.msra.mxu0 0.0
        %1137 = vmatprep.subr.mxu0 0.0
        %1138 = vmatpush2.msra.mxu0 0.0
        %1139 = vmatprep.subr.mxu0 0.0
        %1140 = vmatpush2.msra.mxu0 0.0
        %1141 = vmatprep.subr.mxu0 0.0
        %1142 = vmatpush2.msra.mxu0 0.0
        %1143 = vmatprep.subr.mxu0 0.0
        %1144 = vmatpush2.msra.mxu0 0.0
        %1145 = vmatprep.mubr.f32.mxu0 0.0
        %1146 = vmatmul.mubr.f32.gmra.mxu0 %v752
        %v1147 = vpop.f32.mrf.mxu0
        %v1148 = vadd.f32 %v903, %v1147
        %v1149 = vpop.f32.mrf.mxu0
        %1150 = vmatprep.mubr.f32.mxu0 0.0
        %1151 = vmatmul.mubr.f32.gmra.mxu0 %v753
        %v1152 = vpop.f32.mrf.mxu0
        %v1153 = vadd.f32 %v908, %v1152
        %v1154 = vpop.f32.mrf.mxu0
        %1155 = vmatprep.mubr.f32.mxu0 0.0
        %1156 = vmatmul.mubr.f32.gmra.mxu0 %v754
        %v1157 = vpop.f32.mrf.mxu0
        %v1158 = vadd.f32 %v913, %v1157
        %v1159 = vpop.f32.mrf.mxu0
        %1160 = vmatprep.mubr.f32.mxu0 0.0
        %1161 = vmatmul.mubr.f32.gmra.mxu0 %v755
        %v1162 = vpop.f32.mrf.mxu0
        %v1163 = vadd.f32 %v918, %v1162
        %v1164 = vpop.f32.mrf.mxu0
        %1165 = vmatprep.mubr.f32.mxu0 0.0
        %1166 = vmatmul.mubr.f32.gmra.mxu0 %v756
        %v1167 = vpop.f32.mrf.mxu0
        %v1168 = vadd.f32 %v923, %v1167
        %v1169 = vpop.f32.mrf.mxu0
        %1170 = vmatprep.mubr.f32.mxu0 0.0
        %1171 = vmatmul.mubr.f32.gmra.mxu0 %v757
        %v1172 = vpop.f32.mrf.mxu0
        %v1173 = vadd.f32 %v928, %v1172
        %v1174 = vpop.f32.mrf.mxu0
        %1175 = vmatprep.mubr.f32.mxu0 0.0
        %1176 = vmatmul.mubr.f32.gmra.mxu0 %v758
        %v1177 = vpop.f32.mrf.mxu0
        %v1178 = vadd.f32 %v933, %v1177
        %v1179 = vpop.f32.mrf.mxu0
        %1180 = vmatprep.mubr.f32.mxu0 0.0
        %1181 = vmatmul.mubr.f32.gmra.mxu0 %v759
        %v1182 = vpop.f32.mrf.mxu0
        %v1183 = vadd.f32 %v938, %v1182
        %v1184 = vpop.f32.mrf.mxu0
        %1185 = vmatprep.mubr.f32.mxu0 0.0
        %1186 = vmatmul.mubr.f32.gmra.mxu0 %v760
        %v1187 = vpop.f32.mrf.mxu0
        %v1188 = vadd.f32 %v943, %v1187
        %v1189 = vpop.f32.mrf.mxu0
        %1190 = vmatprep.mubr.f32.mxu0 0.0
        %1191 = vmatmul.mubr.f32.gmra.mxu0 %v761
        %v1192 = vpop.f32.mrf.mxu0
        %v1193 = vadd.f32 %v948, %v1192
        %v1194 = vpop.f32.mrf.mxu0
        %1195 = vmatprep.mubr.f32.mxu0 0.0
        %1196 = vmatmul.mubr.f32.gmra.mxu0 %v762
        %v1197 = vpop.f32.mrf.mxu0
        %v1198 = vadd.f32 %v953, %v1197
        %v1199 = vpop.f32.mrf.mxu0
        %1200 = vmatprep.mubr.f32.mxu0 0.0
        %1201 = vmatmul.mubr.f32.gmra.mxu0 %v763
        %v1202 = vpop.f32.mrf.mxu0
        %v1203 = vadd.f32 %v958, %v1202
        %v1204 = vpop.f32.mrf.mxu0
        %1205 = vmatprep.mubr.f32.mxu0 0.0
        %1206 = vmatmul.mubr.f32.gmra.mxu0 %v764
        %v1207 = vpop.f32.mrf.mxu0
        %v1208 = vadd.f32 %v963, %v1207
        %v1209 = vpop.f32.mrf.mxu0
        %1210 = vmatprep.mubr.f32.mxu0 0.0
        %1211 = vmatmul.mubr.f32.gmra.mxu0 %v765
        %v1212 = vpop.f32.mrf.mxu0
        %v1213 = vadd.f32 %v968, %v1212
        %v1214 = vpop.f32.mrf.mxu0
        %1215 = vmatprep.mubr.f32.mxu0 0.0
        %1216 = vmatmul.mubr.f32.gmra.mxu0 %v766
        %v1217 = vpop.f32.mrf.mxu0
        %v1218 = vadd.f32 %v973, %v1217
        %v1219 = vpop.f32.mrf.mxu0
        %1220 = vmatprep.mubr.f32.mxu0 0.0
        %1221 = vmatmul.mubr.f32.gmra.mxu0 %v767
        %v1222 = vpop.f32.mrf.mxu0
        %v1223 = vadd.f32 %v978, %v1222
        %v1224 = vpop.f32.mrf.mxu0
        %1225 = vmatprep.mubr.f32.mxu0 0.0
        %1226 = vmatmul.mubr.f32.gmra.mxu0 %v768
        %v1227 = vpop.f32.mrf.mxu0
        %v1228 = vadd.f32 %v983, %v1227
        %v1229 = vpop.f32.mrf.mxu0
        %1230 = vmatprep.mubr.f32.mxu0 0.0
        %1231 = vmatmul.mubr.f32.gmra.mxu0 %v769
        %v1232 = vpop.f32.mrf.mxu0
        %v1233 = vadd.f32 %v988, %v1232
        %v1234 = vpop.f32.mrf.mxu0
        %1235 = vmatprep.mubr.f32.mxu0 0.0
        %1236 = vmatmul.mubr.f32.gmra.mxu0 %v770
        %v1237 = vpop.f32.mrf.mxu0
        %v1238 = vadd.f32 %v993, %v1237
        %v1239 = vpop.f32.mrf.mxu0
        %1240 = vmatprep.mubr.f32.mxu0 0.0
        %1241 = vmatmul.mubr.f32.gmra.mxu0 %v771
        %v1242 = vpop.f32.mrf.mxu0
        %v1243 = vadd.f32 %v998, %v1242
        %v1244 = vpop.f32.mrf.mxu0
        %1245 = vmatprep.mubr.f32.mxu0 0.0
        %1246 = vmatmul.mubr.f32.gmra.mxu0 %v772
        %v1247 = vpop.f32.mrf.mxu0
        %v1248 = vadd.f32 %v1003, %v1247
        %v1249 = vpop.f32.mrf.mxu0
        %1250 = vmatprep.mubr.f32.mxu0 0.0
        %1251 = vmatmul.mubr.f32.gmra.mxu0 %v773
        %v1252 = vpop.f32.mrf.mxu0
        %v1253 = vadd.f32 %v1008, %v1252
        %v1254 = vpop.f32.mrf.mxu0
        %1255 = vmatprep.mubr.f32.mxu0 0.0
        %1256 = vmatmul.mubr.f32.gmra.mxu0 %v774
        %v1257 = vpop.f32.mrf.mxu0
        %v1258 = vadd.f32 %v1013, %v1257
        %v1259 = vpop.f32.mrf.mxu0
        %1260 = vmatprep.mubr.f32.mxu0 0.0
        %1261 = vmatmul.mubr.f32.gmra.mxu0 %v775
        %v1262 = vpop.f32.mrf.mxu0
        %v1263 = vadd.f32 %v1018, %v1262
        %v1264 = vpop.f32.mrf.mxu0
        %1265 = vmatprep.mubr.f32.mxu0 0.0
        %1266 = vmatmul.mubr.f32.gmra.mxu0 %v776
        %v1267 = vpop.f32.mrf.mxu0
        %v1268 = vadd.f32 %v1023, %v1267
        %v1269 = vpop.f32.mrf.mxu0
        %1270 = vmatprep.mubr.f32.mxu0 0.0
        %1271 = vmatmul.mubr.f32.gmra.mxu0 %v777
        %v1272 = vpop.f32.mrf.mxu0
        %v1273 = vadd.f32 %v1028, %v1272
        %v1274 = vpop.f32.mrf.mxu0
        %1275 = vmatprep.mubr.f32.mxu0 0.0
        %1276 = vmatmul.mubr.f32.gmra.mxu0 %v778
        %v1277 = vpop.f32.mrf.mxu0
        %v1278 = vadd.f32 %v1033, %v1277
        %v1279 = vpop.f32.mrf.mxu0
        %1280 = vmatprep.mubr.f32.mxu0 0.0
        %1281 = vmatmul.mubr.f32.gmra.mxu0 %v779
        %v1282 = vpop.f32.mrf.mxu0
        %v1283 = vadd.f32 %v1038, %v1282
        %v1284 = vpop.f32.mrf.mxu0
        %1285 = vmatprep.mubr.f32.mxu0 0.0
        %1286 = vmatmul.mubr.f32.gmra.mxu0 %v780
        %v1287 = vpop.f32.mrf.mxu0
        %v1288 = vadd.f32 %v1043, %v1287
        %v1289 = vpop.f32.mrf.mxu0
        %1290 = vmatprep.mubr.f32.mxu0 0.0
        %1291 = vmatmul.mubr.f32.gmra.mxu0 %v781
        %v1292 = vpop.f32.mrf.mxu0
        %v1293 = vadd.f32 %v1048, %v1292
        %v1294 = vpop.f32.mrf.mxu0
        %1295 = vmatprep.mubr.f32.mxu0 0.0
        %1296 = vmatmul.mubr.f32.gmra.mxu0 %v782
        %v1297 = vpop.f32.mrf.mxu0
        %v1298 = vadd.f32 %v1053, %v1297
        %v1299 = vpop.f32.mrf.mxu0
        %1300 = vmatprep.mubr.f32.mxu0 0.0
        %1301 = vmatmul.mubr.f32.gmra.mxu0 %v783
        %v1302 = vpop.f32.mrf.mxu0
        %v1303 = vadd.f32 %v1058, %v1302
        %v1304 = vpop.f32.mrf.mxu0
        %1305 = vmatprep.mubr.f32.mxu0 0.0
        %1306 = vmatmul.mubr.f32.gmra.mxu0 %v784
        %v1307 = vpop.f32.mrf.mxu0
        %v1308 = vadd.f32 %v1063, %v1307
        %v1309 = vpop.f32.mrf.mxu0
        %1310 = vmatprep.mubr.f32.mxu0 0.0
        %1311 = vmatmul.mubr.f32.gmra.mxu0 %v785
        %v1312 = vpop.f32.mrf.mxu0
        %v1313 = vadd.f32 %v1068, %v1312
        %v1314 = vpop.f32.mrf.mxu0
        %1315 = vmatprep.mubr.f32.mxu0 0.0
        %1316 = vmatmul.mubr.f32.gmra.mxu0 %v786
        %v1317 = vpop.f32.mrf.mxu0
        %v1318 = vadd.f32 %v1073, %v1317
        %v1319 = vpop.f32.mrf.mxu0
        %1320 = vmatprep.mubr.f32.mxu0 0.0
        %1321 = vmatmul.mubr.f32.gmra.mxu0 %v787
        %v1322 = vpop.f32.mrf.mxu0
        %v1323 = vadd.f32 %v1078, %v1322
        %v1324 = vpop.f32.mrf.mxu0
        %1325 = vdwg.mxu0
        %1326 = vmatprep.subr.mxu0 0.0
        %1327 = vmatpush1.msra.mxu0 %v646
        %1328 = vmatprep.subr.mxu0 0.0
        %1329 = vmatpush1.msra.mxu0 %v645
        %1330 = vmatprep.subr.mxu0 0.0
        %1331 = vmatpush1.msra.mxu0 %v644
        %1332 = vmatprep.subr.mxu0 0.0
        %1333 = vmatpush1.msra.mxu0 %v643
        %1334 = vmatprep.subr.mxu0 0.0
        %1335 = vmatpush1.msra.mxu0 %v642
        %1336 = vmatprep.subr.mxu0 0.0
        %1337 = vmatpush1.msra.mxu0 %v641
        %1338 = vmatprep.subr.mxu0 0.0
        %1339 = vmatpush1.msra.mxu0 %v640
        %1340 = vmatprep.subr.mxu0 0.0
        %1341 = vmatpush1.msra.mxu0 %v639
        %1342 = vmatprep.subr.mxu0 0.0
        %1343 = vmatpush1.msra.mxu0 %v638
        %1344 = vmatprep.subr.mxu0 0.0
        %1345 = vmatpush1.msra.mxu0 %v637
        %1346 = vmatprep.subr.mxu0 0.0
        %1347 = vmatpush1.msra.mxu0 %v636
        %1348 = vmatprep.subr.mxu0 0.0
        %1349 = vmatpush1.msra.mxu0 %v635
        %1350 = vmatprep.subr.mxu0 0.0
        %1351 = vmatpush1.msra.mxu0 %v634
        %1352 = vmatprep.subr.mxu0 0.0
        %1353 = vmatpush1.msra.mxu0 %v633
        %1354 = vmatprep.subr.mxu0 0.0
        %1355 = vmatpush1.msra.mxu0 %v632
        %1356 = vmatprep.subr.mxu0 0.0
        %1357 = vmatpush1.msra.mxu0 %v631
        %1358 = vmatprep.subr.mxu0 0.0
        %1359 = vmatpush2.msra.mxu0 %v662
        %1360 = vmatprep.subr.mxu0 0.0
        %1361 = vmatpush2.msra.mxu0 %v661
        %1362 = vmatprep.subr.mxu0 0.0
        %1363 = vmatpush2.msra.mxu0 %v660
        %1364 = vmatprep.subr.mxu0 0.0
        %1365 = vmatpush2.msra.mxu0 %v659
        %1366 = vmatprep.subr.mxu0 0.0
        %1367 = vmatpush2.msra.mxu0 %v658
        %1368 = vmatprep.subr.mxu0 0.0
        %1369 = vmatpush2.msra.mxu0 %v657
        %1370 = vmatprep.subr.mxu0 0.0
        %1371 = vmatpush2.msra.mxu0 %v656
        %1372 = vmatprep.subr.mxu0 0.0
        %1373 = vmatpush2.msra.mxu0 %v655
        %1374 = vmatprep.subr.mxu0 0.0
        %1375 = vmatpush2.msra.mxu0 %v654
        %1376 = vmatprep.subr.mxu0 0.0
        %1377 = vmatpush2.msra.mxu0 %v653
        %1378 = vmatprep.subr.mxu0 0.0
        %1379 = vmatpush2.msra.mxu0 %v652
        %1380 = vmatprep.subr.mxu0 0.0
        %1381 = vmatpush2.msra.mxu0 %v651
        %1382 = vmatprep.subr.mxu0 0.0
        %1383 = vmatpush2.msra.mxu0 %v650
        %1384 = vmatprep.subr.mxu0 0.0
        %1385 = vmatpush2.msra.mxu0 %v649
        %1386 = vmatprep.subr.mxu0 0.0
        %1387 = vmatpush2.msra.mxu0 %v648
        %1388 = vmatprep.subr.mxu0 0.0
        %1389 = vmatpush2.msra.mxu0 %v647
        %1390 = vmatprep.mubr.f32.mxu0 %v559
        %1391 = vmatmul.mubr.f32.gmra.mxu0 %v523
        %v1392 = vpop.f32.mrf.mxu0
        %v1393 = vadd.f32 %v1148, %v1392
        %v1394 = vpop.f32.mrf.mxu0
        %1395 = vmatprep.mubr.f32.mxu0 %v560
        %1396 = vmatmul.mubr.f32.gmra.mxu0 %v524
        %v1397 = vpop.f32.mrf.mxu0
        %v1398 = vadd.f32 %v1153, %v1397
        %v1399 = vpop.f32.mrf.mxu0
        %1400 = vmatprep.mubr.f32.mxu0 %v561
        %1401 = vmatmul.mubr.f32.gmra.mxu0 %v525
        %v1402 = vpop.f32.mrf.mxu0
        %v1403 = vadd.f32 %v1158, %v1402
        %v1404 = vpop.f32.mrf.mxu0
        %1405 = vmatprep.mubr.f32.mxu0 %v562
        %1406 = vmatmul.mubr.f32.gmra.mxu0 %v526
        %v1407 = vpop.f32.mrf.mxu0
        %v1408 = vadd.f32 %v1163, %v1407
        %v1409 = vpop.f32.mrf.mxu0
        %1410 = vmatprep.mubr.f32.mxu0 %v563
        %1411 = vmatmul.mubr.f32.gmra.mxu0 %v527
        %v1412 = vpop.f32.mrf.mxu0
        %v1413 = vadd.f32 %v1168, %v1412
        %v1414 = vpop.f32.mrf.mxu0
        %1415 = vmatprep.mubr.f32.mxu0 %v564
        %1416 = vmatmul.mubr.f32.gmra.mxu0 %v528
        %v1417 = vpop.f32.mrf.mxu0
        %v1418 = vadd.f32 %v1173, %v1417
        %v1419 = vpop.f32.mrf.mxu0
        %1420 = vmatprep.mubr.f32.mxu0 %v565
        %1421 = vmatmul.mubr.f32.gmra.mxu0 %v529
        %v1422 = vpop.f32.mrf.mxu0
        %v1423 = vadd.f32 %v1178, %v1422
        %v1424 = vpop.f32.mrf.mxu0
        %1425 = vmatprep.mubr.f32.mxu0 %v566
        %1426 = vmatmul.mubr.f32.gmra.mxu0 %v530
        %v1427 = vpop.f32.mrf.mxu0
        %v1428 = vadd.f32 %v1183, %v1427
        %v1429 = vpop.f32.mrf.mxu0
        %1430 = vmatprep.mubr.f32.mxu0 %v567
        %1431 = vmatmul.mubr.f32.gmra.mxu0 %v531
        %v1432 = vpop.f32.mrf.mxu0
        %v1433 = vadd.f32 %v1188, %v1432
        %v1434 = vpop.f32.mrf.mxu0
        %1435 = vmatprep.mubr.f32.mxu0 %v568
        %1436 = vmatmul.mubr.f32.gmra.mxu0 %v532
        %v1437 = vpop.f32.mrf.mxu0
        %v1438 = vadd.f32 %v1193, %v1437
        %v1439 = vpop.f32.mrf.mxu0
        %1440 = vmatprep.mubr.f32.mxu0 %v569
        %1441 = vmatmul.mubr.f32.gmra.mxu0 %v533
        %v1442 = vpop.f32.mrf.mxu0
        %v1443 = vadd.f32 %v1198, %v1442
        %v1444 = vpop.f32.mrf.mxu0
        %1445 = vmatprep.mubr.f32.mxu0 %v570
        %1446 = vmatmul.mubr.f32.gmra.mxu0 %v534
        %v1447 = vpop.f32.mrf.mxu0
        %v1448 = vadd.f32 %v1203, %v1447
        %v1449 = vpop.f32.mrf.mxu0
        %1450 = vmatprep.mubr.f32.mxu0 %v571
        %1451 = vmatmul.mubr.f32.gmra.mxu0 %v535
        %v1452 = vpop.f32.mrf.mxu0
        %v1453 = vadd.f32 %v1208, %v1452
        %v1454 = vpop.f32.mrf.mxu0
        %1455 = vmatprep.mubr.f32.mxu0 %v572
        %1456 = vmatmul.mubr.f32.gmra.mxu0 %v536
        %v1457 = vpop.f32.mrf.mxu0
        %v1458 = vadd.f32 %v1213, %v1457
        %v1459 = vpop.f32.mrf.mxu0
        %1460 = vmatprep.mubr.f32.mxu0 %v573
        %1461 = vmatmul.mubr.f32.gmra.mxu0 %v537
        %v1462 = vpop.f32.mrf.mxu0
        %v1463 = vadd.f32 %v1218, %v1462
        %v1464 = vpop.f32.mrf.mxu0
        %1465 = vmatprep.mubr.f32.mxu0 %v574
        %1466 = vmatmul.mubr.f32.gmra.mxu0 %v538
        %v1467 = vpop.f32.mrf.mxu0
        %v1468 = vadd.f32 %v1223, %v1467
        %v1469 = vpop.f32.mrf.mxu0
        %1470 = vmatprep.mubr.f32.mxu0 %v575
        %1471 = vmatmul.mubr.f32.gmra.mxu0 %v539
        %v1472 = vpop.f32.mrf.mxu0
        %v1473 = vadd.f32 %v1228, %v1472
        %v1474 = vpop.f32.mrf.mxu0
        %1475 = vmatprep.mubr.f32.mxu0 %v576
        %1476 = vmatmul.mubr.f32.gmra.mxu0 %v540
        %v1477 = vpop.f32.mrf.mxu0
        %v1478 = vadd.f32 %v1233, %v1477
        %v1479 = vpop.f32.mrf.mxu0
        %1480 = vmatprep.mubr.f32.mxu0 %v577
        %1481 = vmatmul.mubr.f32.gmra.mxu0 %v541
        %v1482 = vpop.f32.mrf.mxu0
        %v1483 = vadd.f32 %v1238, %v1482
        %v1484 = vpop.f32.mrf.mxu0
        %1485 = vmatprep.mubr.f32.mxu0 %v578
        %1486 = vmatmul.mubr.f32.gmra.mxu0 %v542
        %v1487 = vpop.f32.mrf.mxu0
        %v1488 = vadd.f32 %v1243, %v1487
        %v1489 = vpop.f32.mrf.mxu0
        %1490 = vmatprep.mubr.f32.mxu0 %v579
        %1491 = vmatmul.mubr.f32.gmra.mxu0 %v543
        %v1492 = vpop.f32.mrf.mxu0
        %v1493 = vadd.f32 %v1248, %v1492
        %v1494 = vpop.f32.mrf.mxu0
        %1495 = vmatprep.mubr.f32.mxu0 %v580
        %1496 = vmatmul.mubr.f32.gmra.mxu0 %v544
        %v1497 = vpop.f32.mrf.mxu0
        %v1498 = vadd.f32 %v1253, %v1497
        %v1499 = vpop.f32.mrf.mxu0
        %1500 = vmatprep.mubr.f32.mxu0 %v581
        %1501 = vmatmul.mubr.f32.gmra.mxu0 %v545
        %v1502 = vpop.f32.mrf.mxu0
        %v1503 = vadd.f32 %v1258, %v1502
        %v1504 = vpop.f32.mrf.mxu0
        %1505 = vmatprep.mubr.f32.mxu0 %v582
        %1506 = vmatmul.mubr.f32.gmra.mxu0 %v546
        %v1507 = vpop.f32.mrf.mxu0
        %v1508 = vadd.f32 %v1263, %v1507
        %v1509 = vpop.f32.mrf.mxu0
        %1510 = vmatprep.mubr.f32.mxu0 %v583
        %1511 = vmatmul.mubr.f32.gmra.mxu0 %v547
        %v1512 = vpop.f32.mrf.mxu0
        %v1513 = vadd.f32 %v1268, %v1512
        %v1514 = vpop.f32.mrf.mxu0
        %1515 = vmatprep.mubr.f32.mxu0 %v584
        %1516 = vmatmul.mubr.f32.gmra.mxu0 %v548
        %v1517 = vpop.f32.mrf.mxu0
        %v1518 = vadd.f32 %v1273, %v1517
        %v1519 = vpop.f32.mrf.mxu0
        %1520 = vmatprep.mubr.f32.mxu0 %v585
        %1521 = vmatmul.mubr.f32.gmra.mxu0 %v549
        %v1522 = vpop.f32.mrf.mxu0
        %v1523 = vadd.f32 %v1278, %v1522
        %v1524 = vpop.f32.mrf.mxu0
        %1525 = vmatprep.mubr.f32.mxu0 %v586
        %1526 = vmatmul.mubr.f32.gmra.mxu0 %v550
        %v1527 = vpop.f32.mrf.mxu0
        %v1528 = vadd.f32 %v1283, %v1527
        %v1529 = vpop.f32.mrf.mxu0
        %1530 = vmatprep.mubr.f32.mxu0 %v587
        %1531 = vmatmul.mubr.f32.gmra.mxu0 %v551
        %v1532 = vpop.f32.mrf.mxu0
        %v1533 = vadd.f32 %v1288, %v1532
        %v1534 = vpop.f32.mrf.mxu0
        %1535 = vmatprep.mubr.f32.mxu0 %v588
        %1536 = vmatmul.mubr.f32.gmra.mxu0 %v552
        %v1537 = vpop.f32.mrf.mxu0
        %v1538 = vadd.f32 %v1293, %v1537
        %v1539 = vpop.f32.mrf.mxu0
        %1540 = vmatprep.mubr.f32.mxu0 %v589
        %1541 = vmatmul.mubr.f32.gmra.mxu0 %v553
        %v1542 = vpop.f32.mrf.mxu0
        %v1543 = vadd.f32 %v1298, %v1542
        %v1544 = vpop.f32.mrf.mxu0
        %1545 = vmatprep.mubr.f32.mxu0 %v590
        %1546 = vmatmul.mubr.f32.gmra.mxu0 %v554
        %v1547 = vpop.f32.mrf.mxu0
        %v1548 = vadd.f32 %v1303, %v1547
        %v1549 = vpop.f32.mrf.mxu0
        %1550 = vmatprep.mubr.f32.mxu0 %v591
        %1551 = vmatmul.mubr.f32.gmra.mxu0 %v555
        %v1552 = vpop.f32.mrf.mxu0
        %v1553 = vadd.f32 %v1308, %v1552
        %v1554 = vpop.f32.mrf.mxu0
        %1555 = vmatprep.mubr.f32.mxu0 %v592
        %1556 = vmatmul.mubr.f32.gmra.mxu0 %v556
        %v1557 = vpop.f32.mrf.mxu0
        %v1558 = vadd.f32 %v1313, %v1557
        %v1559 = vpop.f32.mrf.mxu0
        %1560 = vmatprep.mubr.f32.mxu0 %v593
        %1561 = vmatmul.mubr.f32.gmra.mxu0 %v557
        %v1562 = vpop.f32.mrf.mxu0
        %v1563 = vadd.f32 %v1318, %v1562
        %v1564 = vpop.f32.mrf.mxu0
        %1565 = vmatprep.mubr.f32.mxu0 %v594
        %1566 = vmatmul.mubr.f32.gmra.mxu0 %v558
        %v1567 = vpop.f32.mrf.mxu0
        %v1568 = vadd.f32 %v1323, %v1567
        %v1569 = vpop.f32.mrf.mxu0
        %1570 = vdwg.mxu0
        %1571 = vmatprep.subr.mxu0 0.0
        %1572 = vmatpush1.msra.mxu0 %v678
        %1573 = vmatprep.subr.mxu0 0.0
        %1574 = vmatpush1.msra.mxu0 %v677
        %1575 = vmatprep.subr.mxu0 0.0
        %1576 = vmatpush1.msra.mxu0 %v676
        %1577 = vmatprep.subr.mxu0 0.0
        %1578 = vmatpush1.msra.mxu0 %v675
        %1579 = vmatprep.subr.mxu0 0.0
        %1580 = vmatpush1.msra.mxu0 %v674
        %1581 = vmatprep.subr.mxu0 0.0
        %1582 = vmatpush1.msra.mxu0 %v673
        %1583 = vmatprep.subr.mxu0 0.0
        %1584 = vmatpush1.msra.mxu0 %v672
        %1585 = vmatprep.subr.mxu0 0.0
        %1586 = vmatpush1.msra.mxu0 %v671
        %1587 = vmatprep.subr.mxu0 0.0
        %1588 = vmatpush1.msra.mxu0 %v670
        %1589 = vmatprep.subr.mxu0 0.0
        %1590 = vmatpush1.msra.mxu0 %v669
        %1591 = vmatprep.subr.mxu0 0.0
        %1592 = vmatpush1.msra.mxu0 %v668
        %1593 = vmatprep.subr.mxu0 0.0
        %1594 = vmatpush1.msra.mxu0 %v667
        %1595 = vmatprep.subr.mxu0 0.0
        %1596 = vmatpush1.msra.mxu0 %v666
        %1597 = vmatprep.subr.mxu0 0.0
        %1598 = vmatpush1.msra.mxu0 %v665
        %1599 = vmatprep.subr.mxu0 0.0
        %1600 = vmatpush1.msra.mxu0 %v664
        %1601 = vmatprep.subr.mxu0 0.0
        %1602 = vmatpush1.msra.mxu0 %v663
        %1603 = vmatprep.subr.mxu0 0.0
        %1604 = vmatpush2.msra.mxu0 0.0
        %1605 = vmatprep.subr.mxu0 0.0
        %1606 = vmatpush2.msra.mxu0 0.0
        %1607 = vmatprep.subr.mxu0 0.0
        %1608 = vmatpush2.msra.mxu0 0.0
        %1609 = vmatprep.subr.mxu0 0.0
        %1610 = vmatpush2.msra.mxu0 0.0
        %1611 = vmatprep.subr.mxu0 0.0
        %1612 = vmatpush2.msra.mxu0 0.0
        %1613 = vmatprep.subr.mxu0 0.0
        %1614 = vmatpush2.msra.mxu0 0.0
        %1615 = vmatprep.subr.mxu0 0.0
        %1616 = vmatpush2.msra.mxu0 0.0
        %1617 = vmatprep.subr.mxu0 0.0
        %1618 = vmatpush2.msra.mxu0 0.0
        %1619 = vmatprep.subr.mxu0 0.0
        %1620 = vmatpush2.msra.mxu0 0.0
        %1621 = vmatprep.subr.mxu0 0.0
        %1622 = vmatpush2.msra.mxu0 0.0
        %1623 = vmatprep.subr.mxu0 0.0
        %1624 = vmatpush2.msra.mxu0 0.0
        %1625 = vmatprep.subr.mxu0 0.0
        %1626 = vmatpush2.msra.mxu0 0.0
        %1627 = vmatprep.subr.mxu0 0.0
        %1628 = vmatpush2.msra.mxu0 0.0
        %1629 = vmatprep.subr.mxu0 0.0
        %1630 = vmatpush2.msra.mxu0 0.0
        %1631 = vmatprep.subr.mxu0 0.0
        %1632 = vmatpush2.msra.mxu0 0.0
        %1633 = vmatprep.subr.mxu0 0.0
        %1634 = vmatpush2.msra.mxu0 0.0
        %1635 = vmatprep.mubr.f32.mxu0 0.0
        %1636 = vmatmul.mubr.f32.gmra.mxu0 %v595
        %v1637 = vpop.f32.mrf.mxu0
        %v1638 = vadd.f32 %v1393, %v1637
        %v1639 = vpop.f32.mrf.mxu0
        %1640 = vmatprep.mubr.f32.mxu0 0.0
        %1641 = vmatmul.mubr.f32.gmra.mxu0 %v596
        %v1642 = vpop.f32.mrf.mxu0
        %v1643 = vadd.f32 %v1398, %v1642
        %v1644 = vpop.f32.mrf.mxu0
        %1645 = vmatprep.mubr.f32.mxu0 0.0
        %1646 = vmatmul.mubr.f32.gmra.mxu0 %v597
        %v1647 = vpop.f32.mrf.mxu0
        %v1648 = vadd.f32 %v1403, %v1647
        %v1649 = vpop.f32.mrf.mxu0
        %1650 = vmatprep.mubr.f32.mxu0 0.0
        %1651 = vmatmul.mubr.f32.gmra.mxu0 %v598
        %v1652 = vpop.f32.mrf.mxu0
        %v1653 = vadd.f32 %v1408, %v1652
        %v1654 = vpop.f32.mrf.mxu0
        %1655 = vmatprep.mubr.f32.mxu0 0.0
        %1656 = vmatmul.mubr.f32.gmra.mxu0 %v599
        %v1657 = vpop.f32.mrf.mxu0
        %v1658 = vadd.f32 %v1413, %v1657
        %v1659 = vpop.f32.mrf.mxu0
        %1660 = vmatprep.mubr.f32.mxu0 0.0
        %1661 = vmatmul.mubr.f32.gmra.mxu0 %v600
        %v1662 = vpop.f32.mrf.mxu0
        %v1663 = vadd.f32 %v1418, %v1662
        %v1664 = vpop.f32.mrf.mxu0
        %1665 = vmatprep.mubr.f32.mxu0 0.0
        %1666 = vmatmul.mubr.f32.gmra.mxu0 %v601
        %v1667 = vpop.f32.mrf.mxu0
        %v1668 = vadd.f32 %v1423, %v1667
        %v1669 = vpop.f32.mrf.mxu0
        %1670 = vmatprep.mubr.f32.mxu0 0.0
        %1671 = vmatmul.mubr.f32.gmra.mxu0 %v602
        %v1672 = vpop.f32.mrf.mxu0
        %v1673 = vadd.f32 %v1428, %v1672
        %v1674 = vpop.f32.mrf.mxu0
        %1675 = vmatprep.mubr.f32.mxu0 0.0
        %1676 = vmatmul.mubr.f32.gmra.mxu0 %v603
        %v1677 = vpop.f32.mrf.mxu0
        %v1678 = vadd.f32 %v1433, %v1677
        %v1679 = vpop.f32.mrf.mxu0
        %1680 = vmatprep.mubr.f32.mxu0 0.0
        %1681 = vmatmul.mubr.f32.gmra.mxu0 %v604
        %v1682 = vpop.f32.mrf.mxu0
        %v1683 = vadd.f32 %v1438, %v1682
        %v1684 = vpop.f32.mrf.mxu0
        %1685 = vmatprep.mubr.f32.mxu0 0.0
        %1686 = vmatmul.mubr.f32.gmra.mxu0 %v605
        %v1687 = vpop.f32.mrf.mxu0
        %v1688 = vadd.f32 %v1443, %v1687
        %v1689 = vpop.f32.mrf.mxu0
        %1690 = vmatprep.mubr.f32.mxu0 0.0
        %1691 = vmatmul.mubr.f32.gmra.mxu0 %v606
        %v1692 = vpop.f32.mrf.mxu0
        %v1693 = vadd.f32 %v1448, %v1692
        %v1694 = vpop.f32.mrf.mxu0
        %1695 = vmatprep.mubr.f32.mxu0 0.0
        %1696 = vmatmul.mubr.f32.gmra.mxu0 %v607
        %v1697 = vpop.f32.mrf.mxu0
        %v1698 = vadd.f32 %v1453, %v1697
        %v1699 = vpop.f32.mrf.mxu0
        %1700 = vmatprep.mubr.f32.mxu0 0.0
        %1701 = vmatmul.mubr.f32.gmra.mxu0 %v608
        %v1702 = vpop.f32.mrf.mxu0
        %v1703 = vadd.f32 %v1458, %v1702
        %v1704 = vpop.f32.mrf.mxu0
        %1705 = vmatprep.mubr.f32.mxu0 0.0
        %1706 = vmatmul.mubr.f32.gmra.mxu0 %v609
        %v1707 = vpop.f32.mrf.mxu0
        %v1708 = vadd.f32 %v1463, %v1707
        %v1709 = vpop.f32.mrf.mxu0
        %1710 = vmatprep.mubr.f32.mxu0 0.0
        %1711 = vmatmul.mubr.f32.gmra.mxu0 %v610
        %v1712 = vpop.f32.mrf.mxu0
        %v1713 = vadd.f32 %v1468, %v1712
        %v1714 = vpop.f32.mrf.mxu0
        %1715 = vmatprep.mubr.f32.mxu0 0.0
        %1716 = vmatmul.mubr.f32.gmra.mxu0 %v611
        %v1717 = vpop.f32.mrf.mxu0
        %v1718 = vadd.f32 %v1473, %v1717
        %v1719 = vpop.f32.mrf.mxu0
        %1720 = vmatprep.mubr.f32.mxu0 0.0
        %1721 = vmatmul.mubr.f32.gmra.mxu0 %v612
        %v1722 = vpop.f32.mrf.mxu0
        %v1723 = vadd.f32 %v1478, %v1722
        %v1724 = vpop.f32.mrf.mxu0
        %1725 = vmatprep.mubr.f32.mxu0 0.0
        %1726 = vmatmul.mubr.f32.gmra.mxu0 %v613
        %v1727 = vpop.f32.mrf.mxu0
        %v1728 = vadd.f32 %v1483, %v1727
        %v1729 = vpop.f32.mrf.mxu0
        %1730 = vmatprep.mubr.f32.mxu0 0.0
        %1731 = vmatmul.mubr.f32.gmra.mxu0 %v614
        %v1732 = vpop.f32.mrf.mxu0
        %v1733 = vadd.f32 %v1488, %v1732
        %v1734 = vpop.f32.mrf.mxu0
        %1735 = vmatprep.mubr.f32.mxu0 0.0
        %1736 = vmatmul.mubr.f32.gmra.mxu0 %v615
        %v1737 = vpop.f32.mrf.mxu0
        %v1738 = vadd.f32 %v1493, %v1737
        %v1739 = vpop.f32.mrf.mxu0
        %1740 = vmatprep.mubr.f32.mxu0 0.0
        %1741 = vmatmul.mubr.f32.gmra.mxu0 %v616
        %v1742 = vpop.f32.mrf.mxu0
        %v1743 = vadd.f32 %v1498, %v1742
        %v1744 = vpop.f32.mrf.mxu0
        %1745 = vmatprep.mubr.f32.mxu0 0.0
        %1746 = vmatmul.mubr.f32.gmra.mxu0 %v617
        %v1747 = vpop.f32.mrf.mxu0
        %v1748 = vadd.f32 %v1503, %v1747
        %v1749 = vpop.f32.mrf.mxu0
        %1750 = vmatprep.mubr.f32.mxu0 0.0
        %1751 = vmatmul.mubr.f32.gmra.mxu0 %v618
        %v1752 = vpop.f32.mrf.mxu0
        %v1753 = vadd.f32 %v1508, %v1752
        %v1754 = vpop.f32.mrf.mxu0
        %1755 = vmatprep.mubr.f32.mxu0 0.0
        %1756 = vmatmul.mubr.f32.gmra.mxu0 %v619
        %v1757 = vpop.f32.mrf.mxu0
        %v1758 = vadd.f32 %v1513, %v1757
        %v1759 = vpop.f32.mrf.mxu0
        %1760 = vmatprep.mubr.f32.mxu0 0.0
        %1761 = vmatmul.mubr.f32.gmra.mxu0 %v620
        %v1762 = vpop.f32.mrf.mxu0
        %v1763 = vadd.f32 %v1518, %v1762
        %v1764 = vpop.f32.mrf.mxu0
        %1765 = vmatprep.mubr.f32.mxu0 0.0
        %1766 = vmatmul.mubr.f32.gmra.mxu0 %v621
        %v1767 = vpop.f32.mrf.mxu0
        %v1768 = vadd.f32 %v1523, %v1767
        %v1769 = vpop.f32.mrf.mxu0
        %1770 = vmatprep.mubr.f32.mxu0 0.0
        %1771 = vmatmul.mubr.f32.gmra.mxu0 %v622
        %v1772 = vpop.f32.mrf.mxu0
        %v1773 = vadd.f32 %v1528, %v1772
        %v1774 = vpop.f32.mrf.mxu0
        %1775 = vmatprep.mubr.f32.mxu0 0.0
        %1776 = vmatmul.mubr.f32.gmra.mxu0 %v623
        %v1777 = vpop.f32.mrf.mxu0
        %v1778 = vadd.f32 %v1533, %v1777
        %v1779 = vpop.f32.mrf.mxu0
        %1780 = vmatprep.mubr.f32.mxu0 0.0
        %1781 = vmatmul.mubr.f32.gmra.mxu0 %v624
        %v1782 = vpop.f32.mrf.mxu0
        %v1783 = vadd.f32 %v1538, %v1782
        %v1784 = vpop.f32.mrf.mxu0
        %1785 = vmatprep.mubr.f32.mxu0 0.0
        %1786 = vmatmul.mubr.f32.gmra.mxu0 %v625
        %v1787 = vpop.f32.mrf.mxu0
        %v1788 = vadd.f32 %v1543, %v1787
        %v1789 = vpop.f32.mrf.mxu0
        %1790 = vmatprep.mubr.f32.mxu0 0.0
        %1791 = vmatmul.mubr.f32.gmra.mxu0 %v626
        %v1792 = vpop.f32.mrf.mxu0
        %v1793 = vadd.f32 %v1548, %v1792
        %v1794 = vpop.f32.mrf.mxu0
        %1795 = vmatprep.mubr.f32.mxu0 0.0
        %1796 = vmatmul.mubr.f32.gmra.mxu0 %v627
        %v1797 = vpop.f32.mrf.mxu0
        %v1798 = vadd.f32 %v1553, %v1797
        %v1799 = vpop.f32.mrf.mxu0
        %1800 = vmatprep.mubr.f32.mxu0 0.0
        %1801 = vmatmul.mubr.f32.gmra.mxu0 %v628
        %v1802 = vpop.f32.mrf.mxu0
        %v1803 = vadd.f32 %v1558, %v1802
        %v1804 = vpop.f32.mrf.mxu0
        %1805 = vmatprep.mubr.f32.mxu0 0.0
        %1806 = vmatmul.mubr.f32.gmra.mxu0 %v629
        %v1807 = vpop.f32.mrf.mxu0
        %v1808 = vadd.f32 %v1563, %v1807
        %v1809 = vpop.f32.mrf.mxu0
        %1810 = vmatprep.mubr.f32.mxu0 0.0
        %1811 = vmatmul.mubr.f32.gmra.mxu0 %v630
        %v1812 = vpop.f32.mrf.mxu0
        %v1813 = vadd.f32 %v1568, %v1812
        %v1814 = vpop.f32.mrf.mxu0
        %1815 = vdwg.mxu0
        %v1816 = vld [vmem:[%s427] sm:$0xff]
        %v1817 = vld [vmem:[%s427 + $0x8] sm:$0xff]
        %v1818 = vld [vmem:[%s427 + $0x18] sm:$0xff]
        %v1819 = vld [vmem:[%s427 + $0x20] sm:$0xff]
        %v1820 = vld [vmem:[%s427 + $0x30] sm:$0xff]
        %v1821 = vld [vmem:[%s427 + $0x38] sm:$0xff]
        %v1822 = vld [vmem:[%s427 + $0x48] sm:$0xff]
        %v1823 = vld [vmem:[%s427 + $0x50] sm:$0xff]
        %v1824 = vld [vmem:[%s427 + $0x60] sm:$0xff]
        %v1825 = vld [vmem:[%s427 + $0x68] sm:$0xff]
        %v1826 = vld [vmem:[%s427 + $0x78] sm:$0xff]
        %v1827 = vld [vmem:[%s427 + $0x80] sm:$0xff]
        %v1828 = vld [vmem:[%s427 + $0x90] sm:$0xff]
        %v1829 = vld [vmem:[%s427 + $0x98] sm:$0xff]
        %v1830 = vld [vmem:[%s427 + $0xa8] sm:$0xff]
        %v1831 = vld [vmem:[%s427 + $0xb0] sm:$0xff]
        %v1832 = vld [vmem:[%s427 + $0xc0] sm:$0xff]
        %v1833 = vld [vmem:[%s427 + $0xc8] sm:$0xff]
        %v1834 = vld [vmem:[%s427 + $0xd8] sm:$0xff]
        %v1835 = vld [vmem:[%s427 + $0xe0] sm:$0xff]
        %v1836 = vld [vmem:[%s427 + $0xf0] sm:$0xff]
        %v1837 = vld [vmem:[%s427 + $0xf8] sm:$0xff]
        %v1838 = vld [vmem:[%s427 + $0x108] sm:$0xff]
        %v1839 = vld [vmem:[%s427 + $0x110] sm:$0xff]
        %v1840 = vld [vmem:[%s427 + $0x120] sm:$0xff]
        %v1841 = vld [vmem:[%s427 + $0x128] sm:$0xff]
        %v1842 = vld [vmem:[%s427 + $0x138] sm:$0xff]
        %v1843 = vld [vmem:[%s427 + $0x140] sm:$0xff]
        %v1844 = vld [vmem:[%s427 + $0x150] sm:$0xff]
        %v1845 = vld [vmem:[%s427 + $0x158] sm:$0xff]
        %v1846 = vld [vmem:[%s427 + $0x168] sm:$0xff]
        %v1847 = vld [vmem:[%s427 + $0x170] sm:$0xff]
        %v1848 = vld [vmem:[%s427 + $0x180] sm:$0xff]
        %v1849 = vld [vmem:[%s427 + $0x188] sm:$0xff]
        %v1850 = vld [vmem:[%s427 + $0x198] sm:$0xff]
        %v1851 = vld [vmem:[%s427 + $0x1a0] sm:$0xff]
        %v1852 = vld [vmem:[%s427 + $0x1] sm:$0xff]
        %v1853 = vld [vmem:[%s427 + $0x9] sm:$0xff]
        %v1854 = vld [vmem:[%s427 + $0x19] sm:$0xff]
        %v1855 = vld [vmem:[%s427 + $0x21] sm:$0xff]
        %v1856 = vld [vmem:[%s427 + $0x31] sm:$0xff]
        %v1857 = vld [vmem:[%s427 + $0x39] sm:$0xff]
        %v1858 = vld [vmem:[%s427 + $0x49] sm:$0xff]
        %v1859 = vld [vmem:[%s427 + $0x51] sm:$0xff]
        %v1860 = vld [vmem:[%s427 + $0x61] sm:$0xff]
        %v1861 = vld [vmem:[%s427 + $0x69] sm:$0xff]
        %v1862 = vld [vmem:[%s427 + $0x79] sm:$0xff]
        %v1863 = vld [vmem:[%s427 + $0x81] sm:$0xff]
        %v1864 = vld [vmem:[%s427 + $0x91] sm:$0xff]
        %v1865 = vld [vmem:[%s427 + $0x99] sm:$0xff]
        %v1866 = vld [vmem:[%s427 + $0xa9] sm:$0xff]
        %v1867 = vld [vmem:[%s427 + $0xb1] sm:$0xff]
        %v1868 = vld [vmem:[%s427 + $0xc1] sm:$0xff]
        %v1869 = vld [vmem:[%s427 + $0xc9] sm:$0xff]
        %v1870 = vld [vmem:[%s427 + $0xd9] sm:$0xff]
        %v1871 = vld [vmem:[%s427 + $0xe1] sm:$0xff]
        %v1872 = vld [vmem:[%s427 + $0xf1] sm:$0xff]
        %v1873 = vld [vmem:[%s427 + $0xf9] sm:$0xff]
        %v1874 = vld [vmem:[%s427 + $0x109] sm:$0xff]
        %v1875 = vld [vmem:[%s427 + $0x111] sm:$0xff]
        %v1876 = vld [vmem:[%s427 + $0x121] sm:$0xff]
        %v1877 = vld [vmem:[%s427 + $0x129] sm:$0xff]
        %v1878 = vld [vmem:[%s427 + $0x139] sm:$0xff]
        %v1879 = vld [vmem:[%s427 + $0x141] sm:$0xff]
        %v1880 = vld [vmem:[%s427 + $0x151] sm:$0xff]
        %v1881 = vld [vmem:[%s427 + $0x159] sm:$0xff]
        %v1882 = vld [vmem:[%s427 + $0x169] sm:$0xff]
        %v1883 = vld [vmem:[%s427 + $0x171] sm:$0xff]
        %v1884 = vld [vmem:[%s427 + $0x181] sm:$0xff]
        %v1885 = vld [vmem:[%s427 + $0x189] sm:$0xff]
        %v1886 = vld [vmem:[%s427 + $0x199] sm:$0xff]
        %v1887 = vld [vmem:[%s427 + $0x1a1] sm:$0xff]
        %v1888 = vld [vmem:[%s427 + $0x2] sm:$0xff]
        %v1889 = vld [vmem:[%s427 + $0xa] sm:$0xff]
        %v1890 = vld [vmem:[%s427 + $0x1a] sm:$0xff]
        %v1891 = vld [vmem:[%s427 + $0x22] sm:$0xff]
        %v1892 = vld [vmem:[%s427 + $0x32] sm:$0xff]
        %v1893 = vld [vmem:[%s427 + $0x3a] sm:$0xff]
        %v1894 = vld [vmem:[%s427 + $0x4a] sm:$0xff]
        %v1895 = vld [vmem:[%s427 + $0x52] sm:$0xff]
        %v1896 = vld [vmem:[%s427 + $0x62] sm:$0xff]
        %v1897 = vld [vmem:[%s427 + $0x6a] sm:$0xff]
        %v1898 = vld [vmem:[%s427 + $0x7a] sm:$0xff]
        %v1899 = vld [vmem:[%s427 + $0x82] sm:$0xff]
        %v1900 = vld [vmem:[%s427 + $0x92] sm:$0xff]
        %v1901 = vld [vmem:[%s427 + $0x9a] sm:$0xff]
        %v1902 = vld [vmem:[%s427 + $0xaa] sm:$0xff]
        %v1903 = vld [vmem:[%s427 + $0xb2] sm:$0xff]
        %v1904 = vld [vmem:[%s427 + $0xc2] sm:$0xff]
        %v1905 = vld [vmem:[%s427 + $0xca] sm:$0xff]
        %v1906 = vld [vmem:[%s427 + $0xda] sm:$0xff]
        %v1907 = vld [vmem:[%s427 + $0xe2] sm:$0xff]
        %v1908 = vld [vmem:[%s427 + $0xf2] sm:$0xff]
        %v1909 = vld [vmem:[%s427 + $0xfa] sm:$0xff]
        %v1910 = vld [vmem:[%s427 + $0x10a] sm:$0xff]
        %v1911 = vld [vmem:[%s427 + $0x112] sm:$0xff]
        %v1912 = vld [vmem:[%s427 + $0x122] sm:$0xff]
        %v1913 = vld [vmem:[%s427 + $0x12a] sm:$0xff]
        %v1914 = vld [vmem:[%s427 + $0x13a] sm:$0xff]
        %v1915 = vld [vmem:[%s427 + $0x142] sm:$0xff]
        %v1916 = vld [vmem:[%s427 + $0x152] sm:$0xff]
        %v1917 = vld [vmem:[%s427 + $0x15a] sm:$0xff]
        %v1918 = vld [vmem:[%s427 + $0x16a] sm:$0xff]
        %v1919 = vld [vmem:[%s427 + $0x172] sm:$0xff]
        %v1920 = vld [vmem:[%s427 + $0x182] sm:$0xff]
        %v1921 = vld [vmem:[%s427 + $0x18a] sm:$0xff]
        %v1922 = vld [vmem:[%s427 + $0x19a] sm:$0xff]
        %v1923 = vld [vmem:[%s427 + $0x1a2] sm:$0xff]
        %v1924 = vld [vmem:[#allocation7 + $0x300] sm:$0xff]
        %v1925 = vld [vmem:[#allocation7 + $0x308] sm:$0xff]
        %v1926 = vld [vmem:[#allocation7 + $0x310] sm:$0xff]
        %v1927 = vld [vmem:[#allocation7 + $0x318] sm:$0xff]
        %v1928 = vld [vmem:[#allocation7 + $0x320] sm:$0xff]
        %v1929 = vld [vmem:[#allocation7 + $0x328] sm:$0xff]
        %v1930 = vld [vmem:[#allocation7 + $0x330] sm:$0xff]
        %v1931 = vld [vmem:[#allocation7 + $0x338] sm:$0xff]
        %v1932 = vld [vmem:[#allocation7 + $0x340] sm:$0xff]
        %v1933 = vld [vmem:[#allocation7 + $0x348] sm:$0xff]
        %v1934 = vld [vmem:[#allocation7 + $0x350] sm:$0xff]
        %v1935 = vld [vmem:[#allocation7 + $0x358] sm:$0xff]
        %v1936 = vld [vmem:[#allocation7 + $0x360] sm:$0xff]
        %v1937 = vld [vmem:[#allocation7 + $0x368] sm:$0xff]
        %v1938 = vld [vmem:[#allocation7 + $0x370] sm:$0xff]
        %v1939 = vld [vmem:[#allocation7 + $0x378] sm:$0xff]
        %v1940 = vld [vmem:[#allocation7 + $0x380] sm:$0xff]
        %v1941 = vld [vmem:[#allocation7 + $0x388] sm:$0xff]
        %v1942 = vld [vmem:[#allocation7 + $0x390] sm:$0xff]
        %v1943 = vld [vmem:[#allocation7 + $0x398] sm:$0xff]
        %v1944 = vld [vmem:[#allocation7 + $0x3a0] sm:$0xff]
        %v1945 = vld [vmem:[#allocation7 + $0x3a8] sm:$0xff]
        %v1946 = vld [vmem:[#allocation7 + $0x3b0] sm:$0xff]
        %v1947 = vld [vmem:[#allocation7 + $0x3b8] sm:$0xff]
        %v1948 = vld [vmem:[#allocation7 + $0x3c0] sm:$0xff]
        %v1949 = vld [vmem:[#allocation7 + $0x3c8] sm:$0xff]
        %v1950 = vld [vmem:[#allocation7 + $0x3d0] sm:$0xff]
        %v1951 = vld [vmem:[#allocation7 + $0x3d8] sm:$0xff]
        %v1952 = vld [vmem:[#allocation7 + $0x3e0] sm:$0xff]
        %v1953 = vld [vmem:[#allocation7 + $0x3e8] sm:$0xff]
        %v1954 = vld [vmem:[#allocation7 + $0x3f0] sm:$0xff]
        %v1955 = vld [vmem:[#allocation7 + $0x3f8] sm:$0xff]
        %v1956 = vld [vmem:[#allocation7 + $0x400] sm:$0xff]
        %v1957 = vld [vmem:[#allocation7 + $0x408] sm:$0xff]
        %v1958 = vld [vmem:[#allocation7 + $0x410] sm:$0xff]
        %v1959 = vld [vmem:[#allocation7 + $0x418] sm:$0xff]
        %v1960 = vld [vmem:[#allocation7 + $0x420] sm:$0xff]
        %v1961 = vld [vmem:[#allocation7 + $0x428] sm:$0xff]
        %v1962 = vld [vmem:[#allocation7 + $0x430] sm:$0xff]
        %v1963 = vld [vmem:[#allocation7 + $0x438] sm:$0xff]
        %v1964 = vld [vmem:[#allocation7 + $0x440] sm:$0xff]
        %v1965 = vld [vmem:[#allocation7 + $0x448] sm:$0xff]
        %v1966 = vld [vmem:[#allocation7 + $0x450] sm:$0xff]
        %v1967 = vld [vmem:[#allocation7 + $0x458] sm:$0xff]
        %v1968 = vld [vmem:[#allocation7 + $0x460] sm:$0xff]
        %v1969 = vld [vmem:[#allocation7 + $0x468] sm:$0xff]
        %v1970 = vld [vmem:[#allocation7 + $0x470] sm:$0xff]
        %v1971 = vld [vmem:[#allocation7 + $0x478] sm:$0xff]
        %1972 = vmatprep.subr.mxu0 0.0
        %1973 = vmatpush1.msra.mxu0 %v1939
        %1974 = vmatprep.subr.mxu0 0.0
        %1975 = vmatpush1.msra.mxu0 %v1938
        %1976 = vmatprep.subr.mxu0 0.0
        %1977 = vmatpush1.msra.mxu0 %v1937
        %1978 = vmatprep.subr.mxu0 0.0
        %1979 = vmatpush1.msra.mxu0 %v1936
        %1980 = vmatprep.subr.mxu0 0.0
        %1981 = vmatpush1.msra.mxu0 %v1935
        %1982 = vmatprep.subr.mxu0 0.0
        %1983 = vmatpush1.msra.mxu0 %v1934
        %1984 = vmatprep.subr.mxu0 0.0
        %1985 = vmatpush1.msra.mxu0 %v1933
        %1986 = vmatprep.subr.mxu0 0.0
        %1987 = vmatpush1.msra.mxu0 %v1932
        %1988 = vmatprep.subr.mxu0 0.0
        %1989 = vmatpush1.msra.mxu0 %v1931
        %1990 = vmatprep.subr.mxu0 0.0
        %1991 = vmatpush1.msra.mxu0 %v1930
        %1992 = vmatprep.subr.mxu0 0.0
        %1993 = vmatpush1.msra.mxu0 %v1929
        %1994 = vmatprep.subr.mxu0 0.0
        %1995 = vmatpush1.msra.mxu0 %v1928
        %1996 = vmatprep.subr.mxu0 0.0
        %1997 = vmatpush1.msra.mxu0 %v1927
        %1998 = vmatprep.subr.mxu0 0.0
        %1999 = vmatpush1.msra.mxu0 %v1926
        %2000 = vmatprep.subr.mxu0 0.0
        %2001 = vmatpush1.msra.mxu0 %v1925
        %2002 = vmatprep.subr.mxu0 0.0
        %2003 = vmatpush1.msra.mxu0 %v1924
        %2004 = vmatprep.subr.mxu0 0.0
        %2005 = vmatpush2.msra.mxu0 %v1955
        %2006 = vmatprep.subr.mxu0 0.0
        %2007 = vmatpush2.msra.mxu0 %v1954
        %2008 = vmatprep.subr.mxu0 0.0
        %2009 = vmatpush2.msra.mxu0 %v1953
        %2010 = vmatprep.subr.mxu0 0.0
        %2011 = vmatpush2.msra.mxu0 %v1952
        %2012 = vmatprep.subr.mxu0 0.0
        %2013 = vmatpush2.msra.mxu0 %v1951
        %2014 = vmatprep.subr.mxu0 0.0
        %2015 = vmatpush2.msra.mxu0 %v1950
        %2016 = vmatprep.subr.mxu0 0.0
        %2017 = vmatpush2.msra.mxu0 %v1949
        %2018 = vmatprep.subr.mxu0 0.0
        %2019 = vmatpush2.msra.mxu0 %v1948
        %2020 = vmatprep.subr.mxu0 0.0
        %2021 = vmatpush2.msra.mxu0 %v1947
        %2022 = vmatprep.subr.mxu0 0.0
        %2023 = vmatpush2.msra.mxu0 %v1946
        %2024 = vmatprep.subr.mxu0 0.0
        %2025 = vmatpush2.msra.mxu0 %v1945
        %2026 = vmatprep.subr.mxu0 0.0
        %2027 = vmatpush2.msra.mxu0 %v1944
        %2028 = vmatprep.subr.mxu0 0.0
        %2029 = vmatpush2.msra.mxu0 %v1943
        %2030 = vmatprep.subr.mxu0 0.0
        %2031 = vmatpush2.msra.mxu0 %v1942
        %2032 = vmatprep.subr.mxu0 0.0
        %2033 = vmatpush2.msra.mxu0 %v1941
        %2034 = vmatprep.subr.mxu0 0.0
        %2035 = vmatpush2.msra.mxu0 %v1940
        %2036 = vmatprep.mubr.f32.mxu0 %v1852
        %2037 = vmatmul.mubr.f32.gmra.mxu0 %v1816
        %v2038 = vpop.f32.mrf.mxu0
        %v2039 = vadd.f32 0.0, %v2038
        %v2040 = vpop.f32.mrf.mxu0
        %2041 = vmatprep.mubr.f32.mxu0 %v1853
        %2042 = vmatmul.mubr.f32.gmra.mxu0 %v1817
        %v2043 = vpop.f32.mrf.mxu0
        %v2044 = vadd.f32 0.0, %v2043
        %v2045 = vpop.f32.mrf.mxu0
        %2046 = vmatprep.mubr.f32.mxu0 %v1854
        %2047 = vmatmul.mubr.f32.gmra.mxu0 %v1818
        %v2048 = vpop.f32.mrf.mxu0
        %v2049 = vadd.f32 0.0, %v2048
        %v2050 = vpop.f32.mrf.mxu0
        %2051 = vmatprep.mubr.f32.mxu0 %v1855
        %2052 = vmatmul.mubr.f32.gmra.mxu0 %v1819
        %v2053 = vpop.f32.mrf.mxu0
        %v2054 = vadd.f32 0.0, %v2053
        %v2055 = vpop.f32.mrf.mxu0
        %2056 = vmatprep.mubr.f32.mxu0 %v1856
        %2057 = vmatmul.mubr.f32.gmra.mxu0 %v1820
        %v2058 = vpop.f32.mrf.mxu0
        %v2059 = vadd.f32 0.0, %v2058
        %v2060 = vpop.f32.mrf.mxu0
        %2061 = vmatprep.mubr.f32.mxu0 %v1857
        %2062 = vmatmul.mubr.f32.gmra.mxu0 %v1821
        %v2063 = vpop.f32.mrf.mxu0
        %v2064 = vadd.f32 0.0, %v2063
        %v2065 = vpop.f32.mrf.mxu0
        %2066 = vmatprep.mubr.f32.mxu0 %v1858
        %2067 = vmatmul.mubr.f32.gmra.mxu0 %v1822
        %v2068 = vpop.f32.mrf.mxu0
        %v2069 = vadd.f32 0.0, %v2068
        %v2070 = vpop.f32.mrf.mxu0
        %2071 = vmatprep.mubr.f32.mxu0 %v1859
        %2072 = vmatmul.mubr.f32.gmra.mxu0 %v1823
        %v2073 = vpop.f32.mrf.mxu0
        %v2074 = vadd.f32 0.0, %v2073
        %v2075 = vpop.f32.mrf.mxu0
        %2076 = vmatprep.mubr.f32.mxu0 %v1860
        %2077 = vmatmul.mubr.f32.gmra.mxu0 %v1824
        %v2078 = vpop.f32.mrf.mxu0
        %v2079 = vadd.f32 0.0, %v2078
        %v2080 = vpop.f32.mrf.mxu0
        %2081 = vmatprep.mubr.f32.mxu0 %v1861
        %2082 = vmatmul.mubr.f32.gmra.mxu0 %v1825
        %v2083 = vpop.f32.mrf.mxu0
        %v2084 = vadd.f32 0.0, %v2083
        %v2085 = vpop.f32.mrf.mxu0
        %2086 = vmatprep.mubr.f32.mxu0 %v1862
        %2087 = vmatmul.mubr.f32.gmra.mxu0 %v1826
        %v2088 = vpop.f32.mrf.mxu0
        %v2089 = vadd.f32 0.0, %v2088
        %v2090 = vpop.f32.mrf.mxu0
        %2091 = vmatprep.mubr.f32.mxu0 %v1863
        %2092 = vmatmul.mubr.f32.gmra.mxu0 %v1827
        %v2093 = vpop.f32.mrf.mxu0
        %v2094 = vadd.f32 0.0, %v2093
        %v2095 = vpop.f32.mrf.mxu0
        %2096 = vmatprep.mubr.f32.mxu0 %v1864
        %2097 = vmatmul.mubr.f32.gmra.mxu0 %v1828
        %v2098 = vpop.f32.mrf.mxu0
        %v2099 = vadd.f32 0.0, %v2098
        %v2100 = vpop.f32.mrf.mxu0
        %2101 = vmatprep.mubr.f32.mxu0 %v1865
        %2102 = vmatmul.mubr.f32.gmra.mxu0 %v1829
        %v2103 = vpop.f32.mrf.mxu0
        %v2104 = vadd.f32 0.0, %v2103
        %v2105 = vpop.f32.mrf.mxu0
        %2106 = vmatprep.mubr.f32.mxu0 %v1866
        %2107 = vmatmul.mubr.f32.gmra.mxu0 %v1830
        %v2108 = vpop.f32.mrf.mxu0
        %v2109 = vadd.f32 0.0, %v2108
        %v2110 = vpop.f32.mrf.mxu0
        %2111 = vmatprep.mubr.f32.mxu0 %v1867
        %2112 = vmatmul.mubr.f32.gmra.mxu0 %v1831
        %v2113 = vpop.f32.mrf.mxu0
        %v2114 = vadd.f32 0.0, %v2113
        %v2115 = vpop.f32.mrf.mxu0
        %2116 = vmatprep.mubr.f32.mxu0 %v1868
        %2117 = vmatmul.mubr.f32.gmra.mxu0 %v1832
        %v2118 = vpop.f32.mrf.mxu0
        %v2119 = vadd.f32 0.0, %v2118
        %v2120 = vpop.f32.mrf.mxu0
        %2121 = vmatprep.mubr.f32.mxu0 %v1869
        %2122 = vmatmul.mubr.f32.gmra.mxu0 %v1833
        %v2123 = vpop.f32.mrf.mxu0
        %v2124 = vadd.f32 0.0, %v2123
        %v2125 = vpop.f32.mrf.mxu0
        %2126 = vmatprep.mubr.f32.mxu0 %v1870
        %2127 = vmatmul.mubr.f32.gmra.mxu0 %v1834
        %v2128 = vpop.f32.mrf.mxu0
        %v2129 = vadd.f32 0.0, %v2128
        %v2130 = vpop.f32.mrf.mxu0
        %2131 = vmatprep.mubr.f32.mxu0 %v1871
        %2132 = vmatmul.mubr.f32.gmra.mxu0 %v1835
        %v2133 = vpop.f32.mrf.mxu0
        %v2134 = vadd.f32 0.0, %v2133
        %v2135 = vpop.f32.mrf.mxu0
        %2136 = vmatprep.mubr.f32.mxu0 %v1872
        %2137 = vmatmul.mubr.f32.gmra.mxu0 %v1836
        %v2138 = vpop.f32.mrf.mxu0
        %v2139 = vadd.f32 0.0, %v2138
        %v2140 = vpop.f32.mrf.mxu0
        %2141 = vmatprep.mubr.f32.mxu0 %v1873
        %2142 = vmatmul.mubr.f32.gmra.mxu0 %v1837
        %v2143 = vpop.f32.mrf.mxu0
        %v2144 = vadd.f32 0.0, %v2143
        %v2145 = vpop.f32.mrf.mxu0
        %2146 = vmatprep.mubr.f32.mxu0 %v1874
        %2147 = vmatmul.mubr.f32.gmra.mxu0 %v1838
        %v2148 = vpop.f32.mrf.mxu0
        %v2149 = vadd.f32 0.0, %v2148
        %v2150 = vpop.f32.mrf.mxu0
        %2151 = vmatprep.mubr.f32.mxu0 %v1875
        %2152 = vmatmul.mubr.f32.gmra.mxu0 %v1839
        %v2153 = vpop.f32.mrf.mxu0
        %v2154 = vadd.f32 0.0, %v2153
        %v2155 = vpop.f32.mrf.mxu0
        %2156 = vmatprep.mubr.f32.mxu0 %v1876
        %2157 = vmatmul.mubr.f32.gmra.mxu0 %v1840
        %v2158 = vpop.f32.mrf.mxu0
        %v2159 = vadd.f32 0.0, %v2158
        %v2160 = vpop.f32.mrf.mxu0
        %2161 = vmatprep.mubr.f32.mxu0 %v1877
        %2162 = vmatmul.mubr.f32.gmra.mxu0 %v1841
        %v2163 = vpop.f32.mrf.mxu0
        %v2164 = vadd.f32 0.0, %v2163
        %v2165 = vpop.f32.mrf.mxu0
        %2166 = vmatprep.mubr.f32.mxu0 %v1878
        %2167 = vmatmul.mubr.f32.gmra.mxu0 %v1842
        %v2168 = vpop.f32.mrf.mxu0
        %v2169 = vadd.f32 0.0, %v2168
        %v2170 = vpop.f32.mrf.mxu0
        %2171 = vmatprep.mubr.f32.mxu0 %v1879
        %2172 = vmatmul.mubr.f32.gmra.mxu0 %v1843
        %v2173 = vpop.f32.mrf.mxu0
        %v2174 = vadd.f32 0.0, %v2173
        %v2175 = vpop.f32.mrf.mxu0
        %2176 = vmatprep.mubr.f32.mxu0 %v1880
        %2177 = vmatmul.mubr.f32.gmra.mxu0 %v1844
        %v2178 = vpop.f32.mrf.mxu0
        %v2179 = vadd.f32 0.0, %v2178
        %v2180 = vpop.f32.mrf.mxu0
        %2181 = vmatprep.mubr.f32.mxu0 %v1881
        %2182 = vmatmul.mubr.f32.gmra.mxu0 %v1845
        %v2183 = vpop.f32.mrf.mxu0
        %v2184 = vadd.f32 0.0, %v2183
        %v2185 = vpop.f32.mrf.mxu0
        %2186 = vmatprep.mubr.f32.mxu0 %v1882
        %2187 = vmatmul.mubr.f32.gmra.mxu0 %v1846
        %v2188 = vpop.f32.mrf.mxu0
        %v2189 = vadd.f32 0.0, %v2188
        %v2190 = vpop.f32.mrf.mxu0
        %2191 = vmatprep.mubr.f32.mxu0 %v1883
        %2192 = vmatmul.mubr.f32.gmra.mxu0 %v1847
        %v2193 = vpop.f32.mrf.mxu0
        %v2194 = vadd.f32 0.0, %v2193
        %v2195 = vpop.f32.mrf.mxu0
        %2196 = vmatprep.mubr.f32.mxu0 %v1884
        %2197 = vmatmul.mubr.f32.gmra.mxu0 %v1848
        %v2198 = vpop.f32.mrf.mxu0
        %v2199 = vadd.f32 0.0, %v2198
        %v2200 = vpop.f32.mrf.mxu0
        %2201 = vmatprep.mubr.f32.mxu0 %v1885
        %2202 = vmatmul.mubr.f32.gmra.mxu0 %v1849
        %v2203 = vpop.f32.mrf.mxu0
        %v2204 = vadd.f32 0.0, %v2203
        %v2205 = vpop.f32.mrf.mxu0
        %2206 = vmatprep.mubr.f32.mxu0 %v1886
        %2207 = vmatmul.mubr.f32.gmra.mxu0 %v1850
        %v2208 = vpop.f32.mrf.mxu0
        %v2209 = vadd.f32 0.0, %v2208
        %v2210 = vpop.f32.mrf.mxu0
        %2211 = vmatprep.mubr.f32.mxu0 %v1887
        %2212 = vmatmul.mubr.f32.gmra.mxu0 %v1851
        %v2213 = vpop.f32.mrf.mxu0
        %v2214 = vadd.f32 0.0, %v2213
        %v2215 = vpop.f32.mrf.mxu0
        %2216 = vdwg.mxu0
        %2217 = vmatprep.subr.mxu0 0.0
        %2218 = vmatpush1.msra.mxu0 %v1971
        %2219 = vmatprep.subr.mxu0 0.0
        %2220 = vmatpush1.msra.mxu0 %v1970
        %2221 = vmatprep.subr.mxu0 0.0
        %2222 = vmatpush1.msra.mxu0 %v1969
        %2223 = vmatprep.subr.mxu0 0.0
        %2224 = vmatpush1.msra.mxu0 %v1968
        %2225 = vmatprep.subr.mxu0 0.0
        %2226 = vmatpush1.msra.mxu0 %v1967
        %2227 = vmatprep.subr.mxu0 0.0
        %2228 = vmatpush1.msra.mxu0 %v1966
        %2229 = vmatprep.subr.mxu0 0.0
        %2230 = vmatpush1.msra.mxu0 %v1965
        %2231 = vmatprep.subr.mxu0 0.0
        %2232 = vmatpush1.msra.mxu0 %v1964
        %2233 = vmatprep.subr.mxu0 0.0
        %2234 = vmatpush1.msra.mxu0 %v1963
        %2235 = vmatprep.subr.mxu0 0.0
        %2236 = vmatpush1.msra.mxu0 %v1962
        %2237 = vmatprep.subr.mxu0 0.0
        %2238 = vmatpush1.msra.mxu0 %v1961
        %2239 = vmatprep.subr.mxu0 0.0
        %2240 = vmatpush1.msra.mxu0 %v1960
        %2241 = vmatprep.subr.mxu0 0.0
        %2242 = vmatpush1.msra.mxu0 %v1959
        %2243 = vmatprep.subr.mxu0 0.0
        %2244 = vmatpush1.msra.mxu0 %v1958
        %2245 = vmatprep.subr.mxu0 0.0
        %2246 = vmatpush1.msra.mxu0 %v1957
        %2247 = vmatprep.subr.mxu0 0.0
        %2248 = vmatpush1.msra.mxu0 %v1956
        %2249 = vmatprep.subr.mxu0 0.0
        %2250 = vmatpush2.msra.mxu0 0.0
        %2251 = vmatprep.subr.mxu0 0.0
        %2252 = vmatpush2.msra.mxu0 0.0
        %2253 = vmatprep.subr.mxu0 0.0
        %2254 = vmatpush2.msra.mxu0 0.0
        %2255 = vmatprep.subr.mxu0 0.0
        %2256 = vmatpush2.msra.mxu0 0.0
        %2257 = vmatprep.subr.mxu0 0.0
        %2258 = vmatpush2.msra.mxu0 0.0
        %2259 = vmatprep.subr.mxu0 0.0
        %2260 = vmatpush2.msra.mxu0 0.0
        %2261 = vmatprep.subr.mxu0 0.0
        %2262 = vmatpush2.msra.mxu0 0.0
        %2263 = vmatprep.subr.mxu0 0.0
        %2264 = vmatpush2.msra.mxu0 0.0
        %2265 = vmatprep.subr.mxu0 0.0
        %2266 = vmatpush2.msra.mxu0 0.0
        %2267 = vmatprep.subr.mxu0 0.0
        %2268 = vmatpush2.msra.mxu0 0.0
        %2269 = vmatprep.subr.mxu0 0.0
        %2270 = vmatpush2.msra.mxu0 0.0
        %2271 = vmatprep.subr.mxu0 0.0
        %2272 = vmatpush2.msra.mxu0 0.0
        %2273 = vmatprep.subr.mxu0 0.0
        %2274 = vmatpush2.msra.mxu0 0.0
        %2275 = vmatprep.subr.mxu0 0.0
        %2276 = vmatpush2.msra.mxu0 0.0
        %2277 = vmatprep.subr.mxu0 0.0
        %2278 = vmatpush2.msra.mxu0 0.0
        %2279 = vmatprep.subr.mxu0 0.0
        %2280 = vmatpush2.msra.mxu0 0.0
        %2281 = vmatprep.mubr.f32.mxu0 0.0
        %2282 = vmatmul.mubr.f32.gmra.mxu0 %v1888
        %v2283 = vpop.f32.mrf.mxu0
        %v2284 = vadd.f32 %v2039, %v2283
        %v2285 = vpop.f32.mrf.mxu0
        %2286 = vmatprep.mubr.f32.mxu0 0.0
        %2287 = vmatmul.mubr.f32.gmra.mxu0 %v1889
        %v2288 = vpop.f32.mrf.mxu0
        %v2289 = vadd.f32 %v2044, %v2288
        %v2290 = vpop.f32.mrf.mxu0
        %2291 = vmatprep.mubr.f32.mxu0 0.0
        %2292 = vmatmul.mubr.f32.gmra.mxu0 %v1890
        %v2293 = vpop.f32.mrf.mxu0
        %v2294 = vadd.f32 %v2049, %v2293
        %v2295 = vpop.f32.mrf.mxu0
        %2296 = vmatprep.mubr.f32.mxu0 0.0
        %2297 = vmatmul.mubr.f32.gmra.mxu0 %v1891
        %v2298 = vpop.f32.mrf.mxu0
        %v2299 = vadd.f32 %v2054, %v2298
        %v2300 = vpop.f32.mrf.mxu0
        %2301 = vmatprep.mubr.f32.mxu0 0.0
        %2302 = vmatmul.mubr.f32.gmra.mxu0 %v1892
        %v2303 = vpop.f32.mrf.mxu0
        %v2304 = vadd.f32 %v2059, %v2303
        %v2305 = vpop.f32.mrf.mxu0
        %2306 = vmatprep.mubr.f32.mxu0 0.0
        %2307 = vmatmul.mubr.f32.gmra.mxu0 %v1893
        %v2308 = vpop.f32.mrf.mxu0
        %v2309 = vadd.f32 %v2064, %v2308
        %v2310 = vpop.f32.mrf.mxu0
        %2311 = vmatprep.mubr.f32.mxu0 0.0
        %2312 = vmatmul.mubr.f32.gmra.mxu0 %v1894
        %v2313 = vpop.f32.mrf.mxu0
        %v2314 = vadd.f32 %v2069, %v2313
        %v2315 = vpop.f32.mrf.mxu0
        %2316 = vmatprep.mubr.f32.mxu0 0.0
        %2317 = vmatmul.mubr.f32.gmra.mxu0 %v1895
        %v2318 = vpop.f32.mrf.mxu0
        %v2319 = vadd.f32 %v2074, %v2318
        %v2320 = vpop.f32.mrf.mxu0
        %2321 = vmatprep.mubr.f32.mxu0 0.0
        %2322 = vmatmul.mubr.f32.gmra.mxu0 %v1896
        %v2323 = vpop.f32.mrf.mxu0
        %v2324 = vadd.f32 %v2079, %v2323
        %v2325 = vpop.f32.mrf.mxu0
        %2326 = vmatprep.mubr.f32.mxu0 0.0
        %2327 = vmatmul.mubr.f32.gmra.mxu0 %v1897
        %v2328 = vpop.f32.mrf.mxu0
        %v2329 = vadd.f32 %v2084, %v2328
        %v2330 = vpop.f32.mrf.mxu0
        %2331 = vmatprep.mubr.f32.mxu0 0.0
        %2332 = vmatmul.mubr.f32.gmra.mxu0 %v1898
        %v2333 = vpop.f32.mrf.mxu0
        %v2334 = vadd.f32 %v2089, %v2333
        %v2335 = vpop.f32.mrf.mxu0
        %2336 = vmatprep.mubr.f32.mxu0 0.0
        %2337 = vmatmul.mubr.f32.gmra.mxu0 %v1899
        %v2338 = vpop.f32.mrf.mxu0
        %v2339 = vadd.f32 %v2094, %v2338
        %v2340 = vpop.f32.mrf.mxu0
        %2341 = vmatprep.mubr.f32.mxu0 0.0
        %2342 = vmatmul.mubr.f32.gmra.mxu0 %v1900
        %v2343 = vpop.f32.mrf.mxu0
        %v2344 = vadd.f32 %v2099, %v2343
        %v2345 = vpop.f32.mrf.mxu0
        %2346 = vmatprep.mubr.f32.mxu0 0.0
        %2347 = vmatmul.mubr.f32.gmra.mxu0 %v1901
        %v2348 = vpop.f32.mrf.mxu0
        %v2349 = vadd.f32 %v2104, %v2348
        %v2350 = vpop.f32.mrf.mxu0
        %2351 = vmatprep.mubr.f32.mxu0 0.0
        %2352 = vmatmul.mubr.f32.gmra.mxu0 %v1902
        %v2353 = vpop.f32.mrf.mxu0
        %v2354 = vadd.f32 %v2109, %v2353
        %v2355 = vpop.f32.mrf.mxu0
        %2356 = vmatprep.mubr.f32.mxu0 0.0
        %2357 = vmatmul.mubr.f32.gmra.mxu0 %v1903
        %v2358 = vpop.f32.mrf.mxu0
        %v2359 = vadd.f32 %v2114, %v2358
        %v2360 = vpop.f32.mrf.mxu0
        %2361 = vmatprep.mubr.f32.mxu0 0.0
        %2362 = vmatmul.mubr.f32.gmra.mxu0 %v1904
        %v2363 = vpop.f32.mrf.mxu0
        %v2364 = vadd.f32 %v2119, %v2363
        %v2365 = vpop.f32.mrf.mxu0
        %2366 = vmatprep.mubr.f32.mxu0 0.0
        %2367 = vmatmul.mubr.f32.gmra.mxu0 %v1905
        %v2368 = vpop.f32.mrf.mxu0
        %v2369 = vadd.f32 %v2124, %v2368
        %v2370 = vpop.f32.mrf.mxu0
        %2371 = vmatprep.mubr.f32.mxu0 0.0
        %2372 = vmatmul.mubr.f32.gmra.mxu0 %v1906
        %v2373 = vpop.f32.mrf.mxu0
        %v2374 = vadd.f32 %v2129, %v2373
        %v2375 = vpop.f32.mrf.mxu0
        %2376 = vmatprep.mubr.f32.mxu0 0.0
        %2377 = vmatmul.mubr.f32.gmra.mxu0 %v1907
        %v2378 = vpop.f32.mrf.mxu0
        %v2379 = vadd.f32 %v2134, %v2378
        %v2380 = vpop.f32.mrf.mxu0
        %2381 = vmatprep.mubr.f32.mxu0 0.0
        %2382 = vmatmul.mubr.f32.gmra.mxu0 %v1908
        %v2383 = vpop.f32.mrf.mxu0
        %v2384 = vadd.f32 %v2139, %v2383
        %v2385 = vpop.f32.mrf.mxu0
        %2386 = vmatprep.mubr.f32.mxu0 0.0
        %2387 = vmatmul.mubr.f32.gmra.mxu0 %v1909
        %v2388 = vpop.f32.mrf.mxu0
        %v2389 = vadd.f32 %v2144, %v2388
        %v2390 = vpop.f32.mrf.mxu0
        %2391 = vmatprep.mubr.f32.mxu0 0.0
        %2392 = vmatmul.mubr.f32.gmra.mxu0 %v1910
        %v2393 = vpop.f32.mrf.mxu0
        %v2394 = vadd.f32 %v2149, %v2393
        %v2395 = vpop.f32.mrf.mxu0
        %2396 = vmatprep.mubr.f32.mxu0 0.0
        %2397 = vmatmul.mubr.f32.gmra.mxu0 %v1911
        %v2398 = vpop.f32.mrf.mxu0
        %v2399 = vadd.f32 %v2154, %v2398
        %v2400 = vpop.f32.mrf.mxu0
        %2401 = vmatprep.mubr.f32.mxu0 0.0
        %2402 = vmatmul.mubr.f32.gmra.mxu0 %v1912
        %v2403 = vpop.f32.mrf.mxu0
        %v2404 = vadd.f32 %v2159, %v2403
        %v2405 = vpop.f32.mrf.mxu0
        %2406 = vmatprep.mubr.f32.mxu0 0.0
        %2407 = vmatmul.mubr.f32.gmra.mxu0 %v1913
        %v2408 = vpop.f32.mrf.mxu0
        %v2409 = vadd.f32 %v2164, %v2408
        %v2410 = vpop.f32.mrf.mxu0
        %2411 = vmatprep.mubr.f32.mxu0 0.0
        %2412 = vmatmul.mubr.f32.gmra.mxu0 %v1914
        %v2413 = vpop.f32.mrf.mxu0
        %v2414 = vadd.f32 %v2169, %v2413
        %v2415 = vpop.f32.mrf.mxu0
        %2416 = vmatprep.mubr.f32.mxu0 0.0
        %2417 = vmatmul.mubr.f32.gmra.mxu0 %v1915
        %v2418 = vpop.f32.mrf.mxu0
        %v2419 = vadd.f32 %v2174, %v2418
        %v2420 = vpop.f32.mrf.mxu0
        %2421 = vmatprep.mubr.f32.mxu0 0.0
        %2422 = vmatmul.mubr.f32.gmra.mxu0 %v1916
        %v2423 = vpop.f32.mrf.mxu0
        %v2424 = vadd.f32 %v2179, %v2423
        %v2425 = vpop.f32.mrf.mxu0
        %2426 = vmatprep.mubr.f32.mxu0 0.0
        %2427 = vmatmul.mubr.f32.gmra.mxu0 %v1917
        %v2428 = vpop.f32.mrf.mxu0
        %v2429 = vadd.f32 %v2184, %v2428
        %v2430 = vpop.f32.mrf.mxu0
        %2431 = vmatprep.mubr.f32.mxu0 0.0
        %2432 = vmatmul.mubr.f32.gmra.mxu0 %v1918
        %v2433 = vpop.f32.mrf.mxu0
        %v2434 = vadd.f32 %v2189, %v2433
        %v2435 = vpop.f32.mrf.mxu0
        %2436 = vmatprep.mubr.f32.mxu0 0.0
        %2437 = vmatmul.mubr.f32.gmra.mxu0 %v1919
        %v2438 = vpop.f32.mrf.mxu0
        %v2439 = vadd.f32 %v2194, %v2438
        %v2440 = vpop.f32.mrf.mxu0
        %2441 = vmatprep.mubr.f32.mxu0 0.0
        %2442 = vmatmul.mubr.f32.gmra.mxu0 %v1920
        %v2443 = vpop.f32.mrf.mxu0
        %v2444 = vadd.f32 %v2199, %v2443
        %v2445 = vpop.f32.mrf.mxu0
        %2446 = vmatprep.mubr.f32.mxu0 0.0
        %2447 = vmatmul.mubr.f32.gmra.mxu0 %v1921
        %v2448 = vpop.f32.mrf.mxu0
        %v2449 = vadd.f32 %v2204, %v2448
        %v2450 = vpop.f32.mrf.mxu0
        %2451 = vmatprep.mubr.f32.mxu0 0.0
        %2452 = vmatmul.mubr.f32.gmra.mxu0 %v1922
        %v2453 = vpop.f32.mrf.mxu0
        %v2454 = vadd.f32 %v2209, %v2453
        %v2455 = vpop.f32.mrf.mxu0
        %2456 = vmatprep.mubr.f32.mxu0 0.0
        %2457 = vmatmul.mubr.f32.gmra.mxu0 %v1923
        %v2458 = vpop.f32.mrf.mxu0
        %v2459 = vadd.f32 %v2214, %v2458
        %v2460 = vpop.f32.mrf.mxu0
        %2461 = vdwg.mxu0
        %v2462 = vadd.f32 %v1638, %v2284
        %v2463 = vadd.f32 %v1643, %v2289
        %v2464 = vadd.f32 %v1648, %v2294
        %v2465 = vadd.f32 %v1653, %v2299
        %v2466 = vadd.f32 %v1658, %v2304
        %v2467 = vadd.f32 %v1663, %v2309
        %v2468 = vadd.f32 %v1668, %v2314
        %v2469 = vadd.f32 %v1673, %v2319
        %v2470 = vadd.f32 %v1678, %v2324
        %v2471 = vadd.f32 %v1683, %v2329
        %v2472 = vadd.f32 %v1688, %v2334
        %v2473 = vadd.f32 %v1693, %v2339
        %v2474 = vadd.f32 %v1698, %v2344
        %v2475 = vadd.f32 %v1703, %v2349
        %v2476 = vadd.f32 %v1708, %v2354
        %v2477 = vadd.f32 %v1713, %v2359
        %v2478 = vadd.f32 %v1718, %v2364
        %v2479 = vadd.f32 %v1723, %v2369
        %v2480 = vadd.f32 %v1728, %v2374
        %v2481 = vadd.f32 %v1733, %v2379
        %v2482 = vadd.f32 %v1738, %v2384
        %v2483 = vadd.f32 %v1743, %v2389
        %v2484 = vadd.f32 %v1748, %v2394
        %v2485 = vadd.f32 %v1753, %v2399
        %v2486 = vadd.f32 %v1758, %v2404
        %v2487 = vadd.f32 %v1763, %v2409
        %v2488 = vadd.f32 %v1768, %v2414
        %v2489 = vadd.f32 %v1773, %v2419
        %v2490 = vadd.f32 %v1778, %v2424
        %v2491 = vadd.f32 %v1783, %v2429
        %v2492 = vadd.f32 %v1788, %v2434
        %v2493 = vadd.f32 %v1793, %v2439
        %v2494 = vadd.f32 %v1798, %v2444
        %v2495 = vadd.f32 %v1803, %v2449
        %v2496 = vadd.f32 %v1808, %v2454
        %v2497 = vadd.f32 %v1813, %v2459
        %v2498 = vlaneseq
        %v2499 = vshrl.u32 %v2498, 7
        %v2500 = vsub.s32 0, %v2499
        %v2501 = vrot.slane %v276, %v2500
        %v2502 = vmul.f32 %v2462, %v2501
        %v2503 = vmul.f32 %v2463, %v2501
        %v2504 = vmul.f32 %v2464, %v2501
        %v2505 = vmul.f32 %v2465, %v2501
        %v2506 = vmul.f32 %v2466, %v2501
        %v2507 = vmul.f32 %v2467, %v2501
        %v2508 = vmul.f32 %v2468, %v2501
        %v2509 = vmul.f32 %v2469, %v2501
        %v2510 = vmul.f32 %v2470, %v2501
        %v2511 = vmul.f32 %v2471, %v2501
        %v2512 = vmul.f32 %v2472, %v2501
        %v2513 = vmul.f32 %v2473, %v2501
        %v2514 = vmul.f32 %v2474, %v2501
        %v2515 = vmul.f32 %v2475, %v2501
        %v2516 = vmul.f32 %v2476, %v2501
        %v2517 = vmul.f32 %v2477, %v2501
        %v2518 = vmul.f32 %v2478, %v2501
        %v2519 = vmul.f32 %v2479, %v2501
        %v2520 = vmul.f32 %v2480, %v2501
        %v2521 = vmul.f32 %v2481, %v2501
        %v2522 = vmul.f32 %v2482, %v2501
        %v2523 = vmul.f32 %v2483, %v2501
        %v2524 = vmul.f32 %v2484, %v2501
        %v2525 = vmul.f32 %v2485, %v2501
        %v2526 = vmul.f32 %v2486, %v2501
        %v2527 = vmul.f32 %v2487, %v2501
        %v2528 = vmul.f32 %v2488, %v2501
        %v2529 = vmul.f32 %v2489, %v2501
        %v2530 = vmul.f32 %v2490, %v2501
        %v2531 = vmul.f32 %v2491, %v2501
        %v2532 = vmul.f32 %v2492, %v2501
        %v2533 = vmul.f32 %v2493, %v2501
        %v2534 = vmul.f32 %v2494, %v2501
        %v2535 = vmul.f32 %v2495, %v2501
        %v2536 = vmul.f32 %v2496, %v2501
        %v2537 = vmul.f32 %v2497, %v2501
        %v2538 = vlaneseq
        %v2539 = vshrl.u32 %v2538, 7
        %v2540 = vsub.s32 0, %v2539
        %v2541 = vrot.slane %v277, %v2540
        %v2542 = vadd.f32 %v2502, %v2541
        %v2543 = vadd.f32 %v2503, %v2541
        %v2544 = vadd.f32 %v2504, %v2541
        %v2545 = vadd.f32 %v2505, %v2541
        %v2546 = vadd.f32 %v2506, %v2541
        %v2547 = vadd.f32 %v2507, %v2541
        %v2548 = vadd.f32 %v2508, %v2541
        %v2549 = vadd.f32 %v2509, %v2541
        %v2550 = vadd.f32 %v2510, %v2541
        %v2551 = vadd.f32 %v2511, %v2541
        %v2552 = vadd.f32 %v2512, %v2541
        %v2553 = vadd.f32 %v2513, %v2541
        %v2554 = vadd.f32 %v2514, %v2541
        %v2555 = vadd.f32 %v2515, %v2541
        %v2556 = vadd.f32 %v2516, %v2541
        %v2557 = vadd.f32 %v2517, %v2541
        %v2558 = vadd.f32 %v2518, %v2541
        %v2559 = vadd.f32 %v2519, %v2541
        %v2560 = vadd.f32 %v2520, %v2541
        %v2561 = vadd.f32 %v2521, %v2541
        %v2562 = vadd.f32 %v2522, %v2541
        %v2563 = vadd.f32 %v2523, %v2541
        %v2564 = vadd.f32 %v2524, %v2541
        %v2565 = vadd.f32 %v2525, %v2541
        %v2566 = vadd.f32 %v2526, %v2541
        %v2567 = vadd.f32 %v2527, %v2541
        %v2568 = vadd.f32 %v2528, %v2541
        %v2569 = vadd.f32 %v2529, %v2541
        %v2570 = vadd.f32 %v2530, %v2541
        %v2571 = vadd.f32 %v2531, %v2541
        %v2572 = vadd.f32 %v2532, %v2541
        %v2573 = vadd.f32 %v2533, %v2541
        %v2574 = vadd.f32 %v2534, %v2541
        %v2575 = vadd.f32 %v2535, %v2541
        %v2576 = vadd.f32 %v2536, %v2541
        %v2577 = vadd.f32 %v2537, %v2541
        %vm2578 = vcmp.ge.f32.partialorder %v2542, 0.0
        %vm2579 = vcmp.ge.f32.partialorder %v2543, 0.0
        %vm2580 = vcmp.ge.f32.partialorder %v2544, 0.0
        %vm2581 = vcmp.ge.f32.partialorder %v2545, 0.0
        %vm2582 = vcmp.ge.f32.partialorder %v2546, 0.0
        %vm2583 = vcmp.ge.f32.partialorder %v2547, 0.0
        %vm2584 = vcmp.ge.f32.partialorder %v2548, 0.0
        %vm2585 = vcmp.ge.f32.partialorder %v2549, 0.0
        %vm2586 = vcmp.ge.f32.partialorder %v2550, 0.0
        %vm2587 = vcmp.ge.f32.partialorder %v2551, 0.0
        %vm2588 = vcmp.ge.f32.partialorder %v2552, 0.0
        %vm2589 = vcmp.ge.f32.partialorder %v2553, 0.0
        %vm2590 = vcmp.ge.f32.partialorder %v2554, 0.0
        %vm2591 = vcmp.ge.f32.partialorder %v2555, 0.0
        %vm2592 = vcmp.ge.f32.partialorder %v2556, 0.0
        %vm2593 = vcmp.ge.f32.partialorder %v2557, 0.0
        %vm2594 = vcmp.ge.f32.partialorder %v2558, 0.0
        %vm2595 = vcmp.ge.f32.partialorder %v2559, 0.0
        %vm2596 = vcmp.ge.f32.partialorder %v2560, 0.0
        %vm2597 = vcmp.ge.f32.partialorder %v2561, 0.0
        %vm2598 = vcmp.ge.f32.partialorder %v2562, 0.0
        %vm2599 = vcmp.ge.f32.partialorder %v2563, 0.0
        %vm2600 = vcmp.ge.f32.partialorder %v2564, 0.0
        %vm2601 = vcmp.ge.f32.partialorder %v2565, 0.0
        %vm2602 = vcmp.ge.f32.partialorder %v2566, 0.0
        %vm2603 = vcmp.ge.f32.partialorder %v2567, 0.0
        %vm2604 = vcmp.ge.f32.partialorder %v2568, 0.0
        %vm2605 = vcmp.ge.f32.partialorder %v2569, 0.0
        %vm2606 = vcmp.ge.f32.partialorder %v2570, 0.0
        %vm2607 = vcmp.ge.f32.partialorder %v2571, 0.0
        %vm2608 = vcmp.ge.f32.partialorder %v2572, 0.0
        %vm2609 = vcmp.ge.f32.partialorder %v2573, 0.0
        %vm2610 = vcmp.ge.f32.partialorder %v2574, 0.0
        %vm2611 = vcmp.ge.f32.partialorder %v2575, 0.0
        %vm2612 = vcmp.ge.f32.partialorder %v2576, 0.0
        %vm2613 = vcmp.ge.f32.partialorder %v2577, 0.0
        %v2614 = vlaneseq
        %v2615 = vshrl.u32 %v2614, 7
        %v2616 = vsub.s32 0, %v2615
        %v2617 = vrot.slane %v280, %v2616
        %v2618 = vmul.f32 %v2617, %v2542
        %v2619 = vmul.f32 %v2617, %v2543
        %v2620 = vmul.f32 %v2617, %v2544
        %v2621 = vmul.f32 %v2617, %v2545
        %v2622 = vmul.f32 %v2617, %v2546
        %v2623 = vmul.f32 %v2617, %v2547
        %v2624 = vmul.f32 %v2617, %v2548
        %v2625 = vmul.f32 %v2617, %v2549
        %v2626 = vmul.f32 %v2617, %v2550
        %v2627 = vmul.f32 %v2617, %v2551
        %v2628 = vmul.f32 %v2617, %v2552
        %v2629 = vmul.f32 %v2617, %v2553
        %v2630 = vmul.f32 %v2617, %v2554
        %v2631 = vmul.f32 %v2617, %v2555
        %v2632 = vmul.f32 %v2617, %v2556
        %v2633 = vmul.f32 %v2617, %v2557
        %v2634 = vmul.f32 %v2617, %v2558
        %v2635 = vmul.f32 %v2617, %v2559
        %v2636 = vmul.f32 %v2617, %v2560
        %v2637 = vmul.f32 %v2617, %v2561
        %v2638 = vmul.f32 %v2617, %v2562
        %v2639 = vmul.f32 %v2617, %v2563
        %v2640 = vmul.f32 %v2617, %v2564
        %v2641 = vmul.f32 %v2617, %v2565
        %v2642 = vmul.f32 %v2617, %v2566
        %v2643 = vmul.f32 %v2617, %v2567
        %v2644 = vmul.f32 %v2617, %v2568
        %v2645 = vmul.f32 %v2617, %v2569
        %v2646 = vmul.f32 %v2617, %v2570
        %v2647 = vmul.f32 %v2617, %v2571
        %v2648 = vmul.f32 %v2617, %v2572
        %v2649 = vmul.f32 %v2617, %v2573
        %v2650 = vmul.f32 %v2617, %v2574
        %v2651 = vmul.f32 %v2617, %v2575
        %v2652 = vmul.f32 %v2617, %v2576
        %v2653 = vmul.f32 %v2617, %v2577
        %v2654 = vsel %vm2578, %v2542, %v2618
        %v2655 = vsel %vm2579, %v2543, %v2619
        %v2656 = vsel %vm2580, %v2544, %v2620
        %v2657 = vsel %vm2581, %v2545, %v2621
        %v2658 = vsel %vm2582, %v2546, %v2622
        %v2659 = vsel %vm2583, %v2547, %v2623
        %v2660 = vsel %vm2584, %v2548, %v2624
        %v2661 = vsel %vm2585, %v2549, %v2625
        %v2662 = vsel %vm2586, %v2550, %v2626
        %v2663 = vsel %vm2587, %v2551, %v2627
        %v2664 = vsel %vm2588, %v2552, %v2628
        %v2665 = vsel %vm2589, %v2553, %v2629
        %v2666 = vsel %vm2590, %v2554, %v2630
        %v2667 = vsel %vm2591, %v2555, %v2631
        %v2668 = vsel %vm2592, %v2556, %v2632
        %v2669 = vsel %vm2593, %v2557, %v2633
        %v2670 = vsel %vm2594, %v2558, %v2634
        %v2671 = vsel %vm2595, %v2559, %v2635
        %v2672 = vsel %vm2596, %v2560, %v2636
        %v2673 = vsel %vm2597, %v2561, %v2637
        %v2674 = vsel %vm2598, %v2562, %v2638
        %v2675 = vsel %vm2599, %v2563, %v2639
        %v2676 = vsel %vm2600, %v2564, %v2640
        %v2677 = vsel %vm2601, %v2565, %v2641
        %v2678 = vsel %vm2602, %v2566, %v2642
        %v2679 = vsel %vm2603, %v2567, %v2643
        %v2680 = vsel %vm2604, %v2568, %v2644
        %v2681 = vsel %vm2605, %v2569, %v2645
        %v2682 = vsel %vm2606, %v2570, %v2646
        %v2683 = vsel %vm2607, %v2571, %v2647
        %v2684 = vsel %vm2608, %v2572, %v2648
        %v2685 = vsel %vm2609, %v2573, %v2649
        %v2686 = vsel %vm2610, %v2574, %v2650
        %v2687 = vsel %vm2611, %v2575, %v2651
        %v2688 = vsel %vm2612, %v2576, %v2652
        %v2689 = vsel %vm2613, %v2577, %v2653
        %2690 = vst [vmem:[#allocation3] sm:$0x1] 0.0
        %2691 = vst [vmem:[#allocation3 + $0x18] sm:$0x1] 0.0
        %2692 = vst [vmem:[#allocation3 + $0x30] sm:$0x1] 0.0
        %2693 = vst [vmem:[#allocation3 + $0x48] sm:$0x1] 0.0
        %2694 = vst [vmem:[#allocation3 + $0x60] sm:$0x1] 0.0
        %2695 = vst [vmem:[#allocation3 + $0x78] sm:$0x1] 0.0
        %2696 = vst [vmem:[#allocation3 + $0x90] sm:$0x1] 0.0
        %2697 = vst [vmem:[#allocation3 + $0xa8] sm:$0x1] 0.0
        %2698 = vst [vmem:[#allocation3 + $0xc0] sm:$0x1] 0.0
        %2699 = vst [vmem:[#allocation3 + $0xd8] sm:$0x1] 0.0
        %2700 = vst [vmem:[#allocation3 + $0xf0] sm:$0x1] 0.0
        %2701 = vst [vmem:[#allocation3 + $0x108] sm:$0x1] 0.0
        %2702 = vst [vmem:[#allocation3 + $0x120] sm:$0x1] 0.0
        %2703 = vst [vmem:[#allocation3 + $0x138] sm:$0x1] 0.0
        %2704 = vst [vmem:[#allocation3 + $0x150] sm:$0x1] 0.0
        %2705 = vst [vmem:[#allocation3 + $0x168] sm:$0x1] 0.0
        %2706 = vst [vmem:[#allocation3 + $0x180] sm:$0x1] 0.0
        %2707 = vst [vmem:[#allocation3 + $0x198] sm:$0x1] 0.0
        %2708 = vst [vmem:[#allocation3 + $0x11] sm:$0x1] 0.0
        %2709 = vst [vmem:[#allocation3 + $0x29] sm:$0x1] 0.0
        %2710 = vst [vmem:[#allocation3 + $0x41] sm:$0x1] 0.0
        %2711 = vst [vmem:[#allocation3 + $0x59] sm:$0x1] 0.0
        %2712 = vst [vmem:[#allocation3 + $0x71] sm:$0x1] 0.0
        %2713 = vst [vmem:[#allocation3 + $0x89] sm:$0x1] 0.0
        %2714 = vst [vmem:[#allocation3 + $0xa1] sm:$0x1] 0.0
        %2715 = vst [vmem:[#allocation3 + $0xb9] sm:$0x1] 0.0
        %2716 = vst [vmem:[#allocation3 + $0xd1] sm:$0x1] 0.0
        %2717 = vst [vmem:[#allocation3 + $0xe9] sm:$0x1] 0.0
        %2718 = vst [vmem:[#allocation3 + $0x101] sm:$0x1] 0.0
        %2719 = vst [vmem:[#allocation3 + $0x119] sm:$0x1] 0.0
        %2720 = vst [vmem:[#allocation3 + $0x131] sm:$0x1] 0.0
        %2721 = vst [vmem:[#allocation3 + $0x149] sm:$0x1] 0.0
        %2722 = vst [vmem:[#allocation3 + $0x161] sm:$0x1] 0.0
        %2723 = vst [vmem:[#allocation3 + $0x179] sm:$0x1] 0.0
        %2724 = vst [vmem:[#allocation3 + $0x191] sm:$0x1] 0.0
        %2725 = vst [vmem:[#allocation3 + $0x1a9] sm:$0x1] 0.0
        %2726 = vst [vmem:[#allocation3 + $0x1] sm:$0xff] %v2654
        %2727 = vst [vmem:[#allocation3 + $0x9] sm:$0xff] %v2655
        %2728 = vst [vmem:[#allocation3 + $0x19] sm:$0xff] %v2656
        %2729 = vst [vmem:[#allocation3 + $0x21] sm:$0xff] %v2657
        %2730 = vst [vmem:[#allocation3 + $0x31] sm:$0xff] %v2658
        %2731 = vst [vmem:[#allocation3 + $0x39] sm:$0xff] %v2659
        %2732 = vst [vmem:[#allocation3 + $0x49] sm:$0xff] %v2660
        %2733 = vst [vmem:[#allocation3 + $0x51] sm:$0xff] %v2661
        %2734 = vst [vmem:[#allocation3 + $0x61] sm:$0xff] %v2662
        %2735 = vst [vmem:[#allocation3 + $0x69] sm:$0xff] %v2663
        %2736 = vst [vmem:[#allocation3 + $0x79] sm:$0xff] %v2664
        %2737 = vst [vmem:[#allocation3 + $0x81] sm:$0xff] %v2665
        %2738 = vst [vmem:[#allocation3 + $0x91] sm:$0xff] %v2666
        %2739 = vst [vmem:[#allocation3 + $0x99] sm:$0xff] %v2667
        %2740 = vst [vmem:[#allocation3 + $0xa9] sm:$0xff] %v2668
        %2741 = vst [vmem:[#allocation3 + $0xb1] sm:$0xff] %v2669
        %2742 = vst [vmem:[#allocation3 + $0xc1] sm:$0xff] %v2670
        %2743 = vst [vmem:[#allocation3 + $0xc9] sm:$0xff] %v2671
        %2744 = vst [vmem:[#allocation3 + $0xd9] sm:$0xff] %v2672
        %2745 = vst [vmem:[#allocation3 + $0xe1] sm:$0xff] %v2673
        %2746 = vst [vmem:[#allocation3 + $0xf1] sm:$0xff] %v2674
        %2747 = vst [vmem:[#allocation3 + $0xf9] sm:$0xff] %v2675
        %2748 = vst [vmem:[#allocation3 + $0x109] sm:$0xff] %v2676
        %2749 = vst [vmem:[#allocation3 + $0x111] sm:$0xff] %v2677
        %2750 = vst [vmem:[#allocation3 + $0x121] sm:$0xff] %v2678
        %2751 = vst [vmem:[#allocation3 + $0x129] sm:$0xff] %v2679
        %2752 = vst [vmem:[#allocation3 + $0x139] sm:$0xff] %v2680
        %2753 = vst [vmem:[#allocation3 + $0x141] sm:$0xff] %v2681
        %2754 = vst [vmem:[#allocation3 + $0x151] sm:$0xff] %v2682
        %2755 = vst [vmem:[#allocation3 + $0x159] sm:$0xff] %v2683
        %2756 = vst [vmem:[#allocation3 + $0x169] sm:$0xff] %v2684
        %2757 = vst [vmem:[#allocation3 + $0x171] sm:$0xff] %v2685
        %2758 = vst [vmem:[#allocation3 + $0x181] sm:$0xff] %v2686
        %2759 = vst [vmem:[#allocation3 + $0x189] sm:$0xff] %v2687
        %2760 = vst [vmem:[#allocation3 + $0x199] sm:$0xff] %v2688
        %2761 = vst [vmem:[#allocation3 + $0x1a1] sm:$0xff] %v2689
        // Predicated region
        $region69: #{tpu_custom_call.1} parent=35 // pred_check
          %p2762 = pneg %p460
        $region70: #{tpu_custom_call.1} parent=35 // pred_check_branch
          %2764 = sbr.rel (%p2762) target = $region72
        $region71: #{tpu_custom_call.1} parent=35 // pred_region
          %2765 = vst [vmem:[#allocation3] sm:$0xff] 0.0
          %2766 = vst [vmem:[#allocation3 + $0x8] sm:$0xff] 0.0
          %2767 = vst [vmem:[#allocation3 + $0x10] sm:$0x3] 0.0
          %s2768 = scalar_lea.vmem [#allocation3], 408
          %2769 = vst [vmem:[%s2768] sm:$0xff] 0.0
          %2770 = vst [vmem:[%s2768 + $0x8] sm:$0xff] 0.0
          %2771 = vst [vmem:[%s2768 + $0x10] sm:$0x3] 0.0
        $region72: #{tpu_custom_call.1} parent=35 // pred_fallthru
          _
        %v2772 = vld [vmem:[#allocation3] sm:$0xff]
        %v2773 = vld [vmem:[#allocation3 + $0x8] sm:$0xff]
        %v2774 = vld [vmem:[#allocation3 + $0x18] sm:$0xff]
        %v2775 = vld [vmem:[#allocation3 + $0x20] sm:$0xff]
        %v2776 = vld [vmem:[#allocation3 + $0x30] sm:$0xff]
        %v2777 = vld [vmem:[#allocation3 + $0x38] sm:$0xff]
        %v2778 = vld [vmem:[#allocation3 + $0x48] sm:$0xff]
        %v2779 = vld [vmem:[#allocation3 + $0x50] sm:$0xff]
        %v2780 = vld [vmem:[#allocation3 + $0x60] sm:$0xff]
        %v2781 = vld [vmem:[#allocation3 + $0x68] sm:$0xff]
        %v2782 = vld [vmem:[#allocation3 + $0x78] sm:$0xff]
        %v2783 = vld [vmem:[#allocation3 + $0x80] sm:$0xff]
        %v2784 = vld [vmem:[#allocation3 + $0x90] sm:$0xff]
        %v2785 = vld [vmem:[#allocation3 + $0x98] sm:$0xff]
        %v2786 = vld [vmem:[#allocation3 + $0xa8] sm:$0xff]
        %v2787 = vld [vmem:[#allocation3 + $0xb0] sm:$0xff]
        %v2788 = vld [vmem:[#allocation3 + $0xc0] sm:$0xff]
        %v2789 = vld [vmem:[#allocation3 + $0xc8] sm:$0xff]
        %v2790 = vld [vmem:[#allocation3 + $0xd8] sm:$0xff]
        %v2791 = vld [vmem:[#allocation3 + $0xe0] sm:$0xff]
        %v2792 = vld [vmem:[#allocation3 + $0xf0] sm:$0xff]
        %v2793 = vld [vmem:[#allocation3 + $0xf8] sm:$0xff]
        %v2794 = vld [vmem:[#allocation3 + $0x108] sm:$0xff]
        %v2795 = vld [vmem:[#allocation3 + $0x110] sm:$0xff]
        %v2796 = vld [vmem:[#allocation3 + $0x120] sm:$0xff]
        %v2797 = vld [vmem:[#allocation3 + $0x128] sm:$0xff]
        %v2798 = vld [vmem:[#allocation3 + $0x138] sm:$0xff]
        %v2799 = vld [vmem:[#allocation3 + $0x140] sm:$0xff]
        %v2800 = vld [vmem:[#allocation3 + $0x150] sm:$0xff]
        %v2801 = vld [vmem:[#allocation3 + $0x158] sm:$0xff]
        %v2802 = vld [vmem:[#allocation3 + $0x168] sm:$0xff]
        %v2803 = vld [vmem:[#allocation3 + $0x170] sm:$0xff]
        %v2804 = vld [vmem:[#allocation3 + $0x1] sm:$0xff]
        %v2805 = vld [vmem:[#allocation3 + $0x9] sm:$0xff]
        %v2806 = vld [vmem:[#allocation3 + $0x19] sm:$0xff]
        %v2807 = vld [vmem:[#allocation3 + $0x21] sm:$0xff]
        %v2808 = vld [vmem:[#allocation3 + $0x31] sm:$0xff]
        %v2809 = vld [vmem:[#allocation3 + $0x39] sm:$0xff]
        %v2810 = vld [vmem:[#allocation3 + $0x49] sm:$0xff]
        %v2811 = vld [vmem:[#allocation3 + $0x51] sm:$0xff]
        %v2812 = vld [vmem:[#allocation3 + $0x61] sm:$0xff]
        %v2813 = vld [vmem:[#allocation3 + $0x69] sm:$0xff]
        %v2814 = vld [vmem:[#allocation3 + $0x79] sm:$0xff]
        %v2815 = vld [vmem:[#allocation3 + $0x81] sm:$0xff]
        %v2816 = vld [vmem:[#allocation3 + $0x91] sm:$0xff]
        %v2817 = vld [vmem:[#allocation3 + $0x99] sm:$0xff]
        %v2818 = vld [vmem:[#allocation3 + $0xa9] sm:$0xff]
        %v2819 = vld [vmem:[#allocation3 + $0xb1] sm:$0xff]
        %v2820 = vld [vmem:[#allocation3 + $0xc1] sm:$0xff]
        %v2821 = vld [vmem:[#allocation3 + $0xc9] sm:$0xff]
        %v2822 = vld [vmem:[#allocation3 + $0xd9] sm:$0xff]
        %v2823 = vld [vmem:[#allocation3 + $0xe1] sm:$0xff]
        %v2824 = vld [vmem:[#allocation3 + $0xf1] sm:$0xff]
        %v2825 = vld [vmem:[#allocation3 + $0xf9] sm:$0xff]
        %v2826 = vld [vmem:[#allocation3 + $0x109] sm:$0xff]
        %v2827 = vld [vmem:[#allocation3 + $0x111] sm:$0xff]
        %v2828 = vld [vmem:[#allocation3 + $0x121] sm:$0xff]
        %v2829 = vld [vmem:[#allocation3 + $0x129] sm:$0xff]
        %v2830 = vld [vmem:[#allocation3 + $0x139] sm:$0xff]
        %v2831 = vld [vmem:[#allocation3 + $0x141] sm:$0xff]
        %v2832 = vld [vmem:[#allocation3 + $0x151] sm:$0xff]
        %v2833 = vld [vmem:[#allocation3 + $0x159] sm:$0xff]
        %v2834 = vld [vmem:[#allocation3 + $0x169] sm:$0xff]
        %v2835 = vld [vmem:[#allocation3 + $0x171] sm:$0xff]
        %v2836 = vld [vmem:[#allocation3 + $0x2] sm:$0xff]
        %v2837 = vld [vmem:[#allocation3 + $0xa] sm:$0xff]
        %v2838 = vld [vmem:[#allocation3 + $0x1a] sm:$0xff]
        %v2839 = vld [vmem:[#allocation3 + $0x22] sm:$0xff]
        %v2840 = vld [vmem:[#allocation3 + $0x32] sm:$0xff]
        %v2841 = vld [vmem:[#allocation3 + $0x3a] sm:$0xff]
        %v2842 = vld [vmem:[#allocation3 + $0x4a] sm:$0xff]
        %v2843 = vld [vmem:[#allocation3 + $0x52] sm:$0xff]
        %v2844 = vld [vmem:[#allocation3 + $0x62] sm:$0xff]
        %v2845 = vld [vmem:[#allocation3 + $0x6a] sm:$0xff]
        %v2846 = vld [vmem:[#allocation3 + $0x7a] sm:$0xff]
        %v2847 = vld [vmem:[#allocation3 + $0x82] sm:$0xff]
        %v2848 = vld [vmem:[#allocation3 + $0x92] sm:$0xff]
        %v2849 = vld [vmem:[#allocation3 + $0x9a] sm:$0xff]
        %v2850 = vld [vmem:[#allocation3 + $0xaa] sm:$0xff]
        %v2851 = vld [vmem:[#allocation3 + $0xb2] sm:$0xff]
        %v2852 = vld [vmem:[#allocation3 + $0xc2] sm:$0xff]
        %v2853 = vld [vmem:[#allocation3 + $0xca] sm:$0xff]
        %v2854 = vld [vmem:[#allocation3 + $0xda] sm:$0xff]
        %v2855 = vld [vmem:[#allocation3 + $0xe2] sm:$0xff]
        %v2856 = vld [vmem:[#allocation3 + $0xf2] sm:$0xff]
        %v2857 = vld [vmem:[#allocation3 + $0xfa] sm:$0xff]
        %v2858 = vld [vmem:[#allocation3 + $0x10a] sm:$0xff]
        %v2859 = vld [vmem:[#allocation3 + $0x112] sm:$0xff]
        %v2860 = vld [vmem:[#allocation3 + $0x122] sm:$0xff]
        %v2861 = vld [vmem:[#allocation3 + $0x12a] sm:$0xff]
        %v2862 = vld [vmem:[#allocation3 + $0x13a] sm:$0xff]
        %v2863 = vld [vmem:[#allocation3 + $0x142] sm:$0xff]
        %v2864 = vld [vmem:[#allocation3 + $0x152] sm:$0xff]
        %v2865 = vld [vmem:[#allocation3 + $0x15a] sm:$0xff]
        %v2866 = vld [vmem:[#allocation3 + $0x16a] sm:$0xff]
        %v2867 = vld [vmem:[#allocation3 + $0x172] sm:$0xff]
        %v2868 = vld [vmem:[#allocation9] sm:$0xff]
        %v2869 = vld [vmem:[#allocation9 + $0x8] sm:$0xff]
        %v2870 = vld [vmem:[#allocation9 + $0x10] sm:$0xff]
        %v2871 = vld [vmem:[#allocation9 + $0x18] sm:$0xff]
        %v2872 = vld [vmem:[#allocation9 + $0x20] sm:$0xff]
        %v2873 = vld [vmem:[#allocation9 + $0x28] sm:$0xff]
        %v2874 = vld [vmem:[#allocation9 + $0x30] sm:$0xff]
        %v2875 = vld [vmem:[#allocation9 + $0x38] sm:$0xff]
        %v2876 = vld [vmem:[#allocation9 + $0x40] sm:$0xff]
        %v2877 = vld [vmem:[#allocation9 + $0x48] sm:$0xff]
        %v2878 = vld [vmem:[#allocation9 + $0x50] sm:$0xff]
        %v2879 = vld [vmem:[#allocation9 + $0x58] sm:$0xff]
        %v2880 = vld [vmem:[#allocation9 + $0x60] sm:$0xff]
        %v2881 = vld [vmem:[#allocation9 + $0x68] sm:$0xff]
        %v2882 = vld [vmem:[#allocation9 + $0x70] sm:$0xff]
        %v2883 = vld [vmem:[#allocation9 + $0x78] sm:$0xff]
        %v2884 = vld [vmem:[#allocation9 + $0x80] sm:$0xff]
        %v2885 = vld [vmem:[#allocation9 + $0x88] sm:$0xff]
        %v2886 = vld [vmem:[#allocation9 + $0x90] sm:$0xff]
        %v2887 = vld [vmem:[#allocation9 + $0x98] sm:$0xff]
        %v2888 = vld [vmem:[#allocation9 + $0xa0] sm:$0xff]
        %v2889 = vld [vmem:[#allocation9 + $0xa8] sm:$0xff]
        %v2890 = vld [vmem:[#allocation9 + $0xb0] sm:$0xff]
        %v2891 = vld [vmem:[#allocation9 + $0xb8] sm:$0xff]
        %v2892 = vld [vmem:[#allocation9 + $0xc0] sm:$0xff]
        %v2893 = vld [vmem:[#allocation9 + $0xc8] sm:$0xff]
        %v2894 = vld [vmem:[#allocation9 + $0xd0] sm:$0xff]
        %v2895 = vld [vmem:[#allocation9 + $0xd8] sm:$0xff]
        %v2896 = vld [vmem:[#allocation9 + $0xe0] sm:$0xff]
        %v2897 = vld [vmem:[#allocation9 + $0xe8] sm:$0xff]
        %v2898 = vld [vmem:[#allocation9 + $0xf0] sm:$0xff]
        %v2899 = vld [vmem:[#allocation9 + $0xf8] sm:$0xff]
        %v2900 = vld [vmem:[#allocation9 + $0x100] sm:$0xff]
        %v2901 = vld [vmem:[#allocation9 + $0x108] sm:$0xff]
        %v2902 = vld [vmem:[#allocation9 + $0x110] sm:$0xff]
        %v2903 = vld [vmem:[#allocation9 + $0x118] sm:$0xff]
        %v2904 = vld [vmem:[#allocation9 + $0x120] sm:$0xff]
        %v2905 = vld [vmem:[#allocation9 + $0x128] sm:$0xff]
        %v2906 = vld [vmem:[#allocation9 + $0x130] sm:$0xff]
        %v2907 = vld [vmem:[#allocation9 + $0x138] sm:$0xff]
        %v2908 = vld [vmem:[#allocation9 + $0x140] sm:$0xff]
        %v2909 = vld [vmem:[#allocation9 + $0x148] sm:$0xff]
        %v2910 = vld [vmem:[#allocation9 + $0x150] sm:$0xff]
        %v2911 = vld [vmem:[#allocation9 + $0x158] sm:$0xff]
        %v2912 = vld [vmem:[#allocation9 + $0x160] sm:$0xff]
        %v2913 = vld [vmem:[#allocation9 + $0x168] sm:$0xff]
        %v2914 = vld [vmem:[#allocation9 + $0x170] sm:$0xff]
        %v2915 = vld [vmem:[#allocation9 + $0x178] sm:$0xff]
        %s2916 = scalar_lea.vmem [#allocation3], 24
        %v2917 = vld [vmem:[%s2916] sm:$0xff]
        %v2918 = vld [vmem:[%s2916 + $0x8] sm:$0xff]
        %v2919 = vld [vmem:[%s2916 + $0x18] sm:$0xff]
        %v2920 = vld [vmem:[%s2916 + $0x20] sm:$0xff]
        %v2921 = vld [vmem:[%s2916 + $0x30] sm:$0xff]
        %v2922 = vld [vmem:[%s2916 + $0x38] sm:$0xff]
        %v2923 = vld [vmem:[%s2916 + $0x48] sm:$0xff]
        %v2924 = vld [vmem:[%s2916 + $0x50] sm:$0xff]
        %v2925 = vld [vmem:[%s2916 + $0x60] sm:$0xff]
        %v2926 = vld [vmem:[%s2916 + $0x68] sm:$0xff]
        %v2927 = vld [vmem:[%s2916 + $0x78] sm:$0xff]
        %v2928 = vld [vmem:[%s2916 + $0x80] sm:$0xff]
        %v2929 = vld [vmem:[%s2916 + $0x90] sm:$0xff]
        %v2930 = vld [vmem:[%s2916 + $0x98] sm:$0xff]
        %v2931 = vld [vmem:[%s2916 + $0xa8] sm:$0xff]
        %v2932 = vld [vmem:[%s2916 + $0xb0] sm:$0xff]
        %v2933 = vld [vmem:[%s2916 + $0xc0] sm:$0xff]
        %v2934 = vld [vmem:[%s2916 + $0xc8] sm:$0xff]
        %v2935 = vld [vmem:[%s2916 + $0xd8] sm:$0xff]
        %v2936 = vld [vmem:[%s2916 + $0xe0] sm:$0xff]
        %v2937 = vld [vmem:[%s2916 + $0xf0] sm:$0xff]
        %v2938 = vld [vmem:[%s2916 + $0xf8] sm:$0xff]
        %v2939 = vld [vmem:[%s2916 + $0x108] sm:$0xff]
        %v2940 = vld [vmem:[%s2916 + $0x110] sm:$0xff]
        %v2941 = vld [vmem:[%s2916 + $0x120] sm:$0xff]
        %v2942 = vld [vmem:[%s2916 + $0x128] sm:$0xff]
        %v2943 = vld [vmem:[%s2916 + $0x138] sm:$0xff]
        %v2944 = vld [vmem:[%s2916 + $0x140] sm:$0xff]
        %v2945 = vld [vmem:[%s2916 + $0x150] sm:$0xff]
        %v2946 = vld [vmem:[%s2916 + $0x158] sm:$0xff]
        %v2947 = vld [vmem:[%s2916 + $0x168] sm:$0xff]
        %v2948 = vld [vmem:[%s2916 + $0x170] sm:$0xff]
        %v2949 = vld [vmem:[%s2916 + $0x1] sm:$0xff]
        %v2950 = vld [vmem:[%s2916 + $0x9] sm:$0xff]
        %v2951 = vld [vmem:[%s2916 + $0x19] sm:$0xff]
        %v2952 = vld [vmem:[%s2916 + $0x21] sm:$0xff]
        %v2953 = vld [vmem:[%s2916 + $0x31] sm:$0xff]
        %v2954 = vld [vmem:[%s2916 + $0x39] sm:$0xff]
        %v2955 = vld [vmem:[%s2916 + $0x49] sm:$0xff]
        %v2956 = vld [vmem:[%s2916 + $0x51] sm:$0xff]
        %v2957 = vld [vmem:[%s2916 + $0x61] sm:$0xff]
        %v2958 = vld [vmem:[%s2916 + $0x69] sm:$0xff]
        %v2959 = vld [vmem:[%s2916 + $0x79] sm:$0xff]
        %v2960 = vld [vmem:[%s2916 + $0x81] sm:$0xff]
        %v2961 = vld [vmem:[%s2916 + $0x91] sm:$0xff]
        %v2962 = vld [vmem:[%s2916 + $0x99] sm:$0xff]
        %v2963 = vld [vmem:[%s2916 + $0xa9] sm:$0xff]
        %v2964 = vld [vmem:[%s2916 + $0xb1] sm:$0xff]
        %v2965 = vld [vmem:[%s2916 + $0xc1] sm:$0xff]
        %v2966 = vld [vmem:[%s2916 + $0xc9] sm:$0xff]
        %v2967 = vld [vmem:[%s2916 + $0xd9] sm:$0xff]
        %v2968 = vld [vmem:[%s2916 + $0xe1] sm:$0xff]
        %v2969 = vld [vmem:[%s2916 + $0xf1] sm:$0xff]
        %v2970 = vld [vmem:[%s2916 + $0xf9] sm:$0xff]
        %v2971 = vld [vmem:[%s2916 + $0x109] sm:$0xff]
        %v2972 = vld [vmem:[%s2916 + $0x111] sm:$0xff]
        %v2973 = vld [vmem:[%s2916 + $0x121] sm:$0xff]
        %v2974 = vld [vmem:[%s2916 + $0x129] sm:$0xff]
        %v2975 = vld [vmem:[%s2916 + $0x139] sm:$0xff]
        %v2976 = vld [vmem:[%s2916 + $0x141] sm:$0xff]
        %v2977 = vld [vmem:[%s2916 + $0x151] sm:$0xff]
        %v2978 = vld [vmem:[%s2916 + $0x159] sm:$0xff]
        %v2979 = vld [vmem:[%s2916 + $0x169] sm:$0xff]
        %v2980 = vld [vmem:[%s2916 + $0x171] sm:$0xff]
        %v2981 = vld [vmem:[%s2916 + $0x2] sm:$0xff]
        %v2982 = vld [vmem:[%s2916 + $0xa] sm:$0xff]
        %v2983 = vld [vmem:[%s2916 + $0x1a] sm:$0xff]
        %v2984 = vld [vmem:[%s2916 + $0x22] sm:$0xff]
        %v2985 = vld [vmem:[%s2916 + $0x32] sm:$0xff]
        %v2986 = vld [vmem:[%s2916 + $0x3a] sm:$0xff]
        %v2987 = vld [vmem:[%s2916 + $0x4a] sm:$0xff]
        %v2988 = vld [vmem:[%s2916 + $0x52] sm:$0xff]
        %v2989 = vld [vmem:[%s2916 + $0x62] sm:$0xff]
        %v2990 = vld [vmem:[%s2916 + $0x6a] sm:$0xff]
        %v2991 = vld [vmem:[%s2916 + $0x7a] sm:$0xff]
        %v2992 = vld [vmem:[%s2916 + $0x82] sm:$0xff]
        %v2993 = vld [vmem:[%s2916 + $0x92] sm:$0xff]
        %v2994 = vld [vmem:[%s2916 + $0x9a] sm:$0xff]
        %v2995 = vld [vmem:[%s2916 + $0xaa] sm:$0xff]
        %v2996 = vld [vmem:[%s2916 + $0xb2] sm:$0xff]
        %v2997 = vld [vmem:[%s2916 + $0xc2] sm:$0xff]
        %v2998 = vld [vmem:[%s2916 + $0xca] sm:$0xff]
        %v2999 = vld [vmem:[%s2916 + $0xda] sm:$0xff]
        %v3000 = vld [vmem:[%s2916 + $0xe2] sm:$0xff]
        %v3001 = vld [vmem:[%s2916 + $0xf2] sm:$0xff]
        %v3002 = vld [vmem:[%s2916 + $0xfa] sm:$0xff]
        %v3003 = vld [vmem:[%s2916 + $0x10a] sm:$0xff]
        %v3004 = vld [vmem:[%s2916 + $0x112] sm:$0xff]
        %v3005 = vld [vmem:[%s2916 + $0x122] sm:$0xff]
        %v3006 = vld [vmem:[%s2916 + $0x12a] sm:$0xff]
        %v3007 = vld [vmem:[%s2916 + $0x13a] sm:$0xff]
        %v3008 = vld [vmem:[%s2916 + $0x142] sm:$0xff]
        %v3009 = vld [vmem:[%s2916 + $0x152] sm:$0xff]
        %v3010 = vld [vmem:[%s2916 + $0x15a] sm:$0xff]
        %v3011 = vld [vmem:[%s2916 + $0x16a] sm:$0xff]
        %v3012 = vld [vmem:[%s2916 + $0x172] sm:$0xff]
        %v3013 = vld [vmem:[#allocation9 + $0x180] sm:$0xff]
        %v3014 = vld [vmem:[#allocation9 + $0x188] sm:$0xff]
        %v3015 = vld [vmem:[#allocation9 + $0x190] sm:$0xff]
        %v3016 = vld [vmem:[#allocation9 + $0x198] sm:$0xff]
        %v3017 = vld [vmem:[#allocation9 + $0x1a0] sm:$0xff]
        %v3018 = vld [vmem:[#allocation9 + $0x1a8] sm:$0xff]
        %v3019 = vld [vmem:[#allocation9 + $0x1b0] sm:$0xff]
        %v3020 = vld [vmem:[#allocation9 + $0x1b8] sm:$0xff]
        %v3021 = vld [vmem:[#allocation9 + $0x1c0] sm:$0xff]
        %v3022 = vld [vmem:[#allocation9 + $0x1c8] sm:$0xff]
        %v3023 = vld [vmem:[#allocation9 + $0x1d0] sm:$0xff]
        %v3024 = vld [vmem:[#allocation9 + $0x1d8] sm:$0xff]
        %v3025 = vld [vmem:[#allocation9 + $0x1e0] sm:$0xff]
        %v3026 = vld [vmem:[#allocation9 + $0x1e8] sm:$0xff]
        %v3027 = vld [vmem:[#allocation9 + $0x1f0] sm:$0xff]
        %v3028 = vld [vmem:[#allocation9 + $0x1f8] sm:$0xff]
        %v3029 = vld [vmem:[#allocation9 + $0x200] sm:$0xff]
        %v3030 = vld [vmem:[#allocation9 + $0x208] sm:$0xff]
        %v3031 = vld [vmem:[#allocation9 + $0x210] sm:$0xff]
        %v3032 = vld [vmem:[#allocation9 + $0x218] sm:$0xff]
        %v3033 = vld [vmem:[#allocation9 + $0x220] sm:$0xff]
        %v3034 = vld [vmem:[#allocation9 + $0x228] sm:$0xff]
        %v3035 = vld [vmem:[#allocation9 + $0x230] sm:$0xff]
        %v3036 = vld [vmem:[#allocation9 + $0x238] sm:$0xff]
        %v3037 = vld [vmem:[#allocation9 + $0x240] sm:$0xff]
        %v3038 = vld [vmem:[#allocation9 + $0x248] sm:$0xff]
        %v3039 = vld [vmem:[#allocation9 + $0x250] sm:$0xff]
        %v3040 = vld [vmem:[#allocation9 + $0x258] sm:$0xff]
        %v3041 = vld [vmem:[#allocation9 + $0x260] sm:$0xff]
        %v3042 = vld [vmem:[#allocation9 + $0x268] sm:$0xff]
        %v3043 = vld [vmem:[#allocation9 + $0x270] sm:$0xff]
        %v3044 = vld [vmem:[#allocation9 + $0x278] sm:$0xff]
        %v3045 = vld [vmem:[#allocation9 + $0x280] sm:$0xff]
        %v3046 = vld [vmem:[#allocation9 + $0x288] sm:$0xff]
        %v3047 = vld [vmem:[#allocation9 + $0x290] sm:$0xff]
        %v3048 = vld [vmem:[#allocation9 + $0x298] sm:$0xff]
        %v3049 = vld [vmem:[#allocation9 + $0x2a0] sm:$0xff]
        %v3050 = vld [vmem:[#allocation9 + $0x2a8] sm:$0xff]
        %v3051 = vld [vmem:[#allocation9 + $0x2b0] sm:$0xff]
        %v3052 = vld [vmem:[#allocation9 + $0x2b8] sm:$0xff]
        %v3053 = vld [vmem:[#allocation9 + $0x2c0] sm:$0xff]
        %v3054 = vld [vmem:[#allocation9 + $0x2c8] sm:$0xff]
        %v3055 = vld [vmem:[#allocation9 + $0x2d0] sm:$0xff]
        %v3056 = vld [vmem:[#allocation9 + $0x2d8] sm:$0xff]
        %v3057 = vld [vmem:[#allocation9 + $0x2e0] sm:$0xff]
        %v3058 = vld [vmem:[#allocation9 + $0x2e8] sm:$0xff]
        %v3059 = vld [vmem:[#allocation9 + $0x2f0] sm:$0xff]
        %v3060 = vld [vmem:[#allocation9 + $0x2f8] sm:$0xff]
        %3061 = vmatprep.subr.mxu0 0.0
        %3062 = vmatpush1.msra.mxu0 %v3028
        %3063 = vmatprep.subr.mxu0 0.0
        %3064 = vmatpush1.msra.mxu0 %v3027
        %3065 = vmatprep.subr.mxu0 0.0
        %3066 = vmatpush1.msra.mxu0 %v3026
        %3067 = vmatprep.subr.mxu0 0.0
        %3068 = vmatpush1.msra.mxu0 %v3025
        %3069 = vmatprep.subr.mxu0 0.0
        %3070 = vmatpush1.msra.mxu0 %v3024
        %3071 = vmatprep.subr.mxu0 0.0
        %3072 = vmatpush1.msra.mxu0 %v3023
        %3073 = vmatprep.subr.mxu0 0.0
        %3074 = vmatpush1.msra.mxu0 %v3022
        %3075 = vmatprep.subr.mxu0 0.0
        %3076 = vmatpush1.msra.mxu0 %v3021
        %3077 = vmatprep.subr.mxu0 0.0
        %3078 = vmatpush1.msra.mxu0 %v3020
        %3079 = vmatprep.subr.mxu0 0.0
        %3080 = vmatpush1.msra.mxu0 %v3019
        %3081 = vmatprep.subr.mxu0 0.0
        %3082 = vmatpush1.msra.mxu0 %v3018
        %3083 = vmatprep.subr.mxu0 0.0
        %3084 = vmatpush1.msra.mxu0 %v3017
        %3085 = vmatprep.subr.mxu0 0.0
        %3086 = vmatpush1.msra.mxu0 %v3016
        %3087 = vmatprep.subr.mxu0 0.0
        %3088 = vmatpush1.msra.mxu0 %v3015
        %3089 = vmatprep.subr.mxu0 0.0
        %3090 = vmatpush1.msra.mxu0 %v3014
        %3091 = vmatprep.subr.mxu0 0.0
        %3092 = vmatpush1.msra.mxu0 %v3013
        %3093 = vmatprep.subr.mxu0 0.0
        %3094 = vmatpush2.msra.mxu0 %v3044
        %3095 = vmatprep.subr.mxu0 0.0
        %3096 = vmatpush2.msra.mxu0 %v3043
        %3097 = vmatprep.subr.mxu0 0.0
        %3098 = vmatpush2.msra.mxu0 %v3042
        %3099 = vmatprep.subr.mxu0 0.0
        %3100 = vmatpush2.msra.mxu0 %v3041
        %3101 = vmatprep.subr.mxu0 0.0
        %3102 = vmatpush2.msra.mxu0 %v3040
        %3103 = vmatprep.subr.mxu0 0.0
        %3104 = vmatpush2.msra.mxu0 %v3039
        %3105 = vmatprep.subr.mxu0 0.0
        %3106 = vmatpush2.msra.mxu0 %v3038
        %3107 = vmatprep.subr.mxu0 0.0
        %3108 = vmatpush2.msra.mxu0 %v3037
        %3109 = vmatprep.subr.mxu0 0.0
        %3110 = vmatpush2.msra.mxu0 %v3036
        %3111 = vmatprep.subr.mxu0 0.0
        %3112 = vmatpush2.msra.mxu0 %v3035
        %3113 = vmatprep.subr.mxu0 0.0
        %3114 = vmatpush2.msra.mxu0 %v3034
        %3115 = vmatprep.subr.mxu0 0.0
        %3116 = vmatpush2.msra.mxu0 %v3033
        %3117 = vmatprep.subr.mxu0 0.0
        %3118 = vmatpush2.msra.mxu0 %v3032
        %3119 = vmatprep.subr.mxu0 0.0
        %3120 = vmatpush2.msra.mxu0 %v3031
        %3121 = vmatprep.subr.mxu0 0.0
        %3122 = vmatpush2.msra.mxu0 %v3030
        %3123 = vmatprep.subr.mxu0 0.0
        %3124 = vmatpush2.msra.mxu0 %v3029
        %3125 = vmatprep.mubr.f32.mxu0 %v2949
        %3126 = vmatmul.mubr.f32.gmra.mxu0 %v2917
        %v3127 = vpop.f32.mrf.mxu0
        %v3128 = vadd.f32 0.0, %v3127
        %v3129 = vpop.f32.mrf.mxu0
        %3130 = vmatprep.mubr.f32.mxu0 %v2950
        %3131 = vmatmul.mubr.f32.gmra.mxu0 %v2918
        %v3132 = vpop.f32.mrf.mxu0
        %v3133 = vadd.f32 0.0, %v3132
        %v3134 = vpop.f32.mrf.mxu0
        %3135 = vmatprep.mubr.f32.mxu0 %v2951
        %3136 = vmatmul.mubr.f32.gmra.mxu0 %v2919
        %v3137 = vpop.f32.mrf.mxu0
        %v3138 = vadd.f32 0.0, %v3137
        %v3139 = vpop.f32.mrf.mxu0
        %3140 = vmatprep.mubr.f32.mxu0 %v2952
        %3141 = vmatmul.mubr.f32.gmra.mxu0 %v2920
        %v3142 = vpop.f32.mrf.mxu0
        %v3143 = vadd.f32 0.0, %v3142
        %v3144 = vpop.f32.mrf.mxu0
        %3145 = vmatprep.mubr.f32.mxu0 %v2953
        %3146 = vmatmul.mubr.f32.gmra.mxu0 %v2921
        %v3147 = vpop.f32.mrf.mxu0
        %v3148 = vadd.f32 0.0, %v3147
        %v3149 = vpop.f32.mrf.mxu0
        %3150 = vmatprep.mubr.f32.mxu0 %v2954
        %3151 = vmatmul.mubr.f32.gmra.mxu0 %v2922
        %v3152 = vpop.f32.mrf.mxu0
        %v3153 = vadd.f32 0.0, %v3152
        %v3154 = vpop.f32.mrf.mxu0
        %3155 = vmatprep.mubr.f32.mxu0 %v2955
        %3156 = vmatmul.mubr.f32.gmra.mxu0 %v2923
        %v3157 = vpop.f32.mrf.mxu0
        %v3158 = vadd.f32 0.0, %v3157
        %v3159 = vpop.f32.mrf.mxu0
        %3160 = vmatprep.mubr.f32.mxu0 %v2956
        %3161 = vmatmul.mubr.f32.gmra.mxu0 %v2924
        %v3162 = vpop.f32.mrf.mxu0
        %v3163 = vadd.f32 0.0, %v3162
        %v3164 = vpop.f32.mrf.mxu0
        %3165 = vmatprep.mubr.f32.mxu0 %v2957
        %3166 = vmatmul.mubr.f32.gmra.mxu0 %v2925
        %v3167 = vpop.f32.mrf.mxu0
        %v3168 = vadd.f32 0.0, %v3167
        %v3169 = vpop.f32.mrf.mxu0
        %3170 = vmatprep.mubr.f32.mxu0 %v2958
        %3171 = vmatmul.mubr.f32.gmra.mxu0 %v2926
        %v3172 = vpop.f32.mrf.mxu0
        %v3173 = vadd.f32 0.0, %v3172
        %v3174 = vpop.f32.mrf.mxu0
        %3175 = vmatprep.mubr.f32.mxu0 %v2959
        %3176 = vmatmul.mubr.f32.gmra.mxu0 %v2927
        %v3177 = vpop.f32.mrf.mxu0
        %v3178 = vadd.f32 0.0, %v3177
        %v3179 = vpop.f32.mrf.mxu0
        %3180 = vmatprep.mubr.f32.mxu0 %v2960
        %3181 = vmatmul.mubr.f32.gmra.mxu0 %v2928
        %v3182 = vpop.f32.mrf.mxu0
        %v3183 = vadd.f32 0.0, %v3182
        %v3184 = vpop.f32.mrf.mxu0
        %3185 = vmatprep.mubr.f32.mxu0 %v2961
        %3186 = vmatmul.mubr.f32.gmra.mxu0 %v2929
        %v3187 = vpop.f32.mrf.mxu0
        %v3188 = vadd.f32 0.0, %v3187
        %v3189 = vpop.f32.mrf.mxu0
        %3190 = vmatprep.mubr.f32.mxu0 %v2962
        %3191 = vmatmul.mubr.f32.gmra.mxu0 %v2930
        %v3192 = vpop.f32.mrf.mxu0
        %v3193 = vadd.f32 0.0, %v3192
        %v3194 = vpop.f32.mrf.mxu0
        %3195 = vmatprep.mubr.f32.mxu0 %v2963
        %3196 = vmatmul.mubr.f32.gmra.mxu0 %v2931
        %v3197 = vpop.f32.mrf.mxu0
        %v3198 = vadd.f32 0.0, %v3197
        %v3199 = vpop.f32.mrf.mxu0
        %3200 = vmatprep.mubr.f32.mxu0 %v2964
        %3201 = vmatmul.mubr.f32.gmra.mxu0 %v2932
        %v3202 = vpop.f32.mrf.mxu0
        %v3203 = vadd.f32 0.0, %v3202
        %v3204 = vpop.f32.mrf.mxu0
        %3205 = vmatprep.mubr.f32.mxu0 %v2965
        %3206 = vmatmul.mubr.f32.gmra.mxu0 %v2933
        %v3207 = vpop.f32.mrf.mxu0
        %v3208 = vadd.f32 0.0, %v3207
        %v3209 = vpop.f32.mrf.mxu0
        %3210 = vmatprep.mubr.f32.mxu0 %v2966
        %3211 = vmatmul.mubr.f32.gmra.mxu0 %v2934
        %v3212 = vpop.f32.mrf.mxu0
        %v3213 = vadd.f32 0.0, %v3212
        %v3214 = vpop.f32.mrf.mxu0
        %3215 = vmatprep.mubr.f32.mxu0 %v2967
        %3216 = vmatmul.mubr.f32.gmra.mxu0 %v2935
        %v3217 = vpop.f32.mrf.mxu0
        %v3218 = vadd.f32 0.0, %v3217
        %v3219 = vpop.f32.mrf.mxu0
        %3220 = vmatprep.mubr.f32.mxu0 %v2968
        %3221 = vmatmul.mubr.f32.gmra.mxu0 %v2936
        %v3222 = vpop.f32.mrf.mxu0
        %v3223 = vadd.f32 0.0, %v3222
        %v3224 = vpop.f32.mrf.mxu0
        %3225 = vmatprep.mubr.f32.mxu0 %v2969
        %3226 = vmatmul.mubr.f32.gmra.mxu0 %v2937
        %v3227 = vpop.f32.mrf.mxu0
        %v3228 = vadd.f32 0.0, %v3227
        %v3229 = vpop.f32.mrf.mxu0
        %3230 = vmatprep.mubr.f32.mxu0 %v2970
        %3231 = vmatmul.mubr.f32.gmra.mxu0 %v2938
        %v3232 = vpop.f32.mrf.mxu0
        %v3233 = vadd.f32 0.0, %v3232
        %v3234 = vpop.f32.mrf.mxu0
        %3235 = vmatprep.mubr.f32.mxu0 %v2971
        %3236 = vmatmul.mubr.f32.gmra.mxu0 %v2939
        %v3237 = vpop.f32.mrf.mxu0
        %v3238 = vadd.f32 0.0, %v3237
        %v3239 = vpop.f32.mrf.mxu0
        %3240 = vmatprep.mubr.f32.mxu0 %v2972
        %3241 = vmatmul.mubr.f32.gmra.mxu0 %v2940
        %v3242 = vpop.f32.mrf.mxu0
        %v3243 = vadd.f32 0.0, %v3242
        %v3244 = vpop.f32.mrf.mxu0
        %3245 = vmatprep.mubr.f32.mxu0 %v2973
        %3246 = vmatmul.mubr.f32.gmra.mxu0 %v2941
        %v3247 = vpop.f32.mrf.mxu0
        %v3248 = vadd.f32 0.0, %v3247
        %v3249 = vpop.f32.mrf.mxu0
        %3250 = vmatprep.mubr.f32.mxu0 %v2974
        %3251 = vmatmul.mubr.f32.gmra.mxu0 %v2942
        %v3252 = vpop.f32.mrf.mxu0
        %v3253 = vadd.f32 0.0, %v3252
        %v3254 = vpop.f32.mrf.mxu0
        %3255 = vmatprep.mubr.f32.mxu0 %v2975
        %3256 = vmatmul.mubr.f32.gmra.mxu0 %v2943
        %v3257 = vpop.f32.mrf.mxu0
        %v3258 = vadd.f32 0.0, %v3257
        %v3259 = vpop.f32.mrf.mxu0
        %3260 = vmatprep.mubr.f32.mxu0 %v2976
        %3261 = vmatmul.mubr.f32.gmra.mxu0 %v2944
        %v3262 = vpop.f32.mrf.mxu0
        %v3263 = vadd.f32 0.0, %v3262
        %v3264 = vpop.f32.mrf.mxu0
        %3265 = vmatprep.mubr.f32.mxu0 %v2977
        %3266 = vmatmul.mubr.f32.gmra.mxu0 %v2945
        %v3267 = vpop.f32.mrf.mxu0
        %v3268 = vadd.f32 0.0, %v3267
        %v3269 = vpop.f32.mrf.mxu0
        %3270 = vmatprep.mubr.f32.mxu0 %v2978
        %3271 = vmatmul.mubr.f32.gmra.mxu0 %v2946
        %v3272 = vpop.f32.mrf.mxu0
        %v3273 = vadd.f32 0.0, %v3272
        %v3274 = vpop.f32.mrf.mxu0
        %3275 = vmatprep.mubr.f32.mxu0 %v2979
        %3276 = vmatmul.mubr.f32.gmra.mxu0 %v2947
        %v3277 = vpop.f32.mrf.mxu0
        %v3278 = vadd.f32 0.0, %v3277
        %v3279 = vpop.f32.mrf.mxu0
        %3280 = vmatprep.mubr.f32.mxu0 %v2980
        %3281 = vmatmul.mubr.f32.gmra.mxu0 %v2948
        %v3282 = vpop.f32.mrf.mxu0
        %v3283 = vadd.f32 0.0, %v3282
        %v3284 = vpop.f32.mrf.mxu0
        %3285 = vdwg.mxu0
        %3286 = vmatprep.subr.mxu0 0.0
        %3287 = vmatpush1.msra.mxu0 %v3060
        %3288 = vmatprep.subr.mxu0 0.0
        %3289 = vmatpush1.msra.mxu0 %v3059
        %3290 = vmatprep.subr.mxu0 0.0
        %3291 = vmatpush1.msra.mxu0 %v3058
        %3292 = vmatprep.subr.mxu0 0.0
        %3293 = vmatpush1.msra.mxu0 %v3057
        %3294 = vmatprep.subr.mxu0 0.0
        %3295 = vmatpush1.msra.mxu0 %v3056
        %3296 = vmatprep.subr.mxu0 0.0
        %3297 = vmatpush1.msra.mxu0 %v3055
        %3298 = vmatprep.subr.mxu0 0.0
        %3299 = vmatpush1.msra.mxu0 %v3054
        %3300 = vmatprep.subr.mxu0 0.0
        %3301 = vmatpush1.msra.mxu0 %v3053
        %3302 = vmatprep.subr.mxu0 0.0
        %3303 = vmatpush1.msra.mxu0 %v3052
        %3304 = vmatprep.subr.mxu0 0.0
        %3305 = vmatpush1.msra.mxu0 %v3051
        %3306 = vmatprep.subr.mxu0 0.0
        %3307 = vmatpush1.msra.mxu0 %v3050
        %3308 = vmatprep.subr.mxu0 0.0
        %3309 = vmatpush1.msra.mxu0 %v3049
        %3310 = vmatprep.subr.mxu0 0.0
        %3311 = vmatpush1.msra.mxu0 %v3048
        %3312 = vmatprep.subr.mxu0 0.0
        %3313 = vmatpush1.msra.mxu0 %v3047
        %3314 = vmatprep.subr.mxu0 0.0
        %3315 = vmatpush1.msra.mxu0 %v3046
        %3316 = vmatprep.subr.mxu0 0.0
        %3317 = vmatpush1.msra.mxu0 %v3045
        %3318 = vmatprep.subr.mxu0 0.0
        %3319 = vmatpush2.msra.mxu0 0.0
        %3320 = vmatprep.subr.mxu0 0.0
        %3321 = vmatpush2.msra.mxu0 0.0
        %3322 = vmatprep.subr.mxu0 0.0
        %3323 = vmatpush2.msra.mxu0 0.0
        %3324 = vmatprep.subr.mxu0 0.0
        %3325 = vmatpush2.msra.mxu0 0.0
        %3326 = vmatprep.subr.mxu0 0.0
        %3327 = vmatpush2.msra.mxu0 0.0
        %3328 = vmatprep.subr.mxu0 0.0
        %3329 = vmatpush2.msra.mxu0 0.0
        %3330 = vmatprep.subr.mxu0 0.0
        %3331 = vmatpush2.msra.mxu0 0.0
        %3332 = vmatprep.subr.mxu0 0.0
        %3333 = vmatpush2.msra.mxu0 0.0
        %3334 = vmatprep.subr.mxu0 0.0
        %3335 = vmatpush2.msra.mxu0 0.0
        %3336 = vmatprep.subr.mxu0 0.0
        %3337 = vmatpush2.msra.mxu0 0.0
        %3338 = vmatprep.subr.mxu0 0.0
        %3339 = vmatpush2.msra.mxu0 0.0
        %3340 = vmatprep.subr.mxu0 0.0
        %3341 = vmatpush2.msra.mxu0 0.0
        %3342 = vmatprep.subr.mxu0 0.0
        %3343 = vmatpush2.msra.mxu0 0.0
        %3344 = vmatprep.subr.mxu0 0.0
        %3345 = vmatpush2.msra.mxu0 0.0
        %3346 = vmatprep.subr.mxu0 0.0
        %3347 = vmatpush2.msra.mxu0 0.0
        %3348 = vmatprep.subr.mxu0 0.0
        %3349 = vmatpush2.msra.mxu0 0.0
        %3350 = vmatprep.mubr.f32.mxu0 0.0
        %3351 = vmatmul.mubr.f32.gmra.mxu0 %v2981
        %v3352 = vpop.f32.mrf.mxu0
        %v3353 = vadd.f32 %v3128, %v3352
        %v3354 = vpop.f32.mrf.mxu0
        %3355 = vmatprep.mubr.f32.mxu0 0.0
        %3356 = vmatmul.mubr.f32.gmra.mxu0 %v2982
        %v3357 = vpop.f32.mrf.mxu0
        %v3358 = vadd.f32 %v3133, %v3357
        %v3359 = vpop.f32.mrf.mxu0
        %3360 = vmatprep.mubr.f32.mxu0 0.0
        %3361 = vmatmul.mubr.f32.gmra.mxu0 %v2983
        %v3362 = vpop.f32.mrf.mxu0
        %v3363 = vadd.f32 %v3138, %v3362
        %v3364 = vpop.f32.mrf.mxu0
        %3365 = vmatprep.mubr.f32.mxu0 0.0
        %3366 = vmatmul.mubr.f32.gmra.mxu0 %v2984
        %v3367 = vpop.f32.mrf.mxu0
        %v3368 = vadd.f32 %v3143, %v3367
        %v3369 = vpop.f32.mrf.mxu0
        %3370 = vmatprep.mubr.f32.mxu0 0.0
        %3371 = vmatmul.mubr.f32.gmra.mxu0 %v2985
        %v3372 = vpop.f32.mrf.mxu0
        %v3373 = vadd.f32 %v3148, %v3372
        %v3374 = vpop.f32.mrf.mxu0
        %3375 = vmatprep.mubr.f32.mxu0 0.0
        %3376 = vmatmul.mubr.f32.gmra.mxu0 %v2986
        %v3377 = vpop.f32.mrf.mxu0
        %v3378 = vadd.f32 %v3153, %v3377
        %v3379 = vpop.f32.mrf.mxu0
        %3380 = vmatprep.mubr.f32.mxu0 0.0
        %3381 = vmatmul.mubr.f32.gmra.mxu0 %v2987
        %v3382 = vpop.f32.mrf.mxu0
        %v3383 = vadd.f32 %v3158, %v3382
        %v3384 = vpop.f32.mrf.mxu0
        %3385 = vmatprep.mubr.f32.mxu0 0.0
        %3386 = vmatmul.mubr.f32.gmra.mxu0 %v2988
        %v3387 = vpop.f32.mrf.mxu0
        %v3388 = vadd.f32 %v3163, %v3387
        %v3389 = vpop.f32.mrf.mxu0
        %3390 = vmatprep.mubr.f32.mxu0 0.0
        %3391 = vmatmul.mubr.f32.gmra.mxu0 %v2989
        %v3392 = vpop.f32.mrf.mxu0
        %v3393 = vadd.f32 %v3168, %v3392
        %v3394 = vpop.f32.mrf.mxu0
        %3395 = vmatprep.mubr.f32.mxu0 0.0
        %3396 = vmatmul.mubr.f32.gmra.mxu0 %v2990
        %v3397 = vpop.f32.mrf.mxu0
        %v3398 = vadd.f32 %v3173, %v3397
        %v3399 = vpop.f32.mrf.mxu0
        %3400 = vmatprep.mubr.f32.mxu0 0.0
        %3401 = vmatmul.mubr.f32.gmra.mxu0 %v2991
        %v3402 = vpop.f32.mrf.mxu0
        %v3403 = vadd.f32 %v3178, %v3402
        %v3404 = vpop.f32.mrf.mxu0
        %3405 = vmatprep.mubr.f32.mxu0 0.0
        %3406 = vmatmul.mubr.f32.gmra.mxu0 %v2992
        %v3407 = vpop.f32.mrf.mxu0
        %v3408 = vadd.f32 %v3183, %v3407
        %v3409 = vpop.f32.mrf.mxu0
        %3410 = vmatprep.mubr.f32.mxu0 0.0
        %3411 = vmatmul.mubr.f32.gmra.mxu0 %v2993
        %v3412 = vpop.f32.mrf.mxu0
        %v3413 = vadd.f32 %v3188, %v3412
        %v3414 = vpop.f32.mrf.mxu0
        %3415 = vmatprep.mubr.f32.mxu0 0.0
        %3416 = vmatmul.mubr.f32.gmra.mxu0 %v2994
        %v3417 = vpop.f32.mrf.mxu0
        %v3418 = vadd.f32 %v3193, %v3417
        %v3419 = vpop.f32.mrf.mxu0
        %3420 = vmatprep.mubr.f32.mxu0 0.0
        %3421 = vmatmul.mubr.f32.gmra.mxu0 %v2995
        %v3422 = vpop.f32.mrf.mxu0
        %v3423 = vadd.f32 %v3198, %v3422
        %v3424 = vpop.f32.mrf.mxu0
        %3425 = vmatprep.mubr.f32.mxu0 0.0
        %3426 = vmatmul.mubr.f32.gmra.mxu0 %v2996
        %v3427 = vpop.f32.mrf.mxu0
        %v3428 = vadd.f32 %v3203, %v3427
        %v3429 = vpop.f32.mrf.mxu0
        %3430 = vmatprep.mubr.f32.mxu0 0.0
        %3431 = vmatmul.mubr.f32.gmra.mxu0 %v2997
        %v3432 = vpop.f32.mrf.mxu0
        %v3433 = vadd.f32 %v3208, %v3432
        %v3434 = vpop.f32.mrf.mxu0
        %3435 = vmatprep.mubr.f32.mxu0 0.0
        %3436 = vmatmul.mubr.f32.gmra.mxu0 %v2998
        %v3437 = vpop.f32.mrf.mxu0
        %v3438 = vadd.f32 %v3213, %v3437
        %v3439 = vpop.f32.mrf.mxu0
        %3440 = vmatprep.mubr.f32.mxu0 0.0
        %3441 = vmatmul.mubr.f32.gmra.mxu0 %v2999
        %v3442 = vpop.f32.mrf.mxu0
        %v3443 = vadd.f32 %v3218, %v3442
        %v3444 = vpop.f32.mrf.mxu0
        %3445 = vmatprep.mubr.f32.mxu0 0.0
        %3446 = vmatmul.mubr.f32.gmra.mxu0 %v3000
        %v3447 = vpop.f32.mrf.mxu0
        %v3448 = vadd.f32 %v3223, %v3447
        %v3449 = vpop.f32.mrf.mxu0
        %3450 = vmatprep.mubr.f32.mxu0 0.0
        %3451 = vmatmul.mubr.f32.gmra.mxu0 %v3001
        %v3452 = vpop.f32.mrf.mxu0
        %v3453 = vadd.f32 %v3228, %v3452
        %v3454 = vpop.f32.mrf.mxu0
        %3455 = vmatprep.mubr.f32.mxu0 0.0
        %3456 = vmatmul.mubr.f32.gmra.mxu0 %v3002
        %v3457 = vpop.f32.mrf.mxu0
        %v3458 = vadd.f32 %v3233, %v3457
        %v3459 = vpop.f32.mrf.mxu0
        %3460 = vmatprep.mubr.f32.mxu0 0.0
        %3461 = vmatmul.mubr.f32.gmra.mxu0 %v3003
        %v3462 = vpop.f32.mrf.mxu0
        %v3463 = vadd.f32 %v3238, %v3462
        %v3464 = vpop.f32.mrf.mxu0
        %3465 = vmatprep.mubr.f32.mxu0 0.0
        %3466 = vmatmul.mubr.f32.gmra.mxu0 %v3004
        %v3467 = vpop.f32.mrf.mxu0
        %v3468 = vadd.f32 %v3243, %v3467
        %v3469 = vpop.f32.mrf.mxu0
        %3470 = vmatprep.mubr.f32.mxu0 0.0
        %3471 = vmatmul.mubr.f32.gmra.mxu0 %v3005
        %v3472 = vpop.f32.mrf.mxu0
        %v3473 = vadd.f32 %v3248, %v3472
        %v3474 = vpop.f32.mrf.mxu0
        %3475 = vmatprep.mubr.f32.mxu0 0.0
        %3476 = vmatmul.mubr.f32.gmra.mxu0 %v3006
        %v3477 = vpop.f32.mrf.mxu0
        %v3478 = vadd.f32 %v3253, %v3477
        %v3479 = vpop.f32.mrf.mxu0
        %3480 = vmatprep.mubr.f32.mxu0 0.0
        %3481 = vmatmul.mubr.f32.gmra.mxu0 %v3007
        %v3482 = vpop.f32.mrf.mxu0
        %v3483 = vadd.f32 %v3258, %v3482
        %v3484 = vpop.f32.mrf.mxu0
        %3485 = vmatprep.mubr.f32.mxu0 0.0
        %3486 = vmatmul.mubr.f32.gmra.mxu0 %v3008
        %v3487 = vpop.f32.mrf.mxu0
        %v3488 = vadd.f32 %v3263, %v3487
        %v3489 = vpop.f32.mrf.mxu0
        %3490 = vmatprep.mubr.f32.mxu0 0.0
        %3491 = vmatmul.mubr.f32.gmra.mxu0 %v3009
        %v3492 = vpop.f32.mrf.mxu0
        %v3493 = vadd.f32 %v3268, %v3492
        %v3494 = vpop.f32.mrf.mxu0
        %3495 = vmatprep.mubr.f32.mxu0 0.0
        %3496 = vmatmul.mubr.f32.gmra.mxu0 %v3010
        %v3497 = vpop.f32.mrf.mxu0
        %v3498 = vadd.f32 %v3273, %v3497
        %v3499 = vpop.f32.mrf.mxu0
        %3500 = vmatprep.mubr.f32.mxu0 0.0
        %3501 = vmatmul.mubr.f32.gmra.mxu0 %v3011
        %v3502 = vpop.f32.mrf.mxu0
        %v3503 = vadd.f32 %v3278, %v3502
        %v3504 = vpop.f32.mrf.mxu0
        %3505 = vmatprep.mubr.f32.mxu0 0.0
        %3506 = vmatmul.mubr.f32.gmra.mxu0 %v3012
        %v3507 = vpop.f32.mrf.mxu0
        %v3508 = vadd.f32 %v3283, %v3507
        %v3509 = vpop.f32.mrf.mxu0
        %3510 = vdwg.mxu0
        %3511 = vmatprep.subr.mxu0 0.0
        %3512 = vmatpush1.msra.mxu0 %v2883
        %3513 = vmatprep.subr.mxu0 0.0
        %3514 = vmatpush1.msra.mxu0 %v2882
        %3515 = vmatprep.subr.mxu0 0.0
        %3516 = vmatpush1.msra.mxu0 %v2881
        %3517 = vmatprep.subr.mxu0 0.0
        %3518 = vmatpush1.msra.mxu0 %v2880
        %3519 = vmatprep.subr.mxu0 0.0
        %3520 = vmatpush1.msra.mxu0 %v2879
        %3521 = vmatprep.subr.mxu0 0.0
        %3522 = vmatpush1.msra.mxu0 %v2878
        %3523 = vmatprep.subr.mxu0 0.0
        %3524 = vmatpush1.msra.mxu0 %v2877
        %3525 = vmatprep.subr.mxu0 0.0
        %3526 = vmatpush1.msra.mxu0 %v2876
        %3527 = vmatprep.subr.mxu0 0.0
        %3528 = vmatpush1.msra.mxu0 %v2875
        %3529 = vmatprep.subr.mxu0 0.0
        %3530 = vmatpush1.msra.mxu0 %v2874
        %3531 = vmatprep.subr.mxu0 0.0
        %3532 = vmatpush1.msra.mxu0 %v2873
        %3533 = vmatprep.subr.mxu0 0.0
        %3534 = vmatpush1.msra.mxu0 %v2872
        %3535 = vmatprep.subr.mxu0 0.0
        %3536 = vmatpush1.msra.mxu0 %v2871
        %3537 = vmatprep.subr.mxu0 0.0
        %3538 = vmatpush1.msra.mxu0 %v2870
        %3539 = vmatprep.subr.mxu0 0.0
        %3540 = vmatpush1.msra.mxu0 %v2869
        %3541 = vmatprep.subr.mxu0 0.0
        %3542 = vmatpush1.msra.mxu0 %v2868
        %3543 = vmatprep.subr.mxu0 0.0
        %3544 = vmatpush2.msra.mxu0 %v2899
        %3545 = vmatprep.subr.mxu0 0.0
        %3546 = vmatpush2.msra.mxu0 %v2898
        %3547 = vmatprep.subr.mxu0 0.0
        %3548 = vmatpush2.msra.mxu0 %v2897
        %3549 = vmatprep.subr.mxu0 0.0
        %3550 = vmatpush2.msra.mxu0 %v2896
        %3551 = vmatprep.subr.mxu0 0.0
        %3552 = vmatpush2.msra.mxu0 %v2895
        %3553 = vmatprep.subr.mxu0 0.0
        %3554 = vmatpush2.msra.mxu0 %v2894
        %3555 = vmatprep.subr.mxu0 0.0
        %3556 = vmatpush2.msra.mxu0 %v2893
        %3557 = vmatprep.subr.mxu0 0.0
        %3558 = vmatpush2.msra.mxu0 %v2892
        %3559 = vmatprep.subr.mxu0 0.0
        %3560 = vmatpush2.msra.mxu0 %v2891
        %3561 = vmatprep.subr.mxu0 0.0
        %3562 = vmatpush2.msra.mxu0 %v2890
        %3563 = vmatprep.subr.mxu0 0.0
        %3564 = vmatpush2.msra.mxu0 %v2889
        %3565 = vmatprep.subr.mxu0 0.0
        %3566 = vmatpush2.msra.mxu0 %v2888
        %3567 = vmatprep.subr.mxu0 0.0
        %3568 = vmatpush2.msra.mxu0 %v2887
        %3569 = vmatprep.subr.mxu0 0.0
        %3570 = vmatpush2.msra.mxu0 %v2886
        %3571 = vmatprep.subr.mxu0 0.0
        %3572 = vmatpush2.msra.mxu0 %v2885
        %3573 = vmatprep.subr.mxu0 0.0
        %3574 = vmatpush2.msra.mxu0 %v2884
        %3575 = vmatprep.mubr.f32.mxu0 %v2804
        %3576 = vmatmul.mubr.f32.gmra.mxu0 %v2772
        %v3577 = vpop.f32.mrf.mxu0
        %v3578 = vadd.f32 %v3353, %v3577
        %v3579 = vpop.f32.mrf.mxu0
        %3580 = vmatprep.mubr.f32.mxu0 %v2805
        %3581 = vmatmul.mubr.f32.gmra.mxu0 %v2773
        %v3582 = vpop.f32.mrf.mxu0
        %v3583 = vadd.f32 %v3358, %v3582
        %v3584 = vpop.f32.mrf.mxu0
        %3585 = vmatprep.mubr.f32.mxu0 %v2806
        %3586 = vmatmul.mubr.f32.gmra.mxu0 %v2774
        %v3587 = vpop.f32.mrf.mxu0
        %v3588 = vadd.f32 %v3363, %v3587
        %v3589 = vpop.f32.mrf.mxu0
        %3590 = vmatprep.mubr.f32.mxu0 %v2807
        %3591 = vmatmul.mubr.f32.gmra.mxu0 %v2775
        %v3592 = vpop.f32.mrf.mxu0
        %v3593 = vadd.f32 %v3368, %v3592
        %v3594 = vpop.f32.mrf.mxu0
        %3595 = vmatprep.mubr.f32.mxu0 %v2808
        %3596 = vmatmul.mubr.f32.gmra.mxu0 %v2776
        %v3597 = vpop.f32.mrf.mxu0
        %v3598 = vadd.f32 %v3373, %v3597
        %v3599 = vpop.f32.mrf.mxu0
        %3600 = vmatprep.mubr.f32.mxu0 %v2809
        %3601 = vmatmul.mubr.f32.gmra.mxu0 %v2777
        %v3602 = vpop.f32.mrf.mxu0
        %v3603 = vadd.f32 %v3378, %v3602
        %v3604 = vpop.f32.mrf.mxu0
        %3605 = vmatprep.mubr.f32.mxu0 %v2810
        %3606 = vmatmul.mubr.f32.gmra.mxu0 %v2778
        %v3607 = vpop.f32.mrf.mxu0
        %v3608 = vadd.f32 %v3383, %v3607
        %v3609 = vpop.f32.mrf.mxu0
        %3610 = vmatprep.mubr.f32.mxu0 %v2811
        %3611 = vmatmul.mubr.f32.gmra.mxu0 %v2779
        %v3612 = vpop.f32.mrf.mxu0
        %v3613 = vadd.f32 %v3388, %v3612
        %v3614 = vpop.f32.mrf.mxu0
        %3615 = vmatprep.mubr.f32.mxu0 %v2812
        %3616 = vmatmul.mubr.f32.gmra.mxu0 %v2780
        %v3617 = vpop.f32.mrf.mxu0
        %v3618 = vadd.f32 %v3393, %v3617
        %v3619 = vpop.f32.mrf.mxu0
        %3620 = vmatprep.mubr.f32.mxu0 %v2813
        %3621 = vmatmul.mubr.f32.gmra.mxu0 %v2781
        %v3622 = vpop.f32.mrf.mxu0
        %v3623 = vadd.f32 %v3398, %v3622
        %v3624 = vpop.f32.mrf.mxu0
        %3625 = vmatprep.mubr.f32.mxu0 %v2814
        %3626 = vmatmul.mubr.f32.gmra.mxu0 %v2782
        %v3627 = vpop.f32.mrf.mxu0
        %v3628 = vadd.f32 %v3403, %v3627
        %v3629 = vpop.f32.mrf.mxu0
        %3630 = vmatprep.mubr.f32.mxu0 %v2815
        %3631 = vmatmul.mubr.f32.gmra.mxu0 %v2783
        %v3632 = vpop.f32.mrf.mxu0
        %v3633 = vadd.f32 %v3408, %v3632
        %v3634 = vpop.f32.mrf.mxu0
        %3635 = vmatprep.mubr.f32.mxu0 %v2816
        %3636 = vmatmul.mubr.f32.gmra.mxu0 %v2784
        %v3637 = vpop.f32.mrf.mxu0
        %v3638 = vadd.f32 %v3413, %v3637
        %v3639 = vpop.f32.mrf.mxu0
        %3640 = vmatprep.mubr.f32.mxu0 %v2817
        %3641 = vmatmul.mubr.f32.gmra.mxu0 %v2785
        %v3642 = vpop.f32.mrf.mxu0
        %v3643 = vadd.f32 %v3418, %v3642
        %v3644 = vpop.f32.mrf.mxu0
        %3645 = vmatprep.mubr.f32.mxu0 %v2818
        %3646 = vmatmul.mubr.f32.gmra.mxu0 %v2786
        %v3647 = vpop.f32.mrf.mxu0
        %v3648 = vadd.f32 %v3423, %v3647
        %v3649 = vpop.f32.mrf.mxu0
        %3650 = vmatprep.mubr.f32.mxu0 %v2819
        %3651 = vmatmul.mubr.f32.gmra.mxu0 %v2787
        %v3652 = vpop.f32.mrf.mxu0
        %v3653 = vadd.f32 %v3428, %v3652
        %v3654 = vpop.f32.mrf.mxu0
        %3655 = vmatprep.mubr.f32.mxu0 %v2820
        %3656 = vmatmul.mubr.f32.gmra.mxu0 %v2788
        %v3657 = vpop.f32.mrf.mxu0
        %v3658 = vadd.f32 %v3433, %v3657
        %v3659 = vpop.f32.mrf.mxu0
        %3660 = vmatprep.mubr.f32.mxu0 %v2821
        %3661 = vmatmul.mubr.f32.gmra.mxu0 %v2789
        %v3662 = vpop.f32.mrf.mxu0
        %v3663 = vadd.f32 %v3438, %v3662
        %v3664 = vpop.f32.mrf.mxu0
        %3665 = vmatprep.mubr.f32.mxu0 %v2822
        %3666 = vmatmul.mubr.f32.gmra.mxu0 %v2790
        %v3667 = vpop.f32.mrf.mxu0
        %v3668 = vadd.f32 %v3443, %v3667
        %v3669 = vpop.f32.mrf.mxu0
        %3670 = vmatprep.mubr.f32.mxu0 %v2823
        %3671 = vmatmul.mubr.f32.gmra.mxu0 %v2791
        %v3672 = vpop.f32.mrf.mxu0
        %v3673 = vadd.f32 %v3448, %v3672
        %v3674 = vpop.f32.mrf.mxu0
        %3675 = vmatprep.mubr.f32.mxu0 %v2824
        %3676 = vmatmul.mubr.f32.gmra.mxu0 %v2792
        %v3677 = vpop.f32.mrf.mxu0
        %v3678 = vadd.f32 %v3453, %v3677
        %v3679 = vpop.f32.mrf.mxu0
        %3680 = vmatprep.mubr.f32.mxu0 %v2825
        %3681 = vmatmul.mubr.f32.gmra.mxu0 %v2793
        %v3682 = vpop.f32.mrf.mxu0
        %v3683 = vadd.f32 %v3458, %v3682
        %v3684 = vpop.f32.mrf.mxu0
        %3685 = vmatprep.mubr.f32.mxu0 %v2826
        %3686 = vmatmul.mubr.f32.gmra.mxu0 %v2794
        %v3687 = vpop.f32.mrf.mxu0
        %v3688 = vadd.f32 %v3463, %v3687
        %v3689 = vpop.f32.mrf.mxu0
        %3690 = vmatprep.mubr.f32.mxu0 %v2827
        %3691 = vmatmul.mubr.f32.gmra.mxu0 %v2795
        %v3692 = vpop.f32.mrf.mxu0
        %v3693 = vadd.f32 %v3468, %v3692
        %v3694 = vpop.f32.mrf.mxu0
        %3695 = vmatprep.mubr.f32.mxu0 %v2828
        %3696 = vmatmul.mubr.f32.gmra.mxu0 %v2796
        %v3697 = vpop.f32.mrf.mxu0
        %v3698 = vadd.f32 %v3473, %v3697
        %v3699 = vpop.f32.mrf.mxu0
        %3700 = vmatprep.mubr.f32.mxu0 %v2829
        %3701 = vmatmul.mubr.f32.gmra.mxu0 %v2797
        %v3702 = vpop.f32.mrf.mxu0
        %v3703 = vadd.f32 %v3478, %v3702
        %v3704 = vpop.f32.mrf.mxu0
        %3705 = vmatprep.mubr.f32.mxu0 %v2830
        %3706 = vmatmul.mubr.f32.gmra.mxu0 %v2798
        %v3707 = vpop.f32.mrf.mxu0
        %v3708 = vadd.f32 %v3483, %v3707
        %v3709 = vpop.f32.mrf.mxu0
        %3710 = vmatprep.mubr.f32.mxu0 %v2831
        %3711 = vmatmul.mubr.f32.gmra.mxu0 %v2799
        %v3712 = vpop.f32.mrf.mxu0
        %v3713 = vadd.f32 %v3488, %v3712
        %v3714 = vpop.f32.mrf.mxu0
        %3715 = vmatprep.mubr.f32.mxu0 %v2832
        %3716 = vmatmul.mubr.f32.gmra.mxu0 %v2800
        %v3717 = vpop.f32.mrf.mxu0
        %v3718 = vadd.f32 %v3493, %v3717
        %v3719 = vpop.f32.mrf.mxu0
        %3720 = vmatprep.mubr.f32.mxu0 %v2833
        %3721 = vmatmul.mubr.f32.gmra.mxu0 %v2801
        %v3722 = vpop.f32.mrf.mxu0
        %v3723 = vadd.f32 %v3498, %v3722
        %v3724 = vpop.f32.mrf.mxu0
        %3725 = vmatprep.mubr.f32.mxu0 %v2834
        %3726 = vmatmul.mubr.f32.gmra.mxu0 %v2802
        %v3727 = vpop.f32.mrf.mxu0
        %v3728 = vadd.f32 %v3503, %v3727
        %v3729 = vpop.f32.mrf.mxu0
        %3730 = vmatprep.mubr.f32.mxu0 %v2835
        %3731 = vmatmul.mubr.f32.gmra.mxu0 %v2803
        %v3732 = vpop.f32.mrf.mxu0
        %v3733 = vadd.f32 %v3508, %v3732
        %v3734 = vpop.f32.mrf.mxu0
        %3735 = vdwg.mxu0
        %3736 = vmatprep.subr.mxu0 0.0
        %3737 = vmatpush1.msra.mxu0 %v2915
        %3738 = vmatprep.subr.mxu0 0.0
        %3739 = vmatpush1.msra.mxu0 %v2914
        %3740 = vmatprep.subr.mxu0 0.0
        %3741 = vmatpush1.msra.mxu0 %v2913
        %3742 = vmatprep.subr.mxu0 0.0
        %3743 = vmatpush1.msra.mxu0 %v2912
        %3744 = vmatprep.subr.mxu0 0.0
        %3745 = vmatpush1.msra.mxu0 %v2911
        %3746 = vmatprep.subr.mxu0 0.0
        %3747 = vmatpush1.msra.mxu0 %v2910
        %3748 = vmatprep.subr.mxu0 0.0
        %3749 = vmatpush1.msra.mxu0 %v2909
        %3750 = vmatprep.subr.mxu0 0.0
        %3751 = vmatpush1.msra.mxu0 %v2908
        %3752 = vmatprep.subr.mxu0 0.0
        %3753 = vmatpush1.msra.mxu0 %v2907
        %3754 = vmatprep.subr.mxu0 0.0
        %3755 = vmatpush1.msra.mxu0 %v2906
        %3756 = vmatprep.subr.mxu0 0.0
        %3757 = vmatpush1.msra.mxu0 %v2905
        %3758 = vmatprep.subr.mxu0 0.0
        %3759 = vmatpush1.msra.mxu0 %v2904
        %3760 = vmatprep.subr.mxu0 0.0
        %3761 = vmatpush1.msra.mxu0 %v2903
        %3762 = vmatprep.subr.mxu0 0.0
        %3763 = vmatpush1.msra.mxu0 %v2902
        %3764 = vmatprep.subr.mxu0 0.0
        %3765 = vmatpush1.msra.mxu0 %v2901
        %3766 = vmatprep.subr.mxu0 0.0
        %3767 = vmatpush1.msra.mxu0 %v2900
        %3768 = vmatprep.subr.mxu0 0.0
        %3769 = vmatpush2.msra.mxu0 0.0
        %3770 = vmatprep.subr.mxu0 0.0
        %3771 = vmatpush2.msra.mxu0 0.0
        %3772 = vmatprep.subr.mxu0 0.0
        %3773 = vmatpush2.msra.mxu0 0.0
        %3774 = vmatprep.subr.mxu0 0.0
        %3775 = vmatpush2.msra.mxu0 0.0
        %3776 = vmatprep.subr.mxu0 0.0
        %3777 = vmatpush2.msra.mxu0 0.0
        %3778 = vmatprep.subr.mxu0 0.0
        %3779 = vmatpush2.msra.mxu0 0.0
        %3780 = vmatprep.subr.mxu0 0.0
        %3781 = vmatpush2.msra.mxu0 0.0
        %3782 = vmatprep.subr.mxu0 0.0
        %3783 = vmatpush2.msra.mxu0 0.0
        %3784 = vmatprep.subr.mxu0 0.0
        %3785 = vmatpush2.msra.mxu0 0.0
        %3786 = vmatprep.subr.mxu0 0.0
        %3787 = vmatpush2.msra.mxu0 0.0
        %3788 = vmatprep.subr.mxu0 0.0
        %3789 = vmatpush2.msra.mxu0 0.0
        %3790 = vmatprep.subr.mxu0 0.0
        %3791 = vmatpush2.msra.mxu0 0.0
        %3792 = vmatprep.subr.mxu0 0.0
        %3793 = vmatpush2.msra.mxu0 0.0
        %3794 = vmatprep.subr.mxu0 0.0
        %3795 = vmatpush2.msra.mxu0 0.0
        %3796 = vmatprep.subr.mxu0 0.0
        %3797 = vmatpush2.msra.mxu0 0.0
        %3798 = vmatprep.subr.mxu0 0.0
        %3799 = vmatpush2.msra.mxu0 0.0
        %3800 = vmatprep.mubr.f32.mxu0 0.0
        %3801 = vmatmul.mubr.f32.gmra.mxu0 %v2836
        %v3802 = vpop.f32.mrf.mxu0
        %v3803 = vadd.f32 %v3578, %v3802
        %v3804 = vpop.f32.mrf.mxu0
        %3805 = vmatprep.mubr.f32.mxu0 0.0
        %3806 = vmatmul.mubr.f32.gmra.mxu0 %v2837
        %v3807 = vpop.f32.mrf.mxu0
        %v3808 = vadd.f32 %v3583, %v3807
        %v3809 = vpop.f32.mrf.mxu0
        %3810 = vmatprep.mubr.f32.mxu0 0.0
        %3811 = vmatmul.mubr.f32.gmra.mxu0 %v2838
        %v3812 = vpop.f32.mrf.mxu0
        %v3813 = vadd.f32 %v3588, %v3812
        %v3814 = vpop.f32.mrf.mxu0
        %3815 = vmatprep.mubr.f32.mxu0 0.0
        %3816 = vmatmul.mubr.f32.gmra.mxu0 %v2839
        %v3817 = vpop.f32.mrf.mxu0
        %v3818 = vadd.f32 %v3593, %v3817
        %v3819 = vpop.f32.mrf.mxu0
        %3820 = vmatprep.mubr.f32.mxu0 0.0
        %3821 = vmatmul.mubr.f32.gmra.mxu0 %v2840
        %v3822 = vpop.f32.mrf.mxu0
        %v3823 = vadd.f32 %v3598, %v3822
        %v3824 = vpop.f32.mrf.mxu0
        %3825 = vmatprep.mubr.f32.mxu0 0.0
        %3826 = vmatmul.mubr.f32.gmra.mxu0 %v2841
        %v3827 = vpop.f32.mrf.mxu0
        %v3828 = vadd.f32 %v3603, %v3827
        %v3829 = vpop.f32.mrf.mxu0
        %3830 = vmatprep.mubr.f32.mxu0 0.0
        %3831 = vmatmul.mubr.f32.gmra.mxu0 %v2842
        %v3832 = vpop.f32.mrf.mxu0
        %v3833 = vadd.f32 %v3608, %v3832
        %v3834 = vpop.f32.mrf.mxu0
        %3835 = vmatprep.mubr.f32.mxu0 0.0
        %3836 = vmatmul.mubr.f32.gmra.mxu0 %v2843
        %v3837 = vpop.f32.mrf.mxu0
        %v3838 = vadd.f32 %v3613, %v3837
        %v3839 = vpop.f32.mrf.mxu0
        %3840 = vmatprep.mubr.f32.mxu0 0.0
        %3841 = vmatmul.mubr.f32.gmra.mxu0 %v2844
        %v3842 = vpop.f32.mrf.mxu0
        %v3843 = vadd.f32 %v3618, %v3842
        %v3844 = vpop.f32.mrf.mxu0
        %3845 = vmatprep.mubr.f32.mxu0 0.0
        %3846 = vmatmul.mubr.f32.gmra.mxu0 %v2845
        %v3847 = vpop.f32.mrf.mxu0
        %v3848 = vadd.f32 %v3623, %v3847
        %v3849 = vpop.f32.mrf.mxu0
        %3850 = vmatprep.mubr.f32.mxu0 0.0
        %3851 = vmatmul.mubr.f32.gmra.mxu0 %v2846
        %v3852 = vpop.f32.mrf.mxu0
        %v3853 = vadd.f32 %v3628, %v3852
        %v3854 = vpop.f32.mrf.mxu0
        %3855 = vmatprep.mubr.f32.mxu0 0.0
        %3856 = vmatmul.mubr.f32.gmra.mxu0 %v2847
        %v3857 = vpop.f32.mrf.mxu0
        %v3858 = vadd.f32 %v3633, %v3857
        %v3859 = vpop.f32.mrf.mxu0
        %3860 = vmatprep.mubr.f32.mxu0 0.0
        %3861 = vmatmul.mubr.f32.gmra.mxu0 %v2848
        %v3862 = vpop.f32.mrf.mxu0
        %v3863 = vadd.f32 %v3638, %v3862
        %v3864 = vpop.f32.mrf.mxu0
        %3865 = vmatprep.mubr.f32.mxu0 0.0
        %3866 = vmatmul.mubr.f32.gmra.mxu0 %v2849
        %v3867 = vpop.f32.mrf.mxu0
        %v3868 = vadd.f32 %v3643, %v3867
        %v3869 = vpop.f32.mrf.mxu0
        %3870 = vmatprep.mubr.f32.mxu0 0.0
        %3871 = vmatmul.mubr.f32.gmra.mxu0 %v2850
        %v3872 = vpop.f32.mrf.mxu0
        %v3873 = vadd.f32 %v3648, %v3872
        %v3874 = vpop.f32.mrf.mxu0
        %3875 = vmatprep.mubr.f32.mxu0 0.0
        %3876 = vmatmul.mubr.f32.gmra.mxu0 %v2851
        %v3877 = vpop.f32.mrf.mxu0
        %v3878 = vadd.f32 %v3653, %v3877
        %v3879 = vpop.f32.mrf.mxu0
        %3880 = vmatprep.mubr.f32.mxu0 0.0
        %3881 = vmatmul.mubr.f32.gmra.mxu0 %v2852
        %v3882 = vpop.f32.mrf.mxu0
        %v3883 = vadd.f32 %v3658, %v3882
        %v3884 = vpop.f32.mrf.mxu0
        %3885 = vmatprep.mubr.f32.mxu0 0.0
        %3886 = vmatmul.mubr.f32.gmra.mxu0 %v2853
        %v3887 = vpop.f32.mrf.mxu0
        %v3888 = vadd.f32 %v3663, %v3887
        %v3889 = vpop.f32.mrf.mxu0
        %3890 = vmatprep.mubr.f32.mxu0 0.0
        %3891 = vmatmul.mubr.f32.gmra.mxu0 %v2854
        %v3892 = vpop.f32.mrf.mxu0
        %v3893 = vadd.f32 %v3668, %v3892
        %v3894 = vpop.f32.mrf.mxu0
        %3895 = vmatprep.mubr.f32.mxu0 0.0
        %3896 = vmatmul.mubr.f32.gmra.mxu0 %v2855
        %v3897 = vpop.f32.mrf.mxu0
        %v3898 = vadd.f32 %v3673, %v3897
        %v3899 = vpop.f32.mrf.mxu0
        %3900 = vmatprep.mubr.f32.mxu0 0.0
        %3901 = vmatmul.mubr.f32.gmra.mxu0 %v2856
        %v3902 = vpop.f32.mrf.mxu0
        %v3903 = vadd.f32 %v3678, %v3902
        %v3904 = vpop.f32.mrf.mxu0
        %3905 = vmatprep.mubr.f32.mxu0 0.0
        %3906 = vmatmul.mubr.f32.gmra.mxu0 %v2857
        %v3907 = vpop.f32.mrf.mxu0
        %v3908 = vadd.f32 %v3683, %v3907
        %v3909 = vpop.f32.mrf.mxu0
        %3910 = vmatprep.mubr.f32.mxu0 0.0
        %3911 = vmatmul.mubr.f32.gmra.mxu0 %v2858
        %v3912 = vpop.f32.mrf.mxu0
        %v3913 = vadd.f32 %v3688, %v3912
        %v3914 = vpop.f32.mrf.mxu0
        %3915 = vmatprep.mubr.f32.mxu0 0.0
        %3916 = vmatmul.mubr.f32.gmra.mxu0 %v2859
        %v3917 = vpop.f32.mrf.mxu0
        %v3918 = vadd.f32 %v3693, %v3917
        %v3919 = vpop.f32.mrf.mxu0
        %3920 = vmatprep.mubr.f32.mxu0 0.0
        %3921 = vmatmul.mubr.f32.gmra.mxu0 %v2860
        %v3922 = vpop.f32.mrf.mxu0
        %v3923 = vadd.f32 %v3698, %v3922
        %v3924 = vpop.f32.mrf.mxu0
        %3925 = vmatprep.mubr.f32.mxu0 0.0
        %3926 = vmatmul.mubr.f32.gmra.mxu0 %v2861
        %v3927 = vpop.f32.mrf.mxu0
        %v3928 = vadd.f32 %v3703, %v3927
        %v3929 = vpop.f32.mrf.mxu0
        %3930 = vmatprep.mubr.f32.mxu0 0.0
        %3931 = vmatmul.mubr.f32.gmra.mxu0 %v2862
        %v3932 = vpop.f32.mrf.mxu0
        %v3933 = vadd.f32 %v3708, %v3932
        %v3934 = vpop.f32.mrf.mxu0
        %3935 = vmatprep.mubr.f32.mxu0 0.0
        %3936 = vmatmul.mubr.f32.gmra.mxu0 %v2863
        %v3937 = vpop.f32.mrf.mxu0
        %v3938 = vadd.f32 %v3713, %v3937
        %v3939 = vpop.f32.mrf.mxu0
        %3940 = vmatprep.mubr.f32.mxu0 0.0
        %3941 = vmatmul.mubr.f32.gmra.mxu0 %v2864
        %v3942 = vpop.f32.mrf.mxu0
        %v3943 = vadd.f32 %v3718, %v3942
        %v3944 = vpop.f32.mrf.mxu0
        %3945 = vmatprep.mubr.f32.mxu0 0.0
        %3946 = vmatmul.mubr.f32.gmra.mxu0 %v2865
        %v3947 = vpop.f32.mrf.mxu0
        %v3948 = vadd.f32 %v3723, %v3947
        %v3949 = vpop.f32.mrf.mxu0
        %3950 = vmatprep.mubr.f32.mxu0 0.0
        %3951 = vmatmul.mubr.f32.gmra.mxu0 %v2866
        %v3952 = vpop.f32.mrf.mxu0
        %v3953 = vadd.f32 %v3728, %v3952
        %v3954 = vpop.f32.mrf.mxu0
        %3955 = vmatprep.mubr.f32.mxu0 0.0
        %3956 = vmatmul.mubr.f32.gmra.mxu0 %v2867
        %v3957 = vpop.f32.mrf.mxu0
        %v3958 = vadd.f32 %v3733, %v3957
        %v3959 = vpop.f32.mrf.mxu0
        %3960 = vdwg.mxu0
        %s3961 = scalar_lea.vmem [#allocation3], 48
        %v3962 = vld [vmem:[%s3961] sm:$0xff]
        %v3963 = vld [vmem:[%s3961 + $0x8] sm:$0xff]
        %v3964 = vld [vmem:[%s3961 + $0x18] sm:$0xff]
        %v3965 = vld [vmem:[%s3961 + $0x20] sm:$0xff]
        %v3966 = vld [vmem:[%s3961 + $0x30] sm:$0xff]
        %v3967 = vld [vmem:[%s3961 + $0x38] sm:$0xff]
        %v3968 = vld [vmem:[%s3961 + $0x48] sm:$0xff]
        %v3969 = vld [vmem:[%s3961 + $0x50] sm:$0xff]
        %v3970 = vld [vmem:[%s3961 + $0x60] sm:$0xff]
        %v3971 = vld [vmem:[%s3961 + $0x68] sm:$0xff]
        %v3972 = vld [vmem:[%s3961 + $0x78] sm:$0xff]
        %v3973 = vld [vmem:[%s3961 + $0x80] sm:$0xff]
        %v3974 = vld [vmem:[%s3961 + $0x90] sm:$0xff]
        %v3975 = vld [vmem:[%s3961 + $0x98] sm:$0xff]
        %v3976 = vld [vmem:[%s3961 + $0xa8] sm:$0xff]
        %v3977 = vld [vmem:[%s3961 + $0xb0] sm:$0xff]
        %v3978 = vld [vmem:[%s3961 + $0xc0] sm:$0xff]
        %v3979 = vld [vmem:[%s3961 + $0xc8] sm:$0xff]
        %v3980 = vld [vmem:[%s3961 + $0xd8] sm:$0xff]
        %v3981 = vld [vmem:[%s3961 + $0xe0] sm:$0xff]
        %v3982 = vld [vmem:[%s3961 + $0xf0] sm:$0xff]
        %v3983 = vld [vmem:[%s3961 + $0xf8] sm:$0xff]
        %v3984 = vld [vmem:[%s3961 + $0x108] sm:$0xff]
        %v3985 = vld [vmem:[%s3961 + $0x110] sm:$0xff]
        %v3986 = vld [vmem:[%s3961 + $0x120] sm:$0xff]
        %v3987 = vld [vmem:[%s3961 + $0x128] sm:$0xff]
        %v3988 = vld [vmem:[%s3961 + $0x138] sm:$0xff]
        %v3989 = vld [vmem:[%s3961 + $0x140] sm:$0xff]
        %v3990 = vld [vmem:[%s3961 + $0x150] sm:$0xff]
        %v3991 = vld [vmem:[%s3961 + $0x158] sm:$0xff]
        %v3992 = vld [vmem:[%s3961 + $0x168] sm:$0xff]
        %v3993 = vld [vmem:[%s3961 + $0x170] sm:$0xff]
        %v3994 = vld [vmem:[%s3961 + $0x1] sm:$0xff]
        %v3995 = vld [vmem:[%s3961 + $0x9] sm:$0xff]
        %v3996 = vld [vmem:[%s3961 + $0x19] sm:$0xff]
        %v3997 = vld [vmem:[%s3961 + $0x21] sm:$0xff]
        %v3998 = vld [vmem:[%s3961 + $0x31] sm:$0xff]
        %v3999 = vld [vmem:[%s3961 + $0x39] sm:$0xff]
        %v4000 = vld [vmem:[%s3961 + $0x49] sm:$0xff]
        %v4001 = vld [vmem:[%s3961 + $0x51] sm:$0xff]
        %v4002 = vld [vmem:[%s3961 + $0x61] sm:$0xff]
        %v4003 = vld [vmem:[%s3961 + $0x69] sm:$0xff]
        %v4004 = vld [vmem:[%s3961 + $0x79] sm:$0xff]
        %v4005 = vld [vmem:[%s3961 + $0x81] sm:$0xff]
        %v4006 = vld [vmem:[%s3961 + $0x91] sm:$0xff]
        %v4007 = vld [vmem:[%s3961 + $0x99] sm:$0xff]
        %v4008 = vld [vmem:[%s3961 + $0xa9] sm:$0xff]
        %v4009 = vld [vmem:[%s3961 + $0xb1] sm:$0xff]
        %v4010 = vld [vmem:[%s3961 + $0xc1] sm:$0xff]
        %v4011 = vld [vmem:[%s3961 + $0xc9] sm:$0xff]
        %v4012 = vld [vmem:[%s3961 + $0xd9] sm:$0xff]
        %v4013 = vld [vmem:[%s3961 + $0xe1] sm:$0xff]
        %v4014 = vld [vmem:[%s3961 + $0xf1] sm:$0xff]
        %v4015 = vld [vmem:[%s3961 + $0xf9] sm:$0xff]
        %v4016 = vld [vmem:[%s3961 + $0x109] sm:$0xff]
        %v4017 = vld [vmem:[%s3961 + $0x111] sm:$0xff]
        %v4018 = vld [vmem:[%s3961 + $0x121] sm:$0xff]
        %v4019 = vld [vmem:[%s3961 + $0x129] sm:$0xff]
        %v4020 = vld [vmem:[%s3961 + $0x139] sm:$0xff]
        %v4021 = vld [vmem:[%s3961 + $0x141] sm:$0xff]
        %v4022 = vld [vmem:[%s3961 + $0x151] sm:$0xff]
        %v4023 = vld [vmem:[%s3961 + $0x159] sm:$0xff]
        %v4024 = vld [vmem:[%s3961 + $0x169] sm:$0xff]
        %v4025 = vld [vmem:[%s3961 + $0x171] sm:$0xff]
        %v4026 = vld [vmem:[%s3961 + $0x2] sm:$0xff]
        %v4027 = vld [vmem:[%s3961 + $0xa] sm:$0xff]
        %v4028 = vld [vmem:[%s3961 + $0x1a] sm:$0xff]
        %v4029 = vld [vmem:[%s3961 + $0x22] sm:$0xff]
        %v4030 = vld [vmem:[%s3961 + $0x32] sm:$0xff]
        %v4031 = vld [vmem:[%s3961 + $0x3a] sm:$0xff]
        %v4032 = vld [vmem:[%s3961 + $0x4a] sm:$0xff]
        %v4033 = vld [vmem:[%s3961 + $0x52] sm:$0xff]
        %v4034 = vld [vmem:[%s3961 + $0x62] sm:$0xff]
        %v4035 = vld [vmem:[%s3961 + $0x6a] sm:$0xff]
        %v4036 = vld [vmem:[%s3961 + $0x7a] sm:$0xff]
        %v4037 = vld [vmem:[%s3961 + $0x82] sm:$0xff]
        %v4038 = vld [vmem:[%s3961 + $0x92] sm:$0xff]
        %v4039 = vld [vmem:[%s3961 + $0x9a] sm:$0xff]
        %v4040 = vld [vmem:[%s3961 + $0xaa] sm:$0xff]
        %v4041 = vld [vmem:[%s3961 + $0xb2] sm:$0xff]
        %v4042 = vld [vmem:[%s3961 + $0xc2] sm:$0xff]
        %v4043 = vld [vmem:[%s3961 + $0xca] sm:$0xff]
        %v4044 = vld [vmem:[%s3961 + $0xda] sm:$0xff]
        %v4045 = vld [vmem:[%s3961 + $0xe2] sm:$0xff]
        %v4046 = vld [vmem:[%s3961 + $0xf2] sm:$0xff]
        %v4047 = vld [vmem:[%s3961 + $0xfa] sm:$0xff]
        %v4048 = vld [vmem:[%s3961 + $0x10a] sm:$0xff]
        %v4049 = vld [vmem:[%s3961 + $0x112] sm:$0xff]
        %v4050 = vld [vmem:[%s3961 + $0x122] sm:$0xff]
        %v4051 = vld [vmem:[%s3961 + $0x12a] sm:$0xff]
        %v4052 = vld [vmem:[%s3961 + $0x13a] sm:$0xff]
        %v4053 = vld [vmem:[%s3961 + $0x142] sm:$0xff]
        %v4054 = vld [vmem:[%s3961 + $0x152] sm:$0xff]
        %v4055 = vld [vmem:[%s3961 + $0x15a] sm:$0xff]
        %v4056 = vld [vmem:[%s3961 + $0x16a] sm:$0xff]
        %v4057 = vld [vmem:[%s3961 + $0x172] sm:$0xff]
        %v4058 = vld [vmem:[#allocation9 + $0x300] sm:$0xff]
        %v4059 = vld [vmem:[#allocation9 + $0x308] sm:$0xff]
        %v4060 = vld [vmem:[#allocation9 + $0x310] sm:$0xff]
        %v4061 = vld [vmem:[#allocation9 + $0x318] sm:$0xff]
        %v4062 = vld [vmem:[#allocation9 + $0x320] sm:$0xff]
        %v4063 = vld [vmem:[#allocation9 + $0x328] sm:$0xff]
        %v4064 = vld [vmem:[#allocation9 + $0x330] sm:$0xff]
        %v4065 = vld [vmem:[#allocation9 + $0x338] sm:$0xff]
        %v4066 = vld [vmem:[#allocation9 + $0x340] sm:$0xff]
        %v4067 = vld [vmem:[#allocation9 + $0x348] sm:$0xff]
        %v4068 = vld [vmem:[#allocation9 + $0x350] sm:$0xff]
        %v4069 = vld [vmem:[#allocation9 + $0x358] sm:$0xff]
        %v4070 = vld [vmem:[#allocation9 + $0x360] sm:$0xff]
        %v4071 = vld [vmem:[#allocation9 + $0x368] sm:$0xff]
        %v4072 = vld [vmem:[#allocation9 + $0x370] sm:$0xff]
        %v4073 = vld [vmem:[#allocation9 + $0x378] sm:$0xff]
        %v4074 = vld [vmem:[#allocation9 + $0x380] sm:$0xff]
        %v4075 = vld [vmem:[#allocation9 + $0x388] sm:$0xff]
        %v4076 = vld [vmem:[#allocation9 + $0x390] sm:$0xff]
        %v4077 = vld [vmem:[#allocation9 + $0x398] sm:$0xff]
        %v4078 = vld [vmem:[#allocation9 + $0x3a0] sm:$0xff]
        %v4079 = vld [vmem:[#allocation9 + $0x3a8] sm:$0xff]
        %v4080 = vld [vmem:[#allocation9 + $0x3b0] sm:$0xff]
        %v4081 = vld [vmem:[#allocation9 + $0x3b8] sm:$0xff]
        %v4082 = vld [vmem:[#allocation9 + $0x3c0] sm:$0xff]
        %v4083 = vld [vmem:[#allocation9 + $0x3c8] sm:$0xff]
        %v4084 = vld [vmem:[#allocation9 + $0x3d0] sm:$0xff]
        %v4085 = vld [vmem:[#allocation9 + $0x3d8] sm:$0xff]
        %v4086 = vld [vmem:[#allocation9 + $0x3e0] sm:$0xff]
        %v4087 = vld [vmem:[#allocation9 + $0x3e8] sm:$0xff]
        %v4088 = vld [vmem:[#allocation9 + $0x3f0] sm:$0xff]
        %v4089 = vld [vmem:[#allocation9 + $0x3f8] sm:$0xff]
        %v4090 = vld [vmem:[#allocation9 + $0x400] sm:$0xff]
        %v4091 = vld [vmem:[#allocation9 + $0x408] sm:$0xff]
        %v4092 = vld [vmem:[#allocation9 + $0x410] sm:$0xff]
        %v4093 = vld [vmem:[#allocation9 + $0x418] sm:$0xff]
        %v4094 = vld [vmem:[#allocation9 + $0x420] sm:$0xff]
        %v4095 = vld [vmem:[#allocation9 + $0x428] sm:$0xff]
        %v4096 = vld [vmem:[#allocation9 + $0x430] sm:$0xff]
        %v4097 = vld [vmem:[#allocation9 + $0x438] sm:$0xff]
        %v4098 = vld [vmem:[#allocation9 + $0x440] sm:$0xff]
        %v4099 = vld [vmem:[#allocation9 + $0x448] sm:$0xff]
        %v4100 = vld [vmem:[#allocation9 + $0x450] sm:$0xff]
        %v4101 = vld [vmem:[#allocation9 + $0x458] sm:$0xff]
        %v4102 = vld [vmem:[#allocation9 + $0x460] sm:$0xff]
        %v4103 = vld [vmem:[#allocation9 + $0x468] sm:$0xff]
        %v4104 = vld [vmem:[#allocation9 + $0x470] sm:$0xff]
        %v4105 = vld [vmem:[#allocation9 + $0x478] sm:$0xff]
        %4106 = vmatprep.subr.mxu0 0.0
        %4107 = vmatpush1.msra.mxu0 %v4073
        %4108 = vmatprep.subr.mxu0 0.0
        %4109 = vmatpush1.msra.mxu0 %v4072
        %4110 = vmatprep.subr.mxu0 0.0
        %4111 = vmatpush1.msra.mxu0 %v4071
        %4112 = vmatprep.subr.mxu0 0.0
        %4113 = vmatpush1.msra.mxu0 %v4070
        %4114 = vmatprep.subr.mxu0 0.0
        %4115 = vmatpush1.msra.mxu0 %v4069
        %4116 = vmatprep.subr.mxu0 0.0
        %4117 = vmatpush1.msra.mxu0 %v4068
        %4118 = vmatprep.subr.mxu0 0.0
        %4119 = vmatpush1.msra.mxu0 %v4067
        %4120 = vmatprep.subr.mxu0 0.0
        %4121 = vmatpush1.msra.mxu0 %v4066
        %4122 = vmatprep.subr.mxu0 0.0
        %4123 = vmatpush1.msra.mxu0 %v4065
        %4124 = vmatprep.subr.mxu0 0.0
        %4125 = vmatpush1.msra.mxu0 %v4064
        %4126 = vmatprep.subr.mxu0 0.0
        %4127 = vmatpush1.msra.mxu0 %v4063
        %4128 = vmatprep.subr.mxu0 0.0
        %4129 = vmatpush1.msra.mxu0 %v4062
        %4130 = vmatprep.subr.mxu0 0.0
        %4131 = vmatpush1.msra.mxu0 %v4061
        %4132 = vmatprep.subr.mxu0 0.0
        %4133 = vmatpush1.msra.mxu0 %v4060
        %4134 = vmatprep.subr.mxu0 0.0
        %4135 = vmatpush1.msra.mxu0 %v4059
        %4136 = vmatprep.subr.mxu0 0.0
        %4137 = vmatpush1.msra.mxu0 %v4058
        %4138 = vmatprep.subr.mxu0 0.0
        %4139 = vmatpush2.msra.mxu0 %v4089
        %4140 = vmatprep.subr.mxu0 0.0
        %4141 = vmatpush2.msra.mxu0 %v4088
        %4142 = vmatprep.subr.mxu0 0.0
        %4143 = vmatpush2.msra.mxu0 %v4087
        %4144 = vmatprep.subr.mxu0 0.0
        %4145 = vmatpush2.msra.mxu0 %v4086
        %4146 = vmatprep.subr.mxu0 0.0
        %4147 = vmatpush2.msra.mxu0 %v4085
        %4148 = vmatprep.subr.mxu0 0.0
        %4149 = vmatpush2.msra.mxu0 %v4084
        %4150 = vmatprep.subr.mxu0 0.0
        %4151 = vmatpush2.msra.mxu0 %v4083
        %4152 = vmatprep.subr.mxu0 0.0
        %4153 = vmatpush2.msra.mxu0 %v4082
        %4154 = vmatprep.subr.mxu0 0.0
        %4155 = vmatpush2.msra.mxu0 %v4081
        %4156 = vmatprep.subr.mxu0 0.0
        %4157 = vmatpush2.msra.mxu0 %v4080
        %4158 = vmatprep.subr.mxu0 0.0
        %4159 = vmatpush2.msra.mxu0 %v4079
        %4160 = vmatprep.subr.mxu0 0.0
        %4161 = vmatpush2.msra.mxu0 %v4078
        %4162 = vmatprep.subr.mxu0 0.0
        %4163 = vmatpush2.msra.mxu0 %v4077
        %4164 = vmatprep.subr.mxu0 0.0
        %4165 = vmatpush2.msra.mxu0 %v4076
        %4166 = vmatprep.subr.mxu0 0.0
        %4167 = vmatpush2.msra.mxu0 %v4075
        %4168 = vmatprep.subr.mxu0 0.0
        %4169 = vmatpush2.msra.mxu0 %v4074
        %4170 = vmatprep.mubr.f32.mxu0 %v3994
        %4171 = vmatmul.mubr.f32.gmra.mxu0 %v3962
        %v4172 = vpop.f32.mrf.mxu0
        %v4173 = vadd.f32 0.0, %v4172
        %v4174 = vpop.f32.mrf.mxu0
        %4175 = vmatprep.mubr.f32.mxu0 %v3995
        %4176 = vmatmul.mubr.f32.gmra.mxu0 %v3963
        %v4177 = vpop.f32.mrf.mxu0
        %v4178 = vadd.f32 0.0, %v4177
        %v4179 = vpop.f32.mrf.mxu0
        %4180 = vmatprep.mubr.f32.mxu0 %v3996
        %4181 = vmatmul.mubr.f32.gmra.mxu0 %v3964
        %v4182 = vpop.f32.mrf.mxu0
        %v4183 = vadd.f32 0.0, %v4182
        %v4184 = vpop.f32.mrf.mxu0
        %4185 = vmatprep.mubr.f32.mxu0 %v3997
        %4186 = vmatmul.mubr.f32.gmra.mxu0 %v3965
        %v4187 = vpop.f32.mrf.mxu0
        %v4188 = vadd.f32 0.0, %v4187
        %v4189 = vpop.f32.mrf.mxu0
        %4190 = vmatprep.mubr.f32.mxu0 %v3998
        %4191 = vmatmul.mubr.f32.gmra.mxu0 %v3966
        %v4192 = vpop.f32.mrf.mxu0
        %v4193 = vadd.f32 0.0, %v4192
        %v4194 = vpop.f32.mrf.mxu0
        %4195 = vmatprep.mubr.f32.mxu0 %v3999
        %4196 = vmatmul.mubr.f32.gmra.mxu0 %v3967
        %v4197 = vpop.f32.mrf.mxu0
        %v4198 = vadd.f32 0.0, %v4197
        %v4199 = vpop.f32.mrf.mxu0
        %4200 = vmatprep.mubr.f32.mxu0 %v4000
        %4201 = vmatmul.mubr.f32.gmra.mxu0 %v3968
        %v4202 = vpop.f32.mrf.mxu0
        %v4203 = vadd.f32 0.0, %v4202
        %v4204 = vpop.f32.mrf.mxu0
        %4205 = vmatprep.mubr.f32.mxu0 %v4001
        %4206 = vmatmul.mubr.f32.gmra.mxu0 %v3969
        %v4207 = vpop.f32.mrf.mxu0
        %v4208 = vadd.f32 0.0, %v4207
        %v4209 = vpop.f32.mrf.mxu0
        %4210 = vmatprep.mubr.f32.mxu0 %v4002
        %4211 = vmatmul.mubr.f32.gmra.mxu0 %v3970
        %v4212 = vpop.f32.mrf.mxu0
        %v4213 = vadd.f32 0.0, %v4212
        %v4214 = vpop.f32.mrf.mxu0
        %4215 = vmatprep.mubr.f32.mxu0 %v4003
        %4216 = vmatmul.mubr.f32.gmra.mxu0 %v3971
        %v4217 = vpop.f32.mrf.mxu0
        %v4218 = vadd.f32 0.0, %v4217
        %v4219 = vpop.f32.mrf.mxu0
        %4220 = vmatprep.mubr.f32.mxu0 %v4004
        %4221 = vmatmul.mubr.f32.gmra.mxu0 %v3972
        %v4222 = vpop.f32.mrf.mxu0
        %v4223 = vadd.f32 0.0, %v4222
        %v4224 = vpop.f32.mrf.mxu0
        %4225 = vmatprep.mubr.f32.mxu0 %v4005
        %4226 = vmatmul.mubr.f32.gmra.mxu0 %v3973
        %v4227 = vpop.f32.mrf.mxu0
        %v4228 = vadd.f32 0.0, %v4227
        %v4229 = vpop.f32.mrf.mxu0
        %4230 = vmatprep.mubr.f32.mxu0 %v4006
        %4231 = vmatmul.mubr.f32.gmra.mxu0 %v3974
        %v4232 = vpop.f32.mrf.mxu0
        %v4233 = vadd.f32 0.0, %v4232
        %v4234 = vpop.f32.mrf.mxu0
        %4235 = vmatprep.mubr.f32.mxu0 %v4007
        %4236 = vmatmul.mubr.f32.gmra.mxu0 %v3975
        %v4237 = vpop.f32.mrf.mxu0
        %v4238 = vadd.f32 0.0, %v4237
        %v4239 = vpop.f32.mrf.mxu0
        %4240 = vmatprep.mubr.f32.mxu0 %v4008
        %4241 = vmatmul.mubr.f32.gmra.mxu0 %v3976
        %v4242 = vpop.f32.mrf.mxu0
        %v4243 = vadd.f32 0.0, %v4242
        %v4244 = vpop.f32.mrf.mxu0
        %4245 = vmatprep.mubr.f32.mxu0 %v4009
        %4246 = vmatmul.mubr.f32.gmra.mxu0 %v3977
        %v4247 = vpop.f32.mrf.mxu0
        %v4248 = vadd.f32 0.0, %v4247
        %v4249 = vpop.f32.mrf.mxu0
        %4250 = vmatprep.mubr.f32.mxu0 %v4010
        %4251 = vmatmul.mubr.f32.gmra.mxu0 %v3978
        %v4252 = vpop.f32.mrf.mxu0
        %v4253 = vadd.f32 0.0, %v4252
        %v4254 = vpop.f32.mrf.mxu0
        %4255 = vmatprep.mubr.f32.mxu0 %v4011
        %4256 = vmatmul.mubr.f32.gmra.mxu0 %v3979
        %v4257 = vpop.f32.mrf.mxu0
        %v4258 = vadd.f32 0.0, %v4257
        %v4259 = vpop.f32.mrf.mxu0
        %4260 = vmatprep.mubr.f32.mxu0 %v4012
        %4261 = vmatmul.mubr.f32.gmra.mxu0 %v3980
        %v4262 = vpop.f32.mrf.mxu0
        %v4263 = vadd.f32 0.0, %v4262
        %v4264 = vpop.f32.mrf.mxu0
        %4265 = vmatprep.mubr.f32.mxu0 %v4013
        %4266 = vmatmul.mubr.f32.gmra.mxu0 %v3981
        %v4267 = vpop.f32.mrf.mxu0
        %v4268 = vadd.f32 0.0, %v4267
        %v4269 = vpop.f32.mrf.mxu0
        %4270 = vmatprep.mubr.f32.mxu0 %v4014
        %4271 = vmatmul.mubr.f32.gmra.mxu0 %v3982
        %v4272 = vpop.f32.mrf.mxu0
        %v4273 = vadd.f32 0.0, %v4272
        %v4274 = vpop.f32.mrf.mxu0
        %4275 = vmatprep.mubr.f32.mxu0 %v4015
        %4276 = vmatmul.mubr.f32.gmra.mxu0 %v3983
        %v4277 = vpop.f32.mrf.mxu0
        %v4278 = vadd.f32 0.0, %v4277
        %v4279 = vpop.f32.mrf.mxu0
        %4280 = vmatprep.mubr.f32.mxu0 %v4016
        %4281 = vmatmul.mubr.f32.gmra.mxu0 %v3984
        %v4282 = vpop.f32.mrf.mxu0
        %v4283 = vadd.f32 0.0, %v4282
        %v4284 = vpop.f32.mrf.mxu0
        %4285 = vmatprep.mubr.f32.mxu0 %v4017
        %4286 = vmatmul.mubr.f32.gmra.mxu0 %v3985
        %v4287 = vpop.f32.mrf.mxu0
        %v4288 = vadd.f32 0.0, %v4287
        %v4289 = vpop.f32.mrf.mxu0
        %4290 = vmatprep.mubr.f32.mxu0 %v4018
        %4291 = vmatmul.mubr.f32.gmra.mxu0 %v3986
        %v4292 = vpop.f32.mrf.mxu0
        %v4293 = vadd.f32 0.0, %v4292
        %v4294 = vpop.f32.mrf.mxu0
        %4295 = vmatprep.mubr.f32.mxu0 %v4019
        %4296 = vmatmul.mubr.f32.gmra.mxu0 %v3987
        %v4297 = vpop.f32.mrf.mxu0
        %v4298 = vadd.f32 0.0, %v4297
        %v4299 = vpop.f32.mrf.mxu0
        %4300 = vmatprep.mubr.f32.mxu0 %v4020
        %4301 = vmatmul.mubr.f32.gmra.mxu0 %v3988
        %v4302 = vpop.f32.mrf.mxu0
        %v4303 = vadd.f32 0.0, %v4302
        %v4304 = vpop.f32.mrf.mxu0
        %4305 = vmatprep.mubr.f32.mxu0 %v4021
        %4306 = vmatmul.mubr.f32.gmra.mxu0 %v3989
        %v4307 = vpop.f32.mrf.mxu0
        %v4308 = vadd.f32 0.0, %v4307
        %v4309 = vpop.f32.mrf.mxu0
        %4310 = vmatprep.mubr.f32.mxu0 %v4022
        %4311 = vmatmul.mubr.f32.gmra.mxu0 %v3990
        %v4312 = vpop.f32.mrf.mxu0
        %v4313 = vadd.f32 0.0, %v4312
        %v4314 = vpop.f32.mrf.mxu0
        %4315 = vmatprep.mubr.f32.mxu0 %v4023
        %4316 = vmatmul.mubr.f32.gmra.mxu0 %v3991
        %v4317 = vpop.f32.mrf.mxu0
        %v4318 = vadd.f32 0.0, %v4317
        %v4319 = vpop.f32.mrf.mxu0
        %4320 = vmatprep.mubr.f32.mxu0 %v4024
        %4321 = vmatmul.mubr.f32.gmra.mxu0 %v3992
        %v4322 = vpop.f32.mrf.mxu0
        %v4323 = vadd.f32 0.0, %v4322
        %v4324 = vpop.f32.mrf.mxu0
        %4325 = vmatprep.mubr.f32.mxu0 %v4025
        %4326 = vmatmul.mubr.f32.gmra.mxu0 %v3993
        %v4327 = vpop.f32.mrf.mxu0
        %v4328 = vadd.f32 0.0, %v4327
        %v4329 = vpop.f32.mrf.mxu0
        %4330 = vdwg.mxu0
        %4331 = vmatprep.subr.mxu0 0.0
        %4332 = vmatpush1.msra.mxu0 %v4105
        %4333 = vmatprep.subr.mxu0 0.0
        %4334 = vmatpush1.msra.mxu0 %v4104
        %4335 = vmatprep.subr.mxu0 0.0
        %4336 = vmatpush1.msra.mxu0 %v4103
        %4337 = vmatprep.subr.mxu0 0.0
        %4338 = vmatpush1.msra.mxu0 %v4102
        %4339 = vmatprep.subr.mxu0 0.0
        %4340 = vmatpush1.msra.mxu0 %v4101
        %4341 = vmatprep.subr.mxu0 0.0
        %4342 = vmatpush1.msra.mxu0 %v4100
        %4343 = vmatprep.subr.mxu0 0.0
        %4344 = vmatpush1.msra.mxu0 %v4099
        %4345 = vmatprep.subr.mxu0 0.0
        %4346 = vmatpush1.msra.mxu0 %v4098
        %4347 = vmatprep.subr.mxu0 0.0
        %4348 = vmatpush1.msra.mxu0 %v4097
        %4349 = vmatprep.subr.mxu0 0.0
        %4350 = vmatpush1.msra.mxu0 %v4096
        %4351 = vmatprep.subr.mxu0 0.0
        %4352 = vmatpush1.msra.mxu0 %v4095
        %4353 = vmatprep.subr.mxu0 0.0
        %4354 = vmatpush1.msra.mxu0 %v4094
        %4355 = vmatprep.subr.mxu0 0.0
        %4356 = vmatpush1.msra.mxu0 %v4093
        %4357 = vmatprep.subr.mxu0 0.0
        %4358 = vmatpush1.msra.mxu0 %v4092
        %4359 = vmatprep.subr.mxu0 0.0
        %4360 = vmatpush1.msra.mxu0 %v4091
        %4361 = vmatprep.subr.mxu0 0.0
        %4362 = vmatpush1.msra.mxu0 %v4090
        %4363 = vmatprep.subr.mxu0 0.0
        %4364 = vmatpush2.msra.mxu0 0.0
        %4365 = vmatprep.subr.mxu0 0.0
        %4366 = vmatpush2.msra.mxu0 0.0
        %4367 = vmatprep.subr.mxu0 0.0
        %4368 = vmatpush2.msra.mxu0 0.0
        %4369 = vmatprep.subr.mxu0 0.0
        %4370 = vmatpush2.msra.mxu0 0.0
        %4371 = vmatprep.subr.mxu0 0.0
        %4372 = vmatpush2.msra.mxu0 0.0
        %4373 = vmatprep.subr.mxu0 0.0
        %4374 = vmatpush2.msra.mxu0 0.0
        %4375 = vmatprep.subr.mxu0 0.0
        %4376 = vmatpush2.msra.mxu0 0.0
        %4377 = vmatprep.subr.mxu0 0.0
        %4378 = vmatpush2.msra.mxu0 0.0
        %4379 = vmatprep.subr.mxu0 0.0
        %4380 = vmatpush2.msra.mxu0 0.0
        %4381 = vmatprep.subr.mxu0 0.0
        %4382 = vmatpush2.msra.mxu0 0.0
        %4383 = vmatprep.subr.mxu0 0.0
        %4384 = vmatpush2.msra.mxu0 0.0
        %4385 = vmatprep.subr.mxu0 0.0
        %4386 = vmatpush2.msra.mxu0 0.0
        %4387 = vmatprep.subr.mxu0 0.0
        %4388 = vmatpush2.msra.mxu0 0.0
        %4389 = vmatprep.subr.mxu0 0.0
        %4390 = vmatpush2.msra.mxu0 0.0
        %4391 = vmatprep.subr.mxu0 0.0
        %4392 = vmatpush2.msra.mxu0 0.0
        %4393 = vmatprep.subr.mxu0 0.0
        %4394 = vmatpush2.msra.mxu0 0.0
        %4395 = vmatprep.mubr.f32.mxu0 0.0
        %4396 = vmatmul.mubr.f32.gmra.mxu0 %v4026
        %v4397 = vpop.f32.mrf.mxu0
        %v4398 = vadd.f32 %v4173, %v4397
        %v4399 = vpop.f32.mrf.mxu0
        %4400 = vmatprep.mubr.f32.mxu0 0.0
        %4401 = vmatmul.mubr.f32.gmra.mxu0 %v4027
        %v4402 = vpop.f32.mrf.mxu0
        %v4403 = vadd.f32 %v4178, %v4402
        %v4404 = vpop.f32.mrf.mxu0
        %4405 = vmatprep.mubr.f32.mxu0 0.0
        %4406 = vmatmul.mubr.f32.gmra.mxu0 %v4028
        %v4407 = vpop.f32.mrf.mxu0
        %v4408 = vadd.f32 %v4183, %v4407
        %v4409 = vpop.f32.mrf.mxu0
        %4410 = vmatprep.mubr.f32.mxu0 0.0
        %4411 = vmatmul.mubr.f32.gmra.mxu0 %v4029
        %v4412 = vpop.f32.mrf.mxu0
        %v4413 = vadd.f32 %v4188, %v4412
        %v4414 = vpop.f32.mrf.mxu0
        %4415 = vmatprep.mubr.f32.mxu0 0.0
        %4416 = vmatmul.mubr.f32.gmra.mxu0 %v4030
        %v4417 = vpop.f32.mrf.mxu0
        %v4418 = vadd.f32 %v4193, %v4417
        %v4419 = vpop.f32.mrf.mxu0
        %4420 = vmatprep.mubr.f32.mxu0 0.0
        %4421 = vmatmul.mubr.f32.gmra.mxu0 %v4031
        %v4422 = vpop.f32.mrf.mxu0
        %v4423 = vadd.f32 %v4198, %v4422
        %v4424 = vpop.f32.mrf.mxu0
        %4425 = vmatprep.mubr.f32.mxu0 0.0
        %4426 = vmatmul.mubr.f32.gmra.mxu0 %v4032
        %v4427 = vpop.f32.mrf.mxu0
        %v4428 = vadd.f32 %v4203, %v4427
        %v4429 = vpop.f32.mrf.mxu0
        %4430 = vmatprep.mubr.f32.mxu0 0.0
        %4431 = vmatmul.mubr.f32.gmra.mxu0 %v4033
        %v4432 = vpop.f32.mrf.mxu0
        %v4433 = vadd.f32 %v4208, %v4432
        %v4434 = vpop.f32.mrf.mxu0
        %4435 = vmatprep.mubr.f32.mxu0 0.0
        %4436 = vmatmul.mubr.f32.gmra.mxu0 %v4034
        %v4437 = vpop.f32.mrf.mxu0
        %v4438 = vadd.f32 %v4213, %v4437
        %v4439 = vpop.f32.mrf.mxu0
        %4440 = vmatprep.mubr.f32.mxu0 0.0
        %4441 = vmatmul.mubr.f32.gmra.mxu0 %v4035
        %v4442 = vpop.f32.mrf.mxu0
        %v4443 = vadd.f32 %v4218, %v4442
        %v4444 = vpop.f32.mrf.mxu0
        %4445 = vmatprep.mubr.f32.mxu0 0.0
        %4446 = vmatmul.mubr.f32.gmra.mxu0 %v4036
        %v4447 = vpop.f32.mrf.mxu0
        %v4448 = vadd.f32 %v4223, %v4447
        %v4449 = vpop.f32.mrf.mxu0
        %4450 = vmatprep.mubr.f32.mxu0 0.0
        %4451 = vmatmul.mubr.f32.gmra.mxu0 %v4037
        %v4452 = vpop.f32.mrf.mxu0
        %v4453 = vadd.f32 %v4228, %v4452
        %v4454 = vpop.f32.mrf.mxu0
        %4455 = vmatprep.mubr.f32.mxu0 0.0
        %4456 = vmatmul.mubr.f32.gmra.mxu0 %v4038
        %v4457 = vpop.f32.mrf.mxu0
        %v4458 = vadd.f32 %v4233, %v4457
        %v4459 = vpop.f32.mrf.mxu0
        %4460 = vmatprep.mubr.f32.mxu0 0.0
        %4461 = vmatmul.mubr.f32.gmra.mxu0 %v4039
        %v4462 = vpop.f32.mrf.mxu0
        %v4463 = vadd.f32 %v4238, %v4462
        %v4464 = vpop.f32.mrf.mxu0
        %4465 = vmatprep.mubr.f32.mxu0 0.0
        %4466 = vmatmul.mubr.f32.gmra.mxu0 %v4040
        %v4467 = vpop.f32.mrf.mxu0
        %v4468 = vadd.f32 %v4243, %v4467
        %v4469 = vpop.f32.mrf.mxu0
        %4470 = vmatprep.mubr.f32.mxu0 0.0
        %4471 = vmatmul.mubr.f32.gmra.mxu0 %v4041
        %v4472 = vpop.f32.mrf.mxu0
        %v4473 = vadd.f32 %v4248, %v4472
        %v4474 = vpop.f32.mrf.mxu0
        %4475 = vmatprep.mubr.f32.mxu0 0.0
        %4476 = vmatmul.mubr.f32.gmra.mxu0 %v4042
        %v4477 = vpop.f32.mrf.mxu0
        %v4478 = vadd.f32 %v4253, %v4477
        %v4479 = vpop.f32.mrf.mxu0
        %4480 = vmatprep.mubr.f32.mxu0 0.0
        %4481 = vmatmul.mubr.f32.gmra.mxu0 %v4043
        %v4482 = vpop.f32.mrf.mxu0
        %v4483 = vadd.f32 %v4258, %v4482
        %v4484 = vpop.f32.mrf.mxu0
        %4485 = vmatprep.mubr.f32.mxu0 0.0
        %4486 = vmatmul.mubr.f32.gmra.mxu0 %v4044
        %v4487 = vpop.f32.mrf.mxu0
        %v4488 = vadd.f32 %v4263, %v4487
        %v4489 = vpop.f32.mrf.mxu0
        %4490 = vmatprep.mubr.f32.mxu0 0.0
        %4491 = vmatmul.mubr.f32.gmra.mxu0 %v4045
        %v4492 = vpop.f32.mrf.mxu0
        %v4493 = vadd.f32 %v4268, %v4492
        %v4494 = vpop.f32.mrf.mxu0
        %4495 = vmatprep.mubr.f32.mxu0 0.0
        %4496 = vmatmul.mubr.f32.gmra.mxu0 %v4046
        %v4497 = vpop.f32.mrf.mxu0
        %v4498 = vadd.f32 %v4273, %v4497
        %v4499 = vpop.f32.mrf.mxu0
        %4500 = vmatprep.mubr.f32.mxu0 0.0
        %4501 = vmatmul.mubr.f32.gmra.mxu0 %v4047
        %v4502 = vpop.f32.mrf.mxu0
        %v4503 = vadd.f32 %v4278, %v4502
        %v4504 = vpop.f32.mrf.mxu0
        %4505 = vmatprep.mubr.f32.mxu0 0.0
        %4506 = vmatmul.mubr.f32.gmra.mxu0 %v4048
        %v4507 = vpop.f32.mrf.mxu0
        %v4508 = vadd.f32 %v4283, %v4507
        %v4509 = vpop.f32.mrf.mxu0
        %4510 = vmatprep.mubr.f32.mxu0 0.0
        %4511 = vmatmul.mubr.f32.gmra.mxu0 %v4049
        %v4512 = vpop.f32.mrf.mxu0
        %v4513 = vadd.f32 %v4288, %v4512
        %v4514 = vpop.f32.mrf.mxu0
        %4515 = vmatprep.mubr.f32.mxu0 0.0
        %4516 = vmatmul.mubr.f32.gmra.mxu0 %v4050
        %v4517 = vpop.f32.mrf.mxu0
        %v4518 = vadd.f32 %v4293, %v4517
        %v4519 = vpop.f32.mrf.mxu0
        %4520 = vmatprep.mubr.f32.mxu0 0.0
        %4521 = vmatmul.mubr.f32.gmra.mxu0 %v4051
        %v4522 = vpop.f32.mrf.mxu0
        %v4523 = vadd.f32 %v4298, %v4522
        %v4524 = vpop.f32.mrf.mxu0
        %4525 = vmatprep.mubr.f32.mxu0 0.0
        %4526 = vmatmul.mubr.f32.gmra.mxu0 %v4052
        %v4527 = vpop.f32.mrf.mxu0
        %v4528 = vadd.f32 %v4303, %v4527
        %v4529 = vpop.f32.mrf.mxu0
        %4530 = vmatprep.mubr.f32.mxu0 0.0
        %4531 = vmatmul.mubr.f32.gmra.mxu0 %v4053
        %v4532 = vpop.f32.mrf.mxu0
        %v4533 = vadd.f32 %v4308, %v4532
        %v4534 = vpop.f32.mrf.mxu0
        %4535 = vmatprep.mubr.f32.mxu0 0.0
        %4536 = vmatmul.mubr.f32.gmra.mxu0 %v4054
        %v4537 = vpop.f32.mrf.mxu0
        %v4538 = vadd.f32 %v4313, %v4537
        %v4539 = vpop.f32.mrf.mxu0
        %4540 = vmatprep.mubr.f32.mxu0 0.0
        %4541 = vmatmul.mubr.f32.gmra.mxu0 %v4055
        %v4542 = vpop.f32.mrf.mxu0
        %v4543 = vadd.f32 %v4318, %v4542
        %v4544 = vpop.f32.mrf.mxu0
        %4545 = vmatprep.mubr.f32.mxu0 0.0
        %4546 = vmatmul.mubr.f32.gmra.mxu0 %v4056
        %v4547 = vpop.f32.mrf.mxu0
        %v4548 = vadd.f32 %v4323, %v4547
        %v4549 = vpop.f32.mrf.mxu0
        %4550 = vmatprep.mubr.f32.mxu0 0.0
        %4551 = vmatmul.mubr.f32.gmra.mxu0 %v4057
        %v4552 = vpop.f32.mrf.mxu0
        %v4553 = vadd.f32 %v4328, %v4552
        %v4554 = vpop.f32.mrf.mxu0
        %4555 = vdwg.mxu0
        %v4556 = vadd.f32 %v3803, %v4398
        %v4557 = vadd.f32 %v3808, %v4403
        %v4558 = vadd.f32 %v3813, %v4408
        %v4559 = vadd.f32 %v3818, %v4413
        %v4560 = vadd.f32 %v3823, %v4418
        %v4561 = vadd.f32 %v3828, %v4423
        %v4562 = vadd.f32 %v3833, %v4428
        %v4563 = vadd.f32 %v3838, %v4433
        %v4564 = vadd.f32 %v3843, %v4438
        %v4565 = vadd.f32 %v3848, %v4443
        %v4566 = vadd.f32 %v3853, %v4448
        %v4567 = vadd.f32 %v3858, %v4453
        %v4568 = vadd.f32 %v3863, %v4458
        %v4569 = vadd.f32 %v3868, %v4463
        %v4570 = vadd.f32 %v3873, %v4468
        %v4571 = vadd.f32 %v3878, %v4473
        %v4572 = vadd.f32 %v3883, %v4478
        %v4573 = vadd.f32 %v3888, %v4483
        %v4574 = vadd.f32 %v3893, %v4488
        %v4575 = vadd.f32 %v3898, %v4493
        %v4576 = vadd.f32 %v3903, %v4498
        %v4577 = vadd.f32 %v3908, %v4503
        %v4578 = vadd.f32 %v3913, %v4508
        %v4579 = vadd.f32 %v3918, %v4513
        %v4580 = vadd.f32 %v3923, %v4518
        %v4581 = vadd.f32 %v3928, %v4523
        %v4582 = vadd.f32 %v3933, %v4528
        %v4583 = vadd.f32 %v3938, %v4533
        %v4584 = vadd.f32 %v3943, %v4538
        %v4585 = vadd.f32 %v3948, %v4543
        %v4586 = vadd.f32 %v3953, %v4548
        %v4587 = vadd.f32 %v3958, %v4553
        %v4588 = vlaneseq
        %v4589 = vshrl.u32 %v4588, 7
        %v4590 = vsub.s32 0, %v4589
        %v4591 = vrot.slane %v278, %v4590
        %v4592 = vmul.f32 %v4556, %v4591
        %v4593 = vmul.f32 %v4557, %v4591
        %v4594 = vmul.f32 %v4558, %v4591
        %v4595 = vmul.f32 %v4559, %v4591
        %v4596 = vmul.f32 %v4560, %v4591
        %v4597 = vmul.f32 %v4561, %v4591
        %v4598 = vmul.f32 %v4562, %v4591
        %v4599 = vmul.f32 %v4563, %v4591
        %v4600 = vmul.f32 %v4564, %v4591
        %v4601 = vmul.f32 %v4565, %v4591
        %v4602 = vmul.f32 %v4566, %v4591
        %v4603 = vmul.f32 %v4567, %v4591
        %v4604 = vmul.f32 %v4568, %v4591
        %v4605 = vmul.f32 %v4569, %v4591
        %v4606 = vmul.f32 %v4570, %v4591
        %v4607 = vmul.f32 %v4571, %v4591
        %v4608 = vmul.f32 %v4572, %v4591
        %v4609 = vmul.f32 %v4573, %v4591
        %v4610 = vmul.f32 %v4574, %v4591
        %v4611 = vmul.f32 %v4575, %v4591
        %v4612 = vmul.f32 %v4576, %v4591
        %v4613 = vmul.f32 %v4577, %v4591
        %v4614 = vmul.f32 %v4578, %v4591
        %v4615 = vmul.f32 %v4579, %v4591
        %v4616 = vmul.f32 %v4580, %v4591
        %v4617 = vmul.f32 %v4581, %v4591
        %v4618 = vmul.f32 %v4582, %v4591
        %v4619 = vmul.f32 %v4583, %v4591
        %v4620 = vmul.f32 %v4584, %v4591
        %v4621 = vmul.f32 %v4585, %v4591
        %v4622 = vmul.f32 %v4586, %v4591
        %v4623 = vmul.f32 %v4587, %v4591
        %v4624 = vlaneseq
        %v4625 = vshrl.u32 %v4624, 7
        %v4626 = vsub.s32 0, %v4625
        %v4627 = vrot.slane %v279, %v4626
        %v4628 = vadd.f32 %v4592, %v4627
        %v4629 = vadd.f32 %v4593, %v4627
        %v4630 = vadd.f32 %v4594, %v4627
        %v4631 = vadd.f32 %v4595, %v4627
        %v4632 = vadd.f32 %v4596, %v4627
        %v4633 = vadd.f32 %v4597, %v4627
        %v4634 = vadd.f32 %v4598, %v4627
        %v4635 = vadd.f32 %v4599, %v4627
        %v4636 = vadd.f32 %v4600, %v4627
        %v4637 = vadd.f32 %v4601, %v4627
        %v4638 = vadd.f32 %v4602, %v4627
        %v4639 = vadd.f32 %v4603, %v4627
        %v4640 = vadd.f32 %v4604, %v4627
        %v4641 = vadd.f32 %v4605, %v4627
        %v4642 = vadd.f32 %v4606, %v4627
        %v4643 = vadd.f32 %v4607, %v4627
        %v4644 = vadd.f32 %v4608, %v4627
        %v4645 = vadd.f32 %v4609, %v4627
        %v4646 = vadd.f32 %v4610, %v4627
        %v4647 = vadd.f32 %v4611, %v4627
        %v4648 = vadd.f32 %v4612, %v4627
        %v4649 = vadd.f32 %v4613, %v4627
        %v4650 = vadd.f32 %v4614, %v4627
        %v4651 = vadd.f32 %v4615, %v4627
        %v4652 = vadd.f32 %v4616, %v4627
        %v4653 = vadd.f32 %v4617, %v4627
        %v4654 = vadd.f32 %v4618, %v4627
        %v4655 = vadd.f32 %v4619, %v4627
        %v4656 = vadd.f32 %v4620, %v4627
        %v4657 = vadd.f32 %v4621, %v4627
        %v4658 = vadd.f32 %v4622, %v4627
        %v4659 = vadd.f32 %v4623, %v4627
        %v4660 = vld [vmem:[%s322] sm:$0xff]
        %v4661 = vld [vmem:[%s322 + $0x8] sm:$0xff]
        %v4662 = vld [vmem:[%s322 + $0x10] sm:$0xff]
        %v4663 = vld [vmem:[%s322 + $0x18] sm:$0xff]
        %v4664 = vld [vmem:[%s322 + $0x20] sm:$0xff]
        %v4665 = vld [vmem:[%s322 + $0x28] sm:$0xff]
        %v4666 = vld [vmem:[%s322 + $0x30] sm:$0xff]
        %v4667 = vld [vmem:[%s322 + $0x38] sm:$0xff]
        %v4668 = vld [vmem:[%s322 + $0x40] sm:$0xff]
        %v4669 = vld [vmem:[%s322 + $0x48] sm:$0xff]
        %v4670 = vld [vmem:[%s322 + $0x50] sm:$0xff]
        %v4671 = vld [vmem:[%s322 + $0x58] sm:$0xff]
        %v4672 = vld [vmem:[%s322 + $0x60] sm:$0xff]
        %v4673 = vld [vmem:[%s322 + $0x68] sm:$0xff]
        %v4674 = vld [vmem:[%s322 + $0x70] sm:$0xff]
        %v4675 = vld [vmem:[%s322 + $0x78] sm:$0xff]
        %v4676 = vld [vmem:[%s322 + $0x80] sm:$0xff]
        %v4677 = vld [vmem:[%s322 + $0x88] sm:$0xff]
        %v4678 = vld [vmem:[%s322 + $0x90] sm:$0xff]
        %v4679 = vld [vmem:[%s322 + $0x98] sm:$0xff]
        %v4680 = vld [vmem:[%s322 + $0xa0] sm:$0xff]
        %v4681 = vld [vmem:[%s322 + $0xa8] sm:$0xff]
        %v4682 = vld [vmem:[%s322 + $0xb0] sm:$0xff]
        %v4683 = vld [vmem:[%s322 + $0xb8] sm:$0xff]
        %v4684 = vld [vmem:[%s322 + $0xc0] sm:$0xff]
        %v4685 = vld [vmem:[%s322 + $0xc8] sm:$0xff]
        %v4686 = vld [vmem:[%s322 + $0xd0] sm:$0xff]
        %v4687 = vld [vmem:[%s322 + $0xd8] sm:$0xff]
        %v4688 = vld [vmem:[%s322 + $0xe0] sm:$0xff]
        %v4689 = vld [vmem:[%s322 + $0xe8] sm:$0xff]
        %v4690 = vld [vmem:[%s322 + $0xf0] sm:$0xff]
        %v4691 = vld [vmem:[%s322 + $0xf8] sm:$0xff]
        %v4692 = vadd.f32 %v4628, %v4660
        %v4693 = vadd.f32 %v4629, %v4661
        %v4694 = vadd.f32 %v4630, %v4662
        %v4695 = vadd.f32 %v4631, %v4663
        %v4696 = vadd.f32 %v4632, %v4664
        %v4697 = vadd.f32 %v4633, %v4665
        %v4698 = vadd.f32 %v4634, %v4666
        %v4699 = vadd.f32 %v4635, %v4667
        %v4700 = vadd.f32 %v4636, %v4668
        %v4701 = vadd.f32 %v4637, %v4669
        %v4702 = vadd.f32 %v4638, %v4670
        %v4703 = vadd.f32 %v4639, %v4671
        %v4704 = vadd.f32 %v4640, %v4672
        %v4705 = vadd.f32 %v4641, %v4673
        %v4706 = vadd.f32 %v4642, %v4674
        %v4707 = vadd.f32 %v4643, %v4675
        %v4708 = vadd.f32 %v4644, %v4676
        %v4709 = vadd.f32 %v4645, %v4677
        %v4710 = vadd.f32 %v4646, %v4678
        %v4711 = vadd.f32 %v4647, %v4679
        %v4712 = vadd.f32 %v4648, %v4680
        %v4713 = vadd.f32 %v4649, %v4681
        %v4714 = vadd.f32 %v4650, %v4682
        %v4715 = vadd.f32 %v4651, %v4683
        %v4716 = vadd.f32 %v4652, %v4684
        %v4717 = vadd.f32 %v4653, %v4685
        %v4718 = vadd.f32 %v4654, %v4686
        %v4719 = vadd.f32 %v4655, %v4687
        %v4720 = vadd.f32 %v4656, %v4688
        %v4721 = vadd.f32 %v4657, %v4689
        %v4722 = vadd.f32 %v4658, %v4690
        %v4723 = vadd.f32 %v4659, %v4691
        %4724 = vst [vmem:[%s271] sm:$0xff] %v4692
        %4725 = vst [vmem:[%s271 + $0x8] sm:$0xff] %v4693
        %4726 = vst [vmem:[%s271 + $0x10] sm:$0xff] %v4694
        %4727 = vst [vmem:[%s271 + $0x18] sm:$0xff] %v4695
        %4728 = vst [vmem:[%s271 + $0x20] sm:$0xff] %v4696
        %4729 = vst [vmem:[%s271 + $0x28] sm:$0xff] %v4697
        %4730 = vst [vmem:[%s271 + $0x30] sm:$0xff] %v4698
        %4731 = vst [vmem:[%s271 + $0x38] sm:$0xff] %v4699
        %4732 = vst [vmem:[%s271 + $0x40] sm:$0xff] %v4700
        %4733 = vst [vmem:[%s271 + $0x48] sm:$0xff] %v4701
        %4734 = vst [vmem:[%s271 + $0x50] sm:$0xff] %v4702
        %4735 = vst [vmem:[%s271 + $0x58] sm:$0xff] %v4703
        %4736 = vst [vmem:[%s271 + $0x60] sm:$0xff] %v4704
        %4737 = vst [vmem:[%s271 + $0x68] sm:$0xff] %v4705
        %4738 = vst [vmem:[%s271 + $0x70] sm:$0xff] %v4706
        %4739 = vst [vmem:[%s271 + $0x78] sm:$0xff] %v4707
        %4740 = vst [vmem:[%s271 + $0x80] sm:$0xff] %v4708
        %4741 = vst [vmem:[%s271 + $0x88] sm:$0xff] %v4709
        %4742 = vst [vmem:[%s271 + $0x90] sm:$0xff] %v4710
        %4743 = vst [vmem:[%s271 + $0x98] sm:$0xff] %v4711
        %4744 = vst [vmem:[%s271 + $0xa0] sm:$0xff] %v4712
        %4745 = vst [vmem:[%s271 + $0xa8] sm:$0xff] %v4713
        %4746 = vst [vmem:[%s271 + $0xb0] sm:$0xff] %v4714
        %4747 = vst [vmem:[%s271 + $0xb8] sm:$0xff] %v4715
        %4748 = vst [vmem:[%s271 + $0xc0] sm:$0xff] %v4716
        %4749 = vst [vmem:[%s271 + $0xc8] sm:$0xff] %v4717
        %4750 = vst [vmem:[%s271 + $0xd0] sm:$0xff] %v4718
        %4751 = vst [vmem:[%s271 + $0xd8] sm:$0xff] %v4719
        %4752 = vst [vmem:[%s271 + $0xe0] sm:$0xff] %v4720
        %4753 = vst [vmem:[%s271 + $0xe8] sm:$0xff] %v4721
        %4754 = vst [vmem:[%s271 + $0xf0] sm:$0xff] %v4722
        %4755 = vst [vmem:[%s271 + $0xf8] sm:$0xff] %v4723
        %s4756 = sand.u32 %s134, 1
        %s4757 = scalar_lea.sflag [#allocation6], %s4756
        %s4758 = sand.u32 %s134, 1
        %s4759 = smul.addr %s4758, 256
        %s4760 = scalar_lea.vmem [#allocation12], %s4759
        // Predicated region
        $region73: #{tpu_custom_call.1} parent=35 // pred_check
          %p4761 = pneg %p144
        $region74: #{tpu_custom_call.1} parent=35 // pred_check_branch
          %4763 = sbr.rel (%p4761) target = $region76
        $region75: #{tpu_custom_call.1} parent=35 // pred_region
          %s4764 = smul.u32 16, %s28
          %s4766 = ssub.s32 4096, 4096
          %4767 = vsyncadd %s4757, %s4766
          %s4768 = smul.addr %s4764, 2
          %s4769 = smul.addr %s27, 32
          %s4770 = sadd.s32 %s4768, %s4769
          %s4771 = smul.addr %s4770, 128
          %s4772 = scalar_lea.hbm %s4, %s4771
          %s4773 = sshll.u32 %s4760, 4
          %s4774 = int_to_ptr.vmem [resolvable:$true] %s4773
          %4779 = dma.vmem_to_hbm [thread:$0]  %s4774, 4096, %s4772, %s4757, 128, 128, 8
        $region76: #{tpu_custom_call.1} parent=35 // pred_fallthru
          _
      $region36: #{tpu_custom_call.1} parent=5 // pred_fallthru
        _
      %p4780 = scmp.le.s32.totalorder 2, %s18
      // Predicated region
      $region77: #{tpu_custom_call.1} parent=5 // pred_check
        %p4781 = pneg %p4780
      $region78: #{tpu_custom_call.1} parent=5 // pred_check_branch
        %4783 = sbr.rel (%p4781) target = $region80
      $region79: #{tpu_custom_call.1} parent=5 // pred_region
        %s4784 = ssub.s32 %s18, 2
        // Predicated region
        $region81: #{tpu_custom_call.1} parent=79 // pred_check
          %p4785 = pneg %p150
        $region82: #{tpu_custom_call.1} parent=79 // pred_check_branch
          %4787 = sbr.rel (%p4785) target = $region84
        $region83: #{tpu_custom_call.1} parent=79 // pred_region
          %s4788 = sand.u32 %s135, 1
          %s4789 = scalar_lea.sflag [#allocation6], %s4788
          %s4790 = sand.u32 %s135, 1
          %s4791 = smul.addr %s4790, 256
          %s4792 = scalar_lea.vmem [#allocation12], %s4791
          %4793 = dma.done %s4789, 4096
        $region84: #{tpu_custom_call.1} parent=79 // pred_fallthru
          _
      $region80: #{tpu_custom_call.1} parent=5 // pred_fallthru
        _
    $region6: #{tpu_custom_call.1} parent=1 // loop_footer
      %s22 = sadd.s32 1, %s18
    $region7: #{tpu_custom_call.1} parent=1 // loop_footer_branch
      %17 = sbr.rel target = $region3
    $region8: #{tpu_custom_call.1} parent=1 // loop_exit
      _
    %4794 = vsyncpa [#allocation5], 1
    %s4795 = scalar_lea.sflag [#allocation5], 1
    %4796 = vsyncpa %s4795, 1
    %4797 = vsyncpa [#allocation8], 1
    %4798 = vsyncpa [#allocation11], 1
    %4799 = vsyncpa [#allocation6], 1
    %s4800 = scalar_lea.sflag [#allocation6], 1
    %4801 = vsyncpa %s4800, 1

</llo_original>
